<compile_context>
chip_gen: v6e
topology: v6e:2x2x1
jax: 0.10.0
libtpu: 0.0.40
codegen_flags: <defaults>
</compile_context>

<pallas_src>
import jax
import jax.numpy as jnp
from jax import lax
from jax.experimental import pallas as pl
from jax.experimental.pallas import tpu as pltpu

KSIZE = 7
PAD = 3
_CHUNK_C = 8      # channels streamed per step (bounds vreg pressure)
_N_ACC = 4        # independent conv accumulators (breaks the 98-long add chain)


def _two_tensorcores_per_chip():
    """Best-effort detection of a dual-TensorCore (v7x-class) chip."""
    try:
        kind = jax.devices()[0].device_kind.lower()
        return ("v7" in kind) or ("7x" in kind)
    except Exception:
        return False


def _pick_batch_block(N, C, H, W, itemsize, two_cores):
    """Images per grid step.

    Bounded by (a) a 12 MiB cap on the double-buffered (in+out) DMA block,
    (b) a vreg-pressure cap — the reduction chunk, conv accumulators and
    attention map are all live per image — and (c) on dual-TC chips, keeping
    at least 2 grid blocks so both TensorCores get work.
    """
    hw = H * W
    per_img_dma = 2 * C * hw * itemsize                 # in + out bytes / image
    nb_dma = max(1, (12 << 20) // max(1, per_img_dma))
    per_img_live = (_CHUNK_C + 10) * hw * 4             # rough live f32 bytes / image
    nb_reg = max(1, (128 << 10) // max(1, per_img_live))
    nb = max(1, min(N, nb_dma, nb_reg))
    if two_cores and N >= 2:
        nb = min(nb, -(-N // 2))                        # >= 2 grid blocks
    return nb


def _make_sam_kernel(C, H, W):
    HW = H * W
    Hp, Wp = H + 2 * PAD, W + 2 * PAD
    n_taps = KSIZE * KSIZE

    def kernel(w_ref, x_ref, o_ref,
               avg_scr, max_scr, band_a, band_m,
               sum_flat, max_flat, att2d_scr, att_flat):
        # w_ref     : SMEM (98,) f32   flattened weights, avg-half pre-scaled by 1/C
        # x_ref     : VMEM (nb, C, HW) lane-dense input block
        # o_ref     : VMEM (nb, C, HW) lane-dense output block
        # avg_scr   : VMEM (nb, Hp, Wp) padded channel-sum map (zero border)
        # max_scr   : VMEM (nb, Hp, Wp) padded channel-max map (zero border)
        # band_a/m  : VMEM (nb, Hp, W)  kw-shifted band staging
        # sum_flat  : VMEM (nb, 1, HW)  flat channel-sum
        # max_flat  : VMEM (nb, 1, HW)  flat channel-max
        # att2d_scr : VMEM (nb, H, W)   sigmoid(conv) map
        # att_flat  : VMEM (nb, 1, HW)  flat attention map
        Nb = x_ref.shape[0]
        f32 = jnp.float32

        # ---- 1) channel mean / max on the lane-dense (nb, C, HW) view -----
        # NOTE: Python loop unrolls at trace time; for very large C switch to
        # lax.fori_loop with a carried accumulator.
        part_sum = None
        part_max = None
        c0 = 0
        while c0 < C:
            cb = min(_CHUNK_C, C - c0)
            xc = x_ref[:, c0:c0 + cb, :].astype(f32)           # (nb, cb, HW)
            s = jnp.sum(xc, axis=1, keepdims=True)             # (nb, 1, HW)
            m = jnp.max(xc, axis=1, keepdims=True)
            part_sum = s if part_sum is None else part_sum + s
            part_max = m if part_max is None else jnp.maximum(part_max, m)
            c0 += cb
        # 1/C is folded into the avg-half of the weights host-side.
        sum_flat[...] = part_sum
        max_flat[...] = part_max

        # ---- 2) padded maps: zero only the 3-wide border strips -----------
        zrow = jnp.zeros((Nb, PAD, Wp), f32)
        zcol = jnp.zeros((Nb, H, PAD), f32)
        for scr in (avg_scr, max_scr):
            scr[:, :PAD, :] = zrow
            scr[:, PAD + H:, :] = zrow
            scr[:, PAD:PAD + H, :PAD] = zcol
            scr[:, PAD:PAD + H, PAD + W:] = zcol
        # Interior rows copied from the flat maps: only 2 maps worth of
        # narrow-row work (vs. C maps had x stayed in NCHW layout).
        for h in range(H):
            avg_scr[:, PAD + h:PAD + h + 1, PAD:PAD + W] = \
                sum_flat[:, :, h * W:(h + 1) * W]
            max_scr[:, PAD + h:PAD + h + 1, PAD:PAD + W] = \
                max_flat[:, :, h * W:(h + 1) * W]

        # ---- 3) 7x7 conv with the kw lane-shift hoisted --------------------
        # Hoist all 98 SMEM weight reads out of the unrolled tap body.
        wa = [w_ref[i] for i in range(n_taps)]
        wm = [w_ref[n_taps + i] for i in range(n_taps)]
        accs = [jnp.zeros((Nb, H, W), f32) for _ in range(_N_ACC)]
        for kw in range(KSIZE):
            # One lane-shifted copy per kw per map; kh taps below read it back
            # with pure sublane/address offsets (no further lane work).
            band_a[...] = avg_scr[:, :, kw:kw + W]
            band_m[...] = max_scr[:, :, kw:kw + W]
            for kh in range(KSIZE):
                idx = kh * KSIZE + kw
                term = (wa[idx] * band_a[:, kh:kh + H, :]
                        + wm[idx] * band_m[:, kh:kh + H, :])
                accs[idx % _N_ACC] = accs[idx % _N_ACC] + term
        y = (accs[0] + accs[1]) + (accs[2] + accs[3])
        att2d_scr[...] = jax.nn.sigmoid(y)                     # (nb, H, W)

        # ---- 4) flatten the attention map, then lane-dense apply -----------
        for h in range(H):
            att_flat[:, :, h * W:(h + 1) * W] = att2d_scr[:, h:h + 1, :]
        # Multiply in the input dtype (bf16 stays bf16 on v6e/v7x; f32 stays f32).
        att = att_flat[...].astype(o_ref.dtype)                # (nb, 1, HW)
        c0 = 0
        while c0 < C:
            cb = min(_CHUNK_C, C - c0)
            o_ref[:, c0:c0 + cb, :] = x_ref[:, c0:c0 + cb, :] * att
            c0 += cb

    return kernel


@jax.jit
def sam_forward(x, weight):
    """x: (N, C, H, W); weight: (1, 2, 7, 7) conv2d weight (no bias)."""
    N, C, H, W = x.shape
    HW = H * W
    Hp, Wp = H + 2 * PAD, W + 2 * PAD

    # Free metadata reshape: last two dims are contiguous in row-major NCHW.
    x_flat = x.reshape(N, C, HW)

    # Flattened weights with the 1/C mean scale folded into the avg-half.
    w2 = weight.astype(jnp.float32).reshape(2, KSIZE * KSIZE)
    w_flat = jnp.concatenate([w2[0] * (1.0 / C), w2[1]], axis=0)   # (98,)

    nb = _pick_batch_block(N, C, H, W, x.dtype.itemsize,
                           _two_tensorcores_per_chip())
    grid_n = pl.cdiv(N, nb)   # remainder-tolerant: nb need not divide N

    grid_spec = pltpu.PrefetchScalarGridSpec(
        num_scalar_prefetch=1,
        grid=(grid_n,),
        in_specs=[
            pl.BlockSpec((nb, C, HW), lambda n, w_pref: (n, 0, 0)),
        ],
        out_specs=pl.BlockSpec((nb, C, HW), lambda n, w_pref: (n, 0, 0)),
        scratch_shapes=[
            pltpu.VMEM((nb, Hp, Wp), jnp.float32),   # padded avg map
            pltpu.VMEM((nb, Hp, Wp), jnp.float32),   # padded max map
            pltpu.VMEM((nb, Hp, W), jnp.float32),    # kw-shifted avg band
            pltpu.VMEM((nb, Hp, W), jnp.float32),    # kw-shifted max band
            pltpu.VMEM((nb, 1, HW), jnp.float32),    # flat channel-sum
            pltpu.VMEM((nb, 1, HW), jnp.float32),    # flat channel-max
            pltpu.VMEM((nb, H, W), jnp.float32),     # sigmoid(conv) map
            pltpu.VMEM((nb, 1, HW), jnp.float32),    # flat attention map
        ],
    )

    out_flat = pl.pallas_call(
        _make_sam_kernel(C, H, W),
        out_shape=jax.ShapeDtypeStruct((N, C, HW), x.dtype),
        grid_spec=grid_spec,
        compiler_params=pltpu.CompilerParams(
            dimension_semantics=("parallel",),
            vmem_limit_bytes=32 * 1024 * 1024),
    )(w_flat, x_flat)

    return out_flat.reshape(N, C, H, W)


def sam_reference(x, weight):
    avg = jnp.mean(x, axis=1, keepdims=True)
    mx = jnp.max(x, axis=1, keepdims=True)
    y = jnp.concatenate([avg, mx], axis=1)
    y = lax.conv_general_dilated(
        y, weight, window_strides=(1, 1),
        padding=((PAD, PAD), (PAD, PAD)),
        dimension_numbers=("NCHW", "OIHW", "NCHW"))
    return x * jax.nn.sigmoid(y)


if __name__ == "__main__":
    key = jax.random.PRNGKey(0)
    kx, kw = jax.random.split(key)

    N, C, H, W = 2, 4, 16, 16
    x = jax.random.normal(kx, (N, C, H, W), dtype=jnp.float32)
    # Matches nn.Conv2d(2, 1, 7, padding=3, bias=False) weight shape.
    weight = 0.1 * jax.random.normal(kw, (1, 2, KSIZE, KSIZE), dtype=jnp.float32)

    out = sam_forward(x, weight)
    out = jax.block_until_ready(out)

    ref = sam_reference(x, weight)
    if not jnp.allclose(out, ref, atol=1e-5, rtol=1e-5):
        raise AssertionError("Pallas SAM output does not match reference")

    print("KERNEL_OK")
</pallas_src>

<mosaic_0001>
module attributes {stable_mosaic.version = 11 : i64} {
  func.func @kernel(%arg0: i32, %arg1: memref<98xf32, #tpu.memory_space<smem>>, %arg2: memref<2x4x256xf32, #tpu.memory_space<vmem>>, %arg3: memref<2x4x256xf32, #tpu.memory_space<vmem>>, %arg4: memref<2x22x22xf32, #tpu.memory_space<vmem>>, %arg5: memref<2x22x22xf32, #tpu.memory_space<vmem>>, %arg6: memref<2x22x16xf32, #tpu.memory_space<vmem>>, %arg7: memref<2x22x16xf32, #tpu.memory_space<vmem>>, %arg8: memref<2x1x256xf32, #tpu.memory_space<vmem>>, %arg9: memref<2x1x256xf32, #tpu.memory_space<vmem>>, %arg10: memref<2x16x16xf32, #tpu.memory_space<vmem>>, %arg11: memref<2x1x256xf32, #tpu.memory_space<vmem>>) attributes {dimension_semantics = [#tpu.dimension_semantics<parallel>], iteration_bounds = array<i64: 1>, scalar_prefetch = 1 : i64, scratch_operands = 8 : i64, tpu.core_type = #tpu.core_type<tc>, window_params = [{transform_indices = @transform_0, window_bounds = array<i64: 2, 4, 256>}, {transform_indices = @transform_1, window_bounds = array<i64: 2, 4, 256>}]} {
    %c0 = arith.constant 0 : index
    %c0_0 = arith.constant 0 : index
    %c0_1 = arith.constant 0 : index
    %0 = vector.load %arg2[%c0, %c0_0, %c0_1] : memref<2x4x256xf32, #tpu.memory_space<vmem>>, vector<2x4x256xf32>
    %cst = arith.constant dense<0.000000e+00> : vector<2x256xf32>
    %1 = vector.multi_reduction <add>, %0, %cst [1] : vector<2x4x256xf32> to vector<2x256xf32>
    %2 = vector.shape_cast %1 : vector<2x256xf32> to vector<2x1x256xf32>
    %cst_2 = arith.constant dense<0xFF800000> : vector<2x256xf32>
    %3 = vector.multi_reduction <maximumf>, %0, %cst_2 [1] : vector<2x4x256xf32> to vector<2x256xf32>
    %4 = vector.shape_cast %3 : vector<2x256xf32> to vector<2x1x256xf32>
    %c0_3 = arith.constant 0 : index
    %c0_4 = arith.constant 0 : index
    %c0_5 = arith.constant 0 : index
    %5 = vector.load %arg8[%c0_3, %c0_4, %c0_5] : memref<2x1x256xf32, #tpu.memory_space<vmem>>, vector<2x1x256xf32>
    tpu.vector_store %arg8[%c0_3, %c0_4, %c0_5], %2 {strides = array<i32>} : memref<2x1x256xf32, #tpu.memory_space<vmem>>, vector<2x1x256xf32>,
    %c0_6 = arith.constant 0 : index
    %c0_7 = arith.constant 0 : index
    %c0_8 = arith.constant 0 : index
    %6 = vector.load %arg9[%c0_6, %c0_7, %c0_8] : memref<2x1x256xf32, #tpu.memory_space<vmem>>, vector<2x1x256xf32>
    tpu.vector_store %arg9[%c0_6, %c0_7, %c0_8], %4 {strides = array<i32>} : memref<2x1x256xf32, #tpu.memory_space<vmem>>, vector<2x1x256xf32>,
    %cst_9 = arith.constant 0.000000e+00 : f32
    %7 = vector.broadcast %cst_9 : f32 to vector<2x3x22xf32>
    %cst_10 = arith.constant 0.000000e+00 : f32
    %8 = vector.broadcast %cst_10 : f32 to vector<2x16x3xf32>
    %c0_11 = arith.constant 0 : index
    %c0_12 = arith.constant 0 : index
    %c0_13 = arith.constant 0 : index
    %9 = vector.load %arg4[%c0_11, %c0_12, %c0_13] : memref<2x22x22xf32, #tpu.memory_space<vmem>>, vector<2x3x22xf32>
    tpu.vector_store %arg4[%c0_11, %c0_12, %c0_13], %7 {strides = array<i32>} : memref<2x22x22xf32, #tpu.memory_space<vmem>>, vector<2x3x22xf32>,
    %c0_14 = arith.constant 0 : index
    %c19 = arith.constant 19 : index
    %c0_15 = arith.constant 0 : index
    %10 = vector.load %arg4[%c0_14, %c19, %c0_15] : memref<2x22x22xf32, #tpu.memory_space<vmem>>, vector<2x3x22xf32>
    tpu.vector_store %arg4[%c0_14, %c19, %c0_15], %7 {strides = array<i32>} : memref<2x22x22xf32, #tpu.memory_space<vmem>>, vector<2x3x22xf32>,
    %c0_16 = arith.constant 0 : index
    %c3 = arith.constant 3 : index
    %c0_17 = arith.constant 0 : index
    %11 = vector.load %arg4[%c0_16, %c3, %c0_17] : memref<2x22x22xf32, #tpu.memory_space<vmem>>, vector<2x16x3xf32>
    tpu.vector_store %arg4[%c0_16, %c3, %c0_17], %8 {strides = array<i32>} : memref<2x22x22xf32, #tpu.memory_space<vmem>>, vector<2x16x3xf32>,
    %c0_18 = arith.constant 0 : index
    %c3_19 = arith.constant 3 : index
    %c19_20 = arith.constant 19 : index
    %12 = vector.load %arg4[%c0_18, %c3_19, %c19_20] : memref<2x22x22xf32, #tpu.memory_space<vmem>>, vector<2x16x3xf32>
    tpu.vector_store %arg4[%c0_18, %c3_19, %c19_20], %8 {strides = array<i32>} : memref<2x22x22xf32, #tpu.memory_space<vmem>>, vector<2x16x3xf32>,
    %c0_21 = arith.constant 0 : index
    %c0_22 = arith.constant 0 : index
    %c0_23 = arith.constant 0 : index
    %13 = vector.load %arg5[%c0_21, %c0_22, %c0_23] : memref<2x22x22xf32, #tpu.memory_space<vmem>>, vector<2x3x22xf32>
    tpu.vector_store %arg5[%c0_21, %c0_22, %c0_23], %7 {strides = array<i32>} : memref<2x22x22xf32, #tpu.memory_space<vmem>>, vector<2x3x22xf32>,
    %c0_24 = arith.constant 0 : index
    %c19_25 = arith.constant 19 : index
    %c0_26 = arith.constant 0 : index
    %14 = vector.load %arg5[%c0_24, %c19_25, %c0_26] : memref<2x22x22xf32, #tpu.memory_space<vmem>>, vector<2x3x22xf32>
    tpu.vector_store %arg5[%c0_24, %c19_25, %c0_26], %7 {strides = array<i32>} : memref<2x22x22xf32, #tpu.memory_space<vmem>>, vector<2x3x22xf32>,
    %c0_27 = arith.constant 0 : index
    %c3_28 = arith.constant 3 : index
    %c0_29 = arith.constant 0 : index
    %15 = vector.load %arg5[%c0_27, %c3_28, %c0_29] : memref<2x22x22xf32, #tpu.memory_space<vmem>>, vector<2x16x3xf32>
    tpu.vector_store %arg5[%c0_27, %c3_28, %c0_29], %8 {strides = array<i32>} : memref<2x22x22xf32, #tpu.memory_space<vmem>>, vector<2x16x3xf32>,
    %c0_30 = arith.constant 0 : index
    %c3_31 = arith.constant 3 : index
    %c19_32 = arith.constant 19 : index
    %16 = vector.load %arg5[%c0_30, %c3_31, %c19_32] : memref<2x22x22xf32, #tpu.memory_space<vmem>>, vector<2x16x3xf32>
    tpu.vector_store %arg5[%c0_30, %c3_31, %c19_32], %8 {strides = array<i32>} : memref<2x22x22xf32, #tpu.memory_space<vmem>>, vector<2x16x3xf32>,
    %c0_33 = arith.constant 0 : index
    %c0_34 = arith.constant 0 : index
    %c0_35 = arith.constant 0 : index
    %17 = vector.load %arg8[%c0_33, %c0_34, %c0_35] : memref<2x1x256xf32, #tpu.memory_space<vmem>>, vector<2x1x16xf32>
    %c0_36 = arith.constant 0 : index
    %c3_37 = arith.constant 3 : index
    %c3_38 = arith.constant 3 : index
    %18 = vector.load %arg4[%c0_36, %c3_37, %c3_38] : memref<2x22x22xf32, #tpu.memory_space<vmem>>, vector<2x1x16xf32>
    tpu.vector_store %arg4[%c0_36, %c3_37, %c3_38], %17 {strides = array<i32>} : memref<2x22x22xf32, #tpu.memory_space<vmem>>, vector<2x1x16xf32>,
    %c0_39 = arith.constant 0 : index
    %c0_40 = arith.constant 0 : index
    %c0_41 = arith.constant 0 : index
    %19 = vector.load %arg9[%c0_39, %c0_40, %c0_41] : memref<2x1x256xf32, #tpu.memory_space<vmem>>, vector<2x1x16xf32>
    %c0_42 = arith.constant 0 : index
    %c3_43 = arith.constant 3 : index
    %c3_44 = arith.constant 3 : index
    %20 = vector.load %arg5[%c0_42, %c3_43, %c3_44] : memref<2x22x22xf32, #tpu.memory_space<vmem>>, vector<2x1x16xf32>
    tpu.vector_store %arg5[%c0_42, %c3_43, %c3_44], %19 {strides = array<i32>} : memref<2x22x22xf32, #tpu.memory_space<vmem>>, vector<2x1x16xf32>,
    %c0_45 = arith.constant 0 : index
    %c0_46 = arith.constant 0 : index
    %c16 = arith.constant 16 : index
    %21 = vector.load %arg8[%c0_45, %c0_46, %c16] : memref<2x1x256xf32, #tpu.memory_space<vmem>>, vector<2x1x16xf32>
    %c0_47 = arith.constant 0 : index
    %c4 = arith.constant 4 : index
    %c3_48 = arith.constant 3 : index
    %22 = vector.load %arg4[%c0_47, %c4, %c3_48] : memref<2x22x22xf32, #tpu.memory_space<vmem>>, vector<2x1x16xf32>
    tpu.vector_store %arg4[%c0_47, %c4, %c3_48], %21 {strides = array<i32>} : memref<2x22x22xf32, #tpu.memory_space<vmem>>, vector<2x1x16xf32>,
    %c0_49 = arith.constant 0 : index
    %c0_50 = arith.constant 0 : index
    %c16_51 = arith.constant 16 : index
    %23 = vector.load %arg9[%c0_49, %c0_50, %c16_51] : memref<2x1x256xf32, #tpu.memory_space<vmem>>, vector<2x1x16xf32>
    %c0_52 = arith.constant 0 : index
    %c4_53 = arith.constant 4 : index
    %c3_54 = arith.constant 3 : index
    %24 = vector.load %arg5[%c0_52, %c4_53, %c3_54] : memref<2x22x22xf32, #tpu.memory_space<vmem>>, vector<2x1x16xf32>
    tpu.vector_store %arg5[%c0_52, %c4_53, %c3_54], %23 {strides = array<i32>} : memref<2x22x22xf32, #tpu.memory_space<vmem>>, vector<2x1x16xf32>,
    %c0_55 = arith.constant 0 : index
    %c0_56 = arith.constant 0 : index
    %c32 = arith.constant 32 : index
    %25 = vector.load %arg8[%c0_55, %c0_56, %c32] : memref<2x1x256xf32, #tpu.memory_space<vmem>>, vector<2x1x16xf32>
    %c0_57 = arith.constant 0 : index
    %c5 = arith.constant 5 : index
    %c3_58 = arith.constant 3 : index
    %26 = vector.load %arg4[%c0_57, %c5, %c3_58] : memref<2x22x22xf32, #tpu.memory_space<vmem>>, vector<2x1x16xf32>
    tpu.vector_store %arg4[%c0_57, %c5, %c3_58], %25 {strides = array<i32>} : memref<2x22x22xf32, #tpu.memory_space<vmem>>, vector<2x1x16xf32>,
    %c0_59 = arith.constant 0 : index
    %c0_60 = arith.constant 0 : index
    %c32_61 = arith.constant 32 : index
    %27 = vector.load %arg9[%c0_59, %c0_60, %c32_61] : memref<2x1x256xf32, #tpu.memory_space<vmem>>, vector<2x1x16xf32>
    %c0_62 = arith.constant 0 : index
    %c5_63 = arith.constant 5 : index
    %c3_64 = arith.constant 3 : index
    %28 = vector.load %arg5[%c0_62, %c5_63, %c3_64] : memref<2x22x22xf32, #tpu.memory_space<vmem>>, vector<2x1x16xf32>
    tpu.vector_store %arg5[%c0_62, %c5_63, %c3_64], %27 {strides = array<i32>} : memref<2x22x22xf32, #tpu.memory_space<vmem>>, vector<2x1x16xf32>,
    %c0_65 = arith.constant 0 : index
    %c0_66 = arith.constant 0 : index
    %c48 = arith.constant 48 : index
    %29 = vector.load %arg8[%c0_65, %c0_66, %c48] : memref<2x1x256xf32, #tpu.memory_space<vmem>>, vector<2x1x16xf32>
    %c0_67 = arith.constant 0 : index
    %c6 = arith.constant 6 : index
    %c3_68 = arith.constant 3 : index
    %30 = vector.load %arg4[%c0_67, %c6, %c3_68] : memref<2x22x22xf32, #tpu.memory_space<vmem>>, vector<2x1x16xf32>
    tpu.vector_store %arg4[%c0_67, %c6, %c3_68], %29 {strides = array<i32>} : memref<2x22x22xf32, #tpu.memory_space<vmem>>, vector<2x1x16xf32>,
    %c0_69 = arith.constant 0 : index
    %c0_70 = arith.constant 0 : index
    %c48_71 = arith.constant 48 : index
    %31 = vector.load %arg9[%c0_69, %c0_70, %c48_71] : memref<2x1x256xf32, #tpu.memory_space<vmem>>, vector<2x1x16xf32>
    %c0_72 = arith.constant 0 : index
    %c6_73 = arith.constant 6 : index
    %c3_74 = arith.constant 3 : index
    %32 = vector.load %arg5[%c0_72, %c6_73, %c3_74] : memref<2x22x22xf32, #tpu.memory_space<vmem>>, vector<2x1x16xf32>
    tpu.vector_store %arg5[%c0_72, %c6_73, %c3_74], %31 {strides = array<i32>} : memref<2x22x22xf32, #tpu.memory_space<vmem>>, vector<2x1x16xf32>,
    %c0_75 = arith.constant 0 : index
    %c0_76 = arith.constant 0 : index
    %c64 = arith.constant 64 : index
    %33 = vector.load %arg8[%c0_75, %c0_76, %c64] : memref<2x1x256xf32, #tpu.memory_space<vmem>>, vector<2x1x16xf32>
    %c0_77 = arith.constant 0 : index
    %c7 = arith.constant 7 : index
    %c3_78 = arith.constant 3 : index
    %34 = vector.load %arg4[%c0_77, %c7, %c3_78] : memref<2x22x22xf32, #tpu.memory_space<vmem>>, vector<2x1x16xf32>
    tpu.vector_store %arg4[%c0_77, %c7, %c3_78], %33 {strides = array<i32>} : memref<2x22x22xf32, #tpu.memory_space<vmem>>, vector<2x1x16xf32>,
    %c0_79 = arith.constant 0 : index
    %c0_80 = arith.constant 0 : index
    %c64_81 = arith.constant 64 : index
    %35 = vector.load %arg9[%c0_79, %c0_80, %c64_81] : memref<2x1x256xf32, #tpu.memory_space<vmem>>, vector<2x1x16xf32>
    %c0_82 = arith.constant 0 : index
    %c7_83 = arith.constant 7 : index
    %c3_84 = arith.constant 3 : index
    %36 = vector.load %arg5[%c0_82, %c7_83, %c3_84] : memref<2x22x22xf32, #tpu.memory_space<vmem>>, vector<2x1x16xf32>
    tpu.vector_store %arg5[%c0_82, %c7_83, %c3_84], %35 {strides = array<i32>} : memref<2x22x22xf32, #tpu.memory_space<vmem>>, vector<2x1x16xf32>,
    %c0_85 = arith.constant 0 : index
    %c0_86 = arith.constant 0 : index
    %c80 = arith.constant 80 : index
    %37 = vector.load %arg8[%c0_85, %c0_86, %c80] : memref<2x1x256xf32, #tpu.memory_space<vmem>>, vector<2x1x16xf32>
    %c0_87 = arith.constant 0 : index
    %c8 = arith.constant 8 : index
    %c3_88 = arith.constant 3 : index
    %38 = vector.load %arg4[%c0_87, %c8, %c3_88] : memref<2x22x22xf32, #tpu.memory_space<vmem>>, vector<2x1x16xf32>
    tpu.vector_store %arg4[%c0_87, %c8, %c3_88], %37 {strides = array<i32>} : memref<2x22x22xf32, #tpu.memory_space<vmem>>, vector<2x1x16xf32>,
    %c0_89 = arith.constant 0 : index
    %c0_90 = arith.constant 0 : index
    %c80_91 = arith.constant 80 : index
    %39 = vector.load %arg9[%c0_89, %c0_90, %c80_91] : memref<2x1x256xf32, #tpu.memory_space<vmem>>, vector<2x1x16xf32>
    %c0_92 = arith.constant 0 : index
    %c8_93 = arith.constant 8 : index
    %c3_94 = arith.constant 3 : index
    %40 = vector.load %arg5[%c0_92, %c8_93, %c3_94] : memref<2x22x22xf32, #tpu.memory_space<vmem>>, vector<2x1x16xf32>
    tpu.vector_store %arg5[%c0_92, %c8_93, %c3_94], %39 {strides = array<i32>} : memref<2x22x22xf32, #tpu.memory_space<vmem>>, vector<2x1x16xf32>,
    %c0_95 = arith.constant 0 : index
    %c0_96 = arith.constant 0 : index
    %c96 = arith.constant 96 : index
    %41 = vector.load %arg8[%c0_95, %c0_96, %c96] : memref<2x1x256xf32, #tpu.memory_space<vmem>>, vector<2x1x16xf32>
    %c0_97 = arith.constant 0 : index
    %c9 = arith.constant 9 : index
    %c3_98 = arith.constant 3 : index
    %42 = vector.load %arg4[%c0_97, %c9, %c3_98] : memref<2x22x22xf32, #tpu.memory_space<vmem>>, vector<2x1x16xf32>
    tpu.vector_store %arg4[%c0_97, %c9, %c3_98], %41 {strides = array<i32>} : memref<2x22x22xf32, #tpu.memory_space<vmem>>, vector<2x1x16xf32>,
    %c0_99 = arith.constant 0 : index
    %c0_100 = arith.constant 0 : index
    %c96_101 = arith.constant 96 : index
    %43 = vector.load %arg9[%c0_99, %c0_100, %c96_101] : memref<2x1x256xf32, #tpu.memory_space<vmem>>, vector<2x1x16xf32>
    %c0_102 = arith.constant 0 : index
    %c9_103 = arith.constant 9 : index
    %c3_104 = arith.constant 3 : index
    %44 = vector.load %arg5[%c0_102, %c9_103, %c3_104] : memref<2x22x22xf32, #tpu.memory_space<vmem>>, vector<2x1x16xf32>
    tpu.vector_store %arg5[%c0_102, %c9_103, %c3_104], %43 {strides = array<i32>} : memref<2x22x22xf32, #tpu.memory_space<vmem>>, vector<2x1x16xf32>,
    %c0_105 = arith.constant 0 : index
    %c0_106 = arith.constant 0 : index
    %c112 = arith.constant 112 : index
    %45 = vector.load %arg8[%c0_105, %c0_106, %c112] : memref<2x1x256xf32, #tpu.memory_space<vmem>>, vector<2x1x16xf32>
    %c0_107 = arith.constant 0 : index
    %c10 = arith.constant 10 : index
    %c3_108 = arith.constant 3 : index
    %46 = vector.load %arg4[%c0_107, %c10, %c3_108] : memref<2x22x22xf32, #tpu.memory_space<vmem>>, vector<2x1x16xf32>
    tpu.vector_store %arg4[%c0_107, %c10, %c3_108], %45 {strides = array<i32>} : memref<2x22x22xf32, #tpu.memory_space<vmem>>, vector<2x1x16xf32>,
    %c0_109 = arith.constant 0 : index
    %c0_110 = arith.constant 0 : index
    %c112_111 = arith.constant 112 : index
    %47 = vector.load %arg9[%c0_109, %c0_110, %c112_111] : memref<2x1x256xf32, #tpu.memory_space<vmem>>, vector<2x1x16xf32>
    %c0_112 = arith.constant 0 : index
    %c10_113 = arith.constant 10 : index
    %c3_114 = arith.constant 3 : index
    %48 = vector.load %arg5[%c0_112, %c10_113, %c3_114] : memref<2x22x22xf32, #tpu.memory_space<vmem>>, vector<2x1x16xf32>
    tpu.vector_store %arg5[%c0_112, %c10_113, %c3_114], %47 {strides = array<i32>} : memref<2x22x22xf32, #tpu.memory_space<vmem>>, vector<2x1x16xf32>,
    %c0_115 = arith.constant 0 : index
    %c0_116 = arith.constant 0 : index
    %c128 = arith.constant 128 : index
    %49 = vector.load %arg8[%c0_115, %c0_116, %c128] : memref<2x1x256xf32, #tpu.memory_space<vmem>>, vector<2x1x16xf32>
    %c0_117 = arith.constant 0 : index
    %c11 = arith.constant 11 : index
    %c3_118 = arith.constant 3 : index
    %50 = vector.load %arg4[%c0_117, %c11, %c3_118] : memref<2x22x22xf32, #tpu.memory_space<vmem>>, vector<2x1x16xf32>
    tpu.vector_store %arg4[%c0_117, %c11, %c3_118], %49 {strides = array<i32>} : memref<2x22x22xf32, #tpu.memory_space<vmem>>, vector<2x1x16xf32>,
    %c0_119 = arith.constant 0 : index
    %c0_120 = arith.constant 0 : index
    %c128_121 = arith.constant 128 : index
    %51 = vector.load %arg9[%c0_119, %c0_120, %c128_121] : memref<2x1x256xf32, #tpu.memory_space<vmem>>, vector<2x1x16xf32>
    %c0_122 = arith.constant 0 : index
    %c11_123 = arith.constant 11 : index
    %c3_124 = arith.constant 3 : index
    %52 = vector.load %arg5[%c0_122, %c11_123, %c3_124] : memref<2x22x22xf32, #tpu.memory_space<vmem>>, vector<2x1x16xf32>
    tpu.vector_store %arg5[%c0_122, %c11_123, %c3_124], %51 {strides = array<i32>} : memref<2x22x22xf32, #tpu.memory_space<vmem>>, vector<2x1x16xf32>,
    %c0_125 = arith.constant 0 : index
    %c0_126 = arith.constant 0 : index
    %c144 = arith.constant 144 : index
    %53 = vector.load %arg8[%c0_125, %c0_126, %c144] : memref<2x1x256xf32, #tpu.memory_space<vmem>>, vector<2x1x16xf32>
    %c0_127 = arith.constant 0 : index
    %c12 = arith.constant 12 : index
    %c3_128 = arith.constant 3 : index
    %54 = vector.load %arg4[%c0_127, %c12, %c3_128] : memref<2x22x22xf32, #tpu.memory_space<vmem>>, vector<2x1x16xf32>
    tpu.vector_store %arg4[%c0_127, %c12, %c3_128], %53 {strides = array<i32>} : memref<2x22x22xf32, #tpu.memory_space<vmem>>, vector<2x1x16xf32>,
    %c0_129 = arith.constant 0 : index
    %c0_130 = arith.constant 0 : index
    %c144_131 = arith.constant 144 : index
    %55 = vector.load %arg9[%c0_129, %c0_130, %c144_131] : memref<2x1x256xf32, #tpu.memory_space<vmem>>, vector<2x1x16xf32>
    %c0_132 = arith.constant 0 : index
    %c12_133 = arith.constant 12 : index
    %c3_134 = arith.constant 3 : index
    %56 = vector.load %arg5[%c0_132, %c12_133, %c3_134] : memref<2x22x22xf32, #tpu.memory_space<vmem>>, vector<2x1x16xf32>
    tpu.vector_store %arg5[%c0_132, %c12_133, %c3_134], %55 {strides = array<i32>} : memref<2x22x22xf32, #tpu.memory_space<vmem>>, vector<2x1x16xf32>,
    %c0_135 = arith.constant 0 : index
    %c0_136 = arith.constant 0 : index
    %c160 = arith.constant 160 : index
    %57 = vector.load %arg8[%c0_135, %c0_136, %c160] : memref<2x1x256xf32, #tpu.memory_space<vmem>>, vector<2x1x16xf32>
    %c0_137 = arith.constant 0 : index
    %c13 = arith.constant 13 : index
    %c3_138 = arith.constant 3 : index
    %58 = vector.load %arg4[%c0_137, %c13, %c3_138] : memref<2x22x22xf32, #tpu.memory_space<vmem>>, vector<2x1x16xf32>
    tpu.vector_store %arg4[%c0_137, %c13, %c3_138], %57 {strides = array<i32>} : memref<2x22x22xf32, #tpu.memory_space<vmem>>, vector<2x1x16xf32>,
    %c0_139 = arith.constant 0 : index
    %c0_140 = arith.constant 0 : index
    %c160_141 = arith.constant 160 : index
    %59 = vector.load %arg9[%c0_139, %c0_140, %c160_141] : memref<2x1x256xf32, #tpu.memory_space<vmem>>, vector<2x1x16xf32>
    %c0_142 = arith.constant 0 : index
    %c13_143 = arith.constant 13 : index
    %c3_144 = arith.constant 3 : index
    %60 = vector.load %arg5[%c0_142, %c13_143, %c3_144] : memref<2x22x22xf32, #tpu.memory_space<vmem>>, vector<2x1x16xf32>
    tpu.vector_store %arg5[%c0_142, %c13_143, %c3_144], %59 {strides = array<i32>} : memref<2x22x22xf32, #tpu.memory_space<vmem>>, vector<2x1x16xf32>,
    %c0_145 = arith.constant 0 : index
    %c0_146 = arith.constant 0 : index
    %c176 = arith.constant 176 : index
    %61 = vector.load %arg8[%c0_145, %c0_146, %c176] : memref<2x1x256xf32, #tpu.memory_space<vmem>>, vector<2x1x16xf32>
    %c0_147 = arith.constant 0 : index
    %c14 = arith.constant 14 : index
    %c3_148 = arith.constant 3 : index
    %62 = vector.load %arg4[%c0_147, %c14, %c3_148] : memref<2x22x22xf32, #tpu.memory_space<vmem>>, vector<2x1x16xf32>
    tpu.vector_store %arg4[%c0_147, %c14, %c3_148], %61 {strides = array<i32>} : memref<2x22x22xf32, #tpu.memory_space<vmem>>, vector<2x1x16xf32>,
    %c0_149 = arith.constant 0 : index
    %c0_150 = arith.constant 0 : index
    %c176_151 = arith.constant 176 : index
    %63 = vector.load %arg9[%c0_149, %c0_150, %c176_151] : memref<2x1x256xf32, #tpu.memory_space<vmem>>, vector<2x1x16xf32>
    %c0_152 = arith.constant 0 : index
    %c14_153 = arith.constant 14 : index
    %c3_154 = arith.constant 3 : index
    %64 = vector.load %arg5[%c0_152, %c14_153, %c3_154] : memref<2x22x22xf32, #tpu.memory_space<vmem>>, vector<2x1x16xf32>
    tpu.vector_store %arg5[%c0_152, %c14_153, %c3_154], %63 {strides = array<i32>} : memref<2x22x22xf32, #tpu.memory_space<vmem>>, vector<2x1x16xf32>,
    %c0_155 = arith.constant 0 : index
    %c0_156 = arith.constant 0 : index
    %c192 = arith.constant 192 : index
    %65 = vector.load %arg8[%c0_155, %c0_156, %c192] : memref<2x1x256xf32, #tpu.memory_space<vmem>>, vector<2x1x16xf32>
    %c0_157 = arith.constant 0 : index
    %c15 = arith.constant 15 : index
    %c3_158 = arith.constant 3 : index
    %66 = vector.load %arg4[%c0_157, %c15, %c3_158] : memref<2x22x22xf32, #tpu.memory_space<vmem>>, vector<2x1x16xf32>
    tpu.vector_store %arg4[%c0_157, %c15, %c3_158], %65 {strides = array<i32>} : memref<2x22x22xf32, #tpu.memory_space<vmem>>, vector<2x1x16xf32>,
    %c0_159 = arith.constant 0 : index
    %c0_160 = arith.constant 0 : index
    %c192_161 = arith.constant 192 : index
    %67 = vector.load %arg9[%c0_159, %c0_160, %c192_161] : memref<2x1x256xf32, #tpu.memory_space<vmem>>, vector<2x1x16xf32>
    %c0_162 = arith.constant 0 : index
    %c15_163 = arith.constant 15 : index
    %c3_164 = arith.constant 3 : index
    %68 = vector.load %arg5[%c0_162, %c15_163, %c3_164] : memref<2x22x22xf32, #tpu.memory_space<vmem>>, vector<2x1x16xf32>
    tpu.vector_store %arg5[%c0_162, %c15_163, %c3_164], %67 {strides = array<i32>} : memref<2x22x22xf32, #tpu.memory_space<vmem>>, vector<2x1x16xf32>,
    %c0_165 = arith.constant 0 : index
    %c0_166 = arith.constant 0 : index
    %c208 = arith.constant 208 : index
    %69 = vector.load %arg8[%c0_165, %c0_166, %c208] : memref<2x1x256xf32, #tpu.memory_space<vmem>>, vector<2x1x16xf32>
    %c0_167 = arith.constant 0 : index
    %c16_168 = arith.constant 16 : index
    %c3_169 = arith.constant 3 : index
    %70 = vector.load %arg4[%c0_167, %c16_168, %c3_169] : memref<2x22x22xf32, #tpu.memory_space<vmem>>, vector<2x1x16xf32>
    tpu.vector_store %arg4[%c0_167, %c16_168, %c3_169], %69 {strides = array<i32>} : memref<2x22x22xf32, #tpu.memory_space<vmem>>, vector<2x1x16xf32>,
    %c0_170 = arith.constant 0 : index
    %c0_171 = arith.constant 0 : index
    %c208_172 = arith.constant 208 : index
    %71 = vector.load %arg9[%c0_170, %c0_171, %c208_172] : memref<2x1x256xf32, #tpu.memory_space<vmem>>, vector<2x1x16xf32>
    %c0_173 = arith.constant 0 : index
    %c16_174 = arith.constant 16 : index
    %c3_175 = arith.constant 3 : index
    %72 = vector.load %arg5[%c0_173, %c16_174, %c3_175] : memref<2x22x22xf32, #tpu.memory_space<vmem>>, vector<2x1x16xf32>
    tpu.vector_store %arg5[%c0_173, %c16_174, %c3_175], %71 {strides = array<i32>} : memref<2x22x22xf32, #tpu.memory_space<vmem>>, vector<2x1x16xf32>,
    %c0_176 = arith.constant 0 : index
    %c0_177 = arith.constant 0 : index
    %c224 = arith.constant 224 : index
    %73 = vector.load %arg8[%c0_176, %c0_177, %c224] : memref<2x1x256xf32, #tpu.memory_space<vmem>>, vector<2x1x16xf32>
    %c0_178 = arith.constant 0 : index
    %c17 = arith.constant 17 : index
    %c3_179 = arith.constant 3 : index
    %74 = vector.load %arg4[%c0_178, %c17, %c3_179] : memref<2x22x22xf32, #tpu.memory_space<vmem>>, vector<2x1x16xf32>
    tpu.vector_store %arg4[%c0_178, %c17, %c3_179], %73 {strides = array<i32>} : memref<2x22x22xf32, #tpu.memory_space<vmem>>, vector<2x1x16xf32>,
    %c0_180 = arith.constant 0 : index
    %c0_181 = arith.constant 0 : index
    %c224_182 = arith.constant 224 : index
    %75 = vector.load %arg9[%c0_180, %c0_181, %c224_182] : memref<2x1x256xf32, #tpu.memory_space<vmem>>, vector<2x1x16xf32>
    %c0_183 = arith.constant 0 : index
    %c17_184 = arith.constant 17 : index
    %c3_185 = arith.constant 3 : index
    %76 = vector.load %arg5[%c0_183, %c17_184, %c3_185] : memref<2x22x22xf32, #tpu.memory_space<vmem>>, vector<2x1x16xf32>
    tpu.vector_store %arg5[%c0_183, %c17_184, %c3_185], %75 {strides = array<i32>} : memref<2x22x22xf32, #tpu.memory_space<vmem>>, vector<2x1x16xf32>,
    %c0_186 = arith.constant 0 : index
    %c0_187 = arith.constant 0 : index
    %c240 = arith.constant 240 : index
    %77 = vector.load %arg8[%c0_186, %c0_187, %c240] : memref<2x1x256xf32, #tpu.memory_space<vmem>>, vector<2x1x16xf32>
    %c0_188 = arith.constant 0 : index
    %c18 = arith.constant 18 : index
    %c3_189 = arith.constant 3 : index
    %78 = vector.load %arg4[%c0_188, %c18, %c3_189] : memref<2x22x22xf32, #tpu.memory_space<vmem>>, vector<2x1x16xf32>
    tpu.vector_store %arg4[%c0_188, %c18, %c3_189], %77 {strides = array<i32>} : memref<2x22x22xf32, #tpu.memory_space<vmem>>, vector<2x1x16xf32>,
    %c0_190 = arith.constant 0 : index
    %c0_191 = arith.constant 0 : index
    %c240_192 = arith.constant 240 : index
    %79 = vector.load %arg9[%c0_190, %c0_191, %c240_192] : memref<2x1x256xf32, #tpu.memory_space<vmem>>, vector<2x1x16xf32>
    %c0_193 = arith.constant 0 : index
    %c18_194 = arith.constant 18 : index
    %c3_195 = arith.constant 3 : index
    %80 = vector.load %arg5[%c0_193, %c18_194, %c3_195] : memref<2x22x22xf32, #tpu.memory_space<vmem>>, vector<2x1x16xf32>
    tpu.vector_store %arg5[%c0_193, %c18_194, %c3_195], %79 {strides = array<i32>} : memref<2x22x22xf32, #tpu.memory_space<vmem>>, vector<2x1x16xf32>,
    %c0_196 = arith.constant 0 : index
    %81 = memref.load %arg1[%c0_196] : memref<98xf32, #tpu.memory_space<smem>>
    %c1 = arith.constant 1 : index
    %82 = memref.load %arg1[%c1] : memref<98xf32, #tpu.memory_space<smem>>
    %c2 = arith.constant 2 : index
    %83 = memref.load %arg1[%c2] : memref<98xf32, #tpu.memory_space<smem>>
    %c3_197 = arith.constant 3 : index
    %84 = memref.load %arg1[%c3_197] : memref<98xf32, #tpu.memory_space<smem>>
    %c4_198 = arith.constant 4 : index
    %85 = memref.load %arg1[%c4_198] : memref<98xf32, #tpu.memory_space<smem>>
    %c5_199 = arith.constant 5 : index
    %86 = memref.load %arg1[%c5_199] : memref<98xf32, #tpu.memory_space<smem>>
    %c6_200 = arith.constant 6 : index
    %87 = memref.load %arg1[%c6_200] : memref<98xf32, #tpu.memory_space<smem>>
    %c7_201 = arith.constant 7 : index
    %88 = memref.load %arg1[%c7_201] : memref<98xf32, #tpu.memory_space<smem>>
    %c8_202 = arith.constant 8 : index
    %89 = memref.load %arg1[%c8_202] : memref<98xf32, #tpu.memory_space<smem>>
    %c9_203 = arith.constant 9 : index
    %90 = memref.load %arg1[%c9_203] : memref<98xf32, #tpu.memory_space<smem>>
    %c10_204 = arith.constant 10 : index
    %91 = memref.load %arg1[%c10_204] : memref<98xf32, #tpu.memory_space<smem>>
    %c11_205 = arith.constant 11 : index
    %92 = memref.load %arg1[%c11_205] : memref<98xf32, #tpu.memory_space<smem>>
    %c12_206 = arith.constant 12 : index
    %93 = memref.load %arg1[%c12_206] : memref<98xf32, #tpu.memory_space<smem>>
    %c13_207 = arith.constant 13 : index
    %94 = memref.load %arg1[%c13_207] : memref<98xf32, #tpu.memory_space<smem>>
    %c14_208 = arith.constant 14 : index
    %95 = memref.load %arg1[%c14_208] : memref<98xf32, #tpu.memory_space<smem>>
    %c15_209 = arith.constant 15 : index
    %96 = memref.load %arg1[%c15_209] : memref<98xf32, #tpu.memory_space<smem>>
    %c16_210 = arith.constant 16 : index
    %97 = memref.load %arg1[%c16_210] : memref<98xf32, #tpu.memory_space<smem>>
    %c17_211 = arith.constant 17 : index
    %98 = memref.load %arg1[%c17_211] : memref<98xf32, #tpu.memory_space<smem>>
    %c18_212 = arith.constant 18 : index
    %99 = memref.load %arg1[%c18_212] : memref<98xf32, #tpu.memory_space<smem>>
    %c19_213 = arith.constant 19 : index
    %100 = memref.load %arg1[%c19_213] : memref<98xf32, #tpu.memory_space<smem>>
    %c20 = arith.constant 20 : index
    %101 = memref.load %arg1[%c20] : memref<98xf32, #tpu.memory_space<smem>>
    %c21 = arith.constant 21 : index
    %102 = memref.load %arg1[%c21] : memref<98xf32, #tpu.memory_space<smem>>
    %c22 = arith.constant 22 : index
    %103 = memref.load %arg1[%c22] : memref<98xf32, #tpu.memory_space<smem>>
    %c23 = arith.constant 23 : index
    %104 = memref.load %arg1[%c23] : memref<98xf32, #tpu.memory_space<smem>>
    %c24 = arith.constant 24 : index
    %105 = memref.load %arg1[%c24] : memref<98xf32, #tpu.memory_space<smem>>
    %c25 = arith.constant 25 : index
    %106 = memref.load %arg1[%c25] : memref<98xf32, #tpu.memory_space<smem>>
    %c26 = arith.constant 26 : index
    %107 = memref.load %arg1[%c26] : memref<98xf32, #tpu.memory_space<smem>>
    %c27 = arith.constant 27 : index
    %108 = memref.load %arg1[%c27] : memref<98xf32, #tpu.memory_space<smem>>
    %c28 = arith.constant 28 : index
    %109 = memref.load %arg1[%c28] : memref<98xf32, #tpu.memory_space<smem>>
    %c29 = arith.constant 29 : index
    %110 = memref.load %arg1[%c29] : memref<98xf32, #tpu.memory_space<smem>>
    %c30 = arith.constant 30 : index
    %111 = memref.load %arg1[%c30] : memref<98xf32, #tpu.memory_space<smem>>
    %c31 = arith.constant 31 : index
    %112 = memref.load %arg1[%c31] : memref<98xf32, #tpu.memory_space<smem>>
    %c32_214 = arith.constant 32 : index
    %113 = memref.load %arg1[%c32_214] : memref<98xf32, #tpu.memory_space<smem>>
    %c33 = arith.constant 33 : index
    %114 = memref.load %arg1[%c33] : memref<98xf32, #tpu.memory_space<smem>>
    %c34 = arith.constant 34 : index
    %115 = memref.load %arg1[%c34] : memref<98xf32, #tpu.memory_space<smem>>
    %c35 = arith.constant 35 : index
    %116 = memref.load %arg1[%c35] : memref<98xf32, #tpu.memory_space<smem>>
    %c36 = arith.constant 36 : index
    %117 = memref.load %arg1[%c36] : memref<98xf32, #tpu.memory_space<smem>>
    %c37 = arith.constant 37 : index
    %118 = memref.load %arg1[%c37] : memref<98xf32, #tpu.memory_space<smem>>
    %c38 = arith.constant 38 : index
    %119 = memref.load %arg1[%c38] : memref<98xf32, #tpu.memory_space<smem>>
    %c39 = arith.constant 39 : index
    %120 = memref.load %arg1[%c39] : memref<98xf32, #tpu.memory_space<smem>>
    %c40 = arith.constant 40 : index
    %121 = memref.load %arg1[%c40] : memref<98xf32, #tpu.memory_space<smem>>
    %c41 = arith.constant 41 : index
    %122 = memref.load %arg1[%c41] : memref<98xf32, #tpu.memory_space<smem>>
    %c42 = arith.constant 42 : index
    %123 = memref.load %arg1[%c42] : memref<98xf32, #tpu.memory_space<smem>>
    %c43 = arith.constant 43 : index
    %124 = memref.load %arg1[%c43] : memref<98xf32, #tpu.memory_space<smem>>
    %c44 = arith.constant 44 : index
    %125 = memref.load %arg1[%c44] : memref<98xf32, #tpu.memory_space<smem>>
    %c45 = arith.constant 45 : index
    %126 = memref.load %arg1[%c45] : memref<98xf32, #tpu.memory_space<smem>>
    %c46 = arith.constant 46 : index
    %127 = memref.load %arg1[%c46] : memref<98xf32, #tpu.memory_space<smem>>
    %c47 = arith.constant 47 : index
    %128 = memref.load %arg1[%c47] : memref<98xf32, #tpu.memory_space<smem>>
    %c48_215 = arith.constant 48 : index
    %129 = memref.load %arg1[%c48_215] : memref<98xf32, #tpu.memory_space<smem>>
    %c49 = arith.constant 49 : index
    %130 = memref.load %arg1[%c49] : memref<98xf32, #tpu.memory_space<smem>>
    %c50 = arith.constant 50 : index
    %131 = memref.load %arg1[%c50] : memref<98xf32, #tpu.memory_space<smem>>
    %c51 = arith.constant 51 : index
    %132 = memref.load %arg1[%c51] : memref<98xf32, #tpu.memory_space<smem>>
    %c52 = arith.constant 52 : index
    %133 = memref.load %arg1[%c52] : memref<98xf32, #tpu.memory_space<smem>>
    %c53 = arith.constant 53 : index
    %134 = memref.load %arg1[%c53] : memref<98xf32, #tpu.memory_space<smem>>
    %c54 = arith.constant 54 : index
    %135 = memref.load %arg1[%c54] : memref<98xf32, #tpu.memory_space<smem>>
    %c55 = arith.constant 55 : index
    %136 = memref.load %arg1[%c55] : memref<98xf32, #tpu.memory_space<smem>>
    %c56 = arith.constant 56 : index
    %137 = memref.load %arg1[%c56] : memref<98xf32, #tpu.memory_space<smem>>
    %c57 = arith.constant 57 : index
    %138 = memref.load %arg1[%c57] : memref<98xf32, #tpu.memory_space<smem>>
    %c58 = arith.constant 58 : index
    %139 = memref.load %arg1[%c58] : memref<98xf32, #tpu.memory_space<smem>>
    %c59 = arith.constant 59 : index
    %140 = memref.load %arg1[%c59] : memref<98xf32, #tpu.memory_space<smem>>
    %c60 = arith.constant 60 : index
    %141 = memref.load %arg1[%c60] : memref<98xf32, #tpu.memory_space<smem>>
    %c61 = arith.constant 61 : index
    %142 = memref.load %arg1[%c61] : memref<98xf32, #tpu.memory_space<smem>>
    %c62 = arith.constant 62 : index
    %143 = memref.load %arg1[%c62] : memref<98xf32, #tpu.memory_space<smem>>
    %c63 = arith.constant 63 : index
    %144 = memref.load %arg1[%c63] : memref<98xf32, #tpu.memory_space<smem>>
    %c64_216 = arith.constant 64 : index
    %145 = memref.load %arg1[%c64_216] : memref<98xf32, #tpu.memory_space<smem>>
    %c65 = arith.constant 65 : index
    %146 = memref.load %arg1[%c65] : memref<98xf32, #tpu.memory_space<smem>>
    %c66 = arith.constant 66 : index
    %147 = memref.load %arg1[%c66] : memref<98xf32, #tpu.memory_space<smem>>
    %c67 = arith.constant 67 : index
    %148 = memref.load %arg1[%c67] : memref<98xf32, #tpu.memory_space<smem>>
    %c68 = arith.constant 68 : index
    %149 = memref.load %arg1[%c68] : memref<98xf32, #tpu.memory_space<smem>>
    %c69 = arith.constant 69 : index
    %150 = memref.load %arg1[%c69] : memref<98xf32, #tpu.memory_space<smem>>
    %c70 = arith.constant 70 : index
    %151 = memref.load %arg1[%c70] : memref<98xf32, #tpu.memory_space<smem>>
    %c71 = arith.constant 71 : index
    %152 = memref.load %arg1[%c71] : memref<98xf32, #tpu.memory_space<smem>>
    %c72 = arith.constant 72 : index
    %153 = memref.load %arg1[%c72] : memref<98xf32, #tpu.memory_space<smem>>
    %c73 = arith.constant 73 : index
    %154 = memref.load %arg1[%c73] : memref<98xf32, #tpu.memory_space<smem>>
    %c74 = arith.constant 74 : index
    %155 = memref.load %arg1[%c74] : memref<98xf32, #tpu.memory_space<smem>>
    %c75 = arith.constant 75 : index
    %156 = memref.load %arg1[%c75] : memref<98xf32, #tpu.memory_space<smem>>
    %c76 = arith.constant 76 : index
    %157 = memref.load %arg1[%c76] : memref<98xf32, #tpu.memory_space<smem>>
    %c77 = arith.constant 77 : index
    %158 = memref.load %arg1[%c77] : memref<98xf32, #tpu.memory_space<smem>>
    %c78 = arith.constant 78 : index
    %159 = memref.load %arg1[%c78] : memref<98xf32, #tpu.memory_space<smem>>
    %c79 = arith.constant 79 : index
    %160 = memref.load %arg1[%c79] : memref<98xf32, #tpu.memory_space<smem>>
    %c80_217 = arith.constant 80 : index
    %161 = memref.load %arg1[%c80_217] : memref<98xf32, #tpu.memory_space<smem>>
    %c81 = arith.constant 81 : index
    %162 = memref.load %arg1[%c81] : memref<98xf32, #tpu.memory_space<smem>>
    %c82 = arith.constant 82 : index
    %163 = memref.load %arg1[%c82] : memref<98xf32, #tpu.memory_space<smem>>
    %c83 = arith.constant 83 : index
    %164 = memref.load %arg1[%c83] : memref<98xf32, #tpu.memory_space<smem>>
    %c84 = arith.constant 84 : index
    %165 = memref.load %arg1[%c84] : memref<98xf32, #tpu.memory_space<smem>>
    %c85 = arith.constant 85 : index
    %166 = memref.load %arg1[%c85] : memref<98xf32, #tpu.memory_space<smem>>
    %c86 = arith.constant 86 : index
    %167 = memref.load %arg1[%c86] : memref<98xf32, #tpu.memory_space<smem>>
    %c87 = arith.constant 87 : index
    %168 = memref.load %arg1[%c87] : memref<98xf32, #tpu.memory_space<smem>>
    %c88 = arith.constant 88 : index
    %169 = memref.load %arg1[%c88] : memref<98xf32, #tpu.memory_space<smem>>
    %c89 = arith.constant 89 : index
    %170 = memref.load %arg1[%c89] : memref<98xf32, #tpu.memory_space<smem>>
    %c90 = arith.constant 90 : index
    %171 = memref.load %arg1[%c90] : memref<98xf32, #tpu.memory_space<smem>>
    %c91 = arith.constant 91 : index
    %172 = memref.load %arg1[%c91] : memref<98xf32, #tpu.memory_space<smem>>
    %c92 = arith.constant 92 : index
    %173 = memref.load %arg1[%c92] : memref<98xf32, #tpu.memory_space<smem>>
    %c93 = arith.constant 93 : index
    %174 = memref.load %arg1[%c93] : memref<98xf32, #tpu.memory_space<smem>>
    %c94 = arith.constant 94 : index
    %175 = memref.load %arg1[%c94] : memref<98xf32, #tpu.memory_space<smem>>
    %c95 = arith.constant 95 : index
    %176 = memref.load %arg1[%c95] : memref<98xf32, #tpu.memory_space<smem>>
    %c96_218 = arith.constant 96 : index
    %177 = memref.load %arg1[%c96_218] : memref<98xf32, #tpu.memory_space<smem>>
    %c97 = arith.constant 97 : index
    %178 = memref.load %arg1[%c97] : memref<98xf32, #tpu.memory_space<smem>>
    %cst_219 = arith.constant 0.000000e+00 : f32
    %179 = vector.broadcast %cst_219 : f32 to vector<2x16x16xf32>
    %cst_220 = arith.constant 0.000000e+00 : f32
    %180 = vector.broadcast %cst_220 : f32 to vector<2x16x16xf32>
    %cst_221 = arith.constant 0.000000e+00 : f32
    %181 = vector.broadcast %cst_221 : f32 to vector<2x16x16xf32>
    %cst_222 = arith.constant 0.000000e+00 : f32
    %182 = vector.broadcast %cst_222 : f32 to vector<2x16x16xf32>
    %c0_223 = arith.constant 0 : index
    %c0_224 = arith.constant 0 : index
    %c0_225 = arith.constant 0 : index
    %183 = vector.load %arg4[%c0_223, %c0_224, %c0_225] : memref<2x22x22xf32, #tpu.memory_space<vmem>>, vector<2x22x16xf32>
    %c0_226 = arith.constant 0 : index
    %c0_227 = arith.constant 0 : index
    %c0_228 = arith.constant 0 : index
    %184 = vector.load %arg6[%c0_226, %c0_227, %c0_228] : memref<2x22x16xf32, #tpu.memory_space<vmem>>, vector<2x22x16xf32>
    tpu.vector_store %arg6[%c0_226, %c0_227, %c0_228], %183 {strides = array<i32>} : memref<2x22x16xf32, #tpu.memory_space<vmem>>, vector<2x22x16xf32>,
    %c0_229 = arith.constant 0 : index
    %c0_230 = arith.constant 0 : index
    %c0_231 = arith.constant 0 : index
    %185 = vector.load %arg5[%c0_229, %c0_230, %c0_231] : memref<2x22x22xf32, #tpu.memory_space<vmem>>, vector<2x22x16xf32>
    %c0_232 = arith.constant 0 : index
    %c0_233 = arith.constant 0 : index
    %c0_234 = arith.constant 0 : index
    %186 = vector.load %arg7[%c0_232, %c0_233, %c0_234] : memref<2x22x16xf32, #tpu.memory_space<vmem>>, vector<2x22x16xf32>
    tpu.vector_store %arg7[%c0_232, %c0_233, %c0_234], %185 {strides = array<i32>} : memref<2x22x16xf32, #tpu.memory_space<vmem>>, vector<2x22x16xf32>,
    %c0_235 = arith.constant 0 : index
    %c0_236 = arith.constant 0 : index
    %c0_237 = arith.constant 0 : index
    %187 = vector.load %arg6[%c0_235, %c0_236, %c0_237] : memref<2x22x16xf32, #tpu.memory_space<vmem>>, vector<2x16x16xf32>
    %188 = vector.broadcast %81 : f32 to vector<2x16x16xf32>
    %189 = arith.mulf %188, %187 : vector<2x16x16xf32>
    %c0_238 = arith.constant 0 : index
    %c0_239 = arith.constant 0 : index
    %c0_240 = arith.constant 0 : index
    %190 = vector.load %arg7[%c0_238, %c0_239, %c0_240] : memref<2x22x16xf32, #tpu.memory_space<vmem>>, vector<2x16x16xf32>
    %191 = vector.broadcast %130 : f32 to vector<2x16x16xf32>
    %192 = arith.mulf %191, %190 : vector<2x16x16xf32>
    %193 = arith.addf %189, %192 : vector<2x16x16xf32>
    %194 = arith.addf %179, %193 : vector<2x16x16xf32>
    %c0_241 = arith.constant 0 : index
    %c1_242 = arith.constant 1 : index
    %c0_243 = arith.constant 0 : index
    %195 = vector.load %arg6[%c0_241, %c1_242, %c0_243] : memref<2x22x16xf32, #tpu.memory_space<vmem>>, vector<2x16x16xf32>
    %196 = vector.broadcast %88 : f32 to vector<2x16x16xf32>
    %197 = arith.mulf %196, %195 : vector<2x16x16xf32>
    %c0_244 = arith.constant 0 : index
    %c1_245 = arith.constant 1 : index
    %c0_246 = arith.constant 0 : index
    %198 = vector.load %arg7[%c0_244, %c1_245, %c0_246] : memref<2x22x16xf32, #tpu.memory_space<vmem>>, vector<2x16x16xf32>
    %199 = vector.broadcast %137 : f32 to vector<2x16x16xf32>
    %200 = arith.mulf %199, %198 : vector<2x16x16xf32>
    %201 = arith.addf %197, %200 : vector<2x16x16xf32>
    %202 = arith.addf %182, %201 : vector<2x16x16xf32>
    %c0_247 = arith.constant 0 : index
    %c2_248 = arith.constant 2 : index
    %c0_249 = arith.constant 0 : index
    %203 = vector.load %arg6[%c0_247, %c2_248, %c0_249] : memref<2x22x16xf32, #tpu.memory_space<vmem>>, vector<2x16x16xf32>
    %204 = vector.broadcast %95 : f32 to vector<2x16x16xf32>
    %205 = arith.mulf %204, %203 : vector<2x16x16xf32>
    %c0_250 = arith.constant 0 : index
    %c2_251 = arith.constant 2 : index
    %c0_252 = arith.constant 0 : index
    %206 = vector.load %arg7[%c0_250, %c2_251, %c0_252] : memref<2x22x16xf32, #tpu.memory_space<vmem>>, vector<2x16x16xf32>
    %207 = vector.broadcast %144 : f32 to vector<2x16x16xf32>
    %208 = arith.mulf %207, %206 : vector<2x16x16xf32>
    %209 = arith.addf %205, %208 : vector<2x16x16xf32>
    %210 = arith.addf %181, %209 : vector<2x16x16xf32>
    %c0_253 = arith.constant 0 : index
    %c3_254 = arith.constant 3 : index
    %c0_255 = arith.constant 0 : index
    %211 = vector.load %arg6[%c0_253, %c3_254, %c0_255] : memref<2x22x16xf32, #tpu.memory_space<vmem>>, vector<2x16x16xf32>
    %212 = vector.broadcast %102 : f32 to vector<2x16x16xf32>
    %213 = arith.mulf %212, %211 : vector<2x16x16xf32>
    %c0_256 = arith.constant 0 : index
    %c3_257 = arith.constant 3 : index
    %c0_258 = arith.constant 0 : index
    %214 = vector.load %arg7[%c0_256, %c3_257, %c0_258] : memref<2x22x16xf32, #tpu.memory_space<vmem>>, vector<2x16x16xf32>
    %215 = vector.broadcast %151 : f32 to vector<2x16x16xf32>
    %216 = arith.mulf %215, %214 : vector<2x16x16xf32>
    %217 = arith.addf %213, %216 : vector<2x16x16xf32>
    %218 = arith.addf %180, %217 : vector<2x16x16xf32>
    %c0_259 = arith.constant 0 : index
    %c4_260 = arith.constant 4 : index
    %c0_261 = arith.constant 0 : index
    %219 = vector.load %arg6[%c0_259, %c4_260, %c0_261] : memref<2x22x16xf32, #tpu.memory_space<vmem>>, vector<2x16x16xf32>
    %220 = vector.broadcast %109 : f32 to vector<2x16x16xf32>
    %221 = arith.mulf %220, %219 : vector<2x16x16xf32>
    %c0_262 = arith.constant 0 : index
    %c4_263 = arith.constant 4 : index
    %c0_264 = arith.constant 0 : index
    %222 = vector.load %arg7[%c0_262, %c4_263, %c0_264] : memref<2x22x16xf32, #tpu.memory_space<vmem>>, vector<2x16x16xf32>
    %223 = vector.broadcast %158 : f32 to vector<2x16x16xf32>
    %224 = arith.mulf %223, %222 : vector<2x16x16xf32>
    %225 = arith.addf %221, %224 : vector<2x16x16xf32>
    %226 = arith.addf %194, %225 : vector<2x16x16xf32>
    %c0_265 = arith.constant 0 : index
    %c5_266 = arith.constant 5 : index
    %c0_267 = arith.constant 0 : index
    %227 = vector.load %arg6[%c0_265, %c5_266, %c0_267] : memref<2x22x16xf32, #tpu.memory_space<vmem>>, vector<2x16x16xf32>
    %228 = vector.broadcast %116 : f32 to vector<2x16x16xf32>
    %229 = arith.mulf %228, %227 : vector<2x16x16xf32>
    %c0_268 = arith.constant 0 : index
    %c5_269 = arith.constant 5 : index
    %c0_270 = arith.constant 0 : index
    %230 = vector.load %arg7[%c0_268, %c5_269, %c0_270] : memref<2x22x16xf32, #tpu.memory_space<vmem>>, vector<2x16x16xf32>
    %231 = vector.broadcast %165 : f32 to vector<2x16x16xf32>
    %232 = arith.mulf %231, %230 : vector<2x16x16xf32>
    %233 = arith.addf %229, %232 : vector<2x16x16xf32>
    %234 = arith.addf %202, %233 : vector<2x16x16xf32>
    %c0_271 = arith.constant 0 : index
    %c6_272 = arith.constant 6 : index
    %c0_273 = arith.constant 0 : index
    %235 = vector.load %arg6[%c0_271, %c6_272, %c0_273] : memref<2x22x16xf32, #tpu.memory_space<vmem>>, vector<2x16x16xf32>
    %236 = vector.broadcast %123 : f32 to vector<2x16x16xf32>
    %237 = arith.mulf %236, %235 : vector<2x16x16xf32>
    %c0_274 = arith.constant 0 : index
    %c6_275 = arith.constant 6 : index
    %c0_276 = arith.constant 0 : index
    %238 = vector.load %arg7[%c0_274, %c6_275, %c0_276] : memref<2x22x16xf32, #tpu.memory_space<vmem>>, vector<2x16x16xf32>
    %239 = vector.broadcast %172 : f32 to vector<2x16x16xf32>
    %240 = arith.mulf %239, %238 : vector<2x16x16xf32>
    %241 = arith.addf %237, %240 : vector<2x16x16xf32>
    %242 = arith.addf %210, %241 : vector<2x16x16xf32>
    %c0_277 = arith.constant 0 : index
    %c0_278 = arith.constant 0 : index
    %c1_279 = arith.constant 1 : index
    %243 = vector.load %arg4[%c0_277, %c0_278, %c1_279] : memref<2x22x22xf32, #tpu.memory_space<vmem>>, vector<2x22x16xf32>
    %c0_280 = arith.constant 0 : index
    %c0_281 = arith.constant 0 : index
    %c0_282 = arith.constant 0 : index
    %244 = vector.load %arg6[%c0_280, %c0_281, %c0_282] : memref<2x22x16xf32, #tpu.memory_space<vmem>>, vector<2x22x16xf32>
    tpu.vector_store %arg6[%c0_280, %c0_281, %c0_282], %243 {strides = array<i32>} : memref<2x22x16xf32, #tpu.memory_space<vmem>>, vector<2x22x16xf32>,
    %c0_283 = arith.constant 0 : index
    %c0_284 = arith.constant 0 : index
    %c1_285 = arith.constant 1 : index
    %245 = vector.load %arg5[%c0_283, %c0_284, %c1_285] : memref<2x22x22xf32, #tpu.memory_space<vmem>>, vector<2x22x16xf32>
    %c0_286 = arith.constant 0 : index
    %c0_287 = arith.constant 0 : index
    %c0_288 = arith.constant 0 : index
    %246 = vector.load %arg7[%c0_286, %c0_287, %c0_288] : memref<2x22x16xf32, #tpu.memory_space<vmem>>, vector<2x22x16xf32>
    tpu.vector_store %arg7[%c0_286, %c0_287, %c0_288], %245 {strides = array<i32>} : memref<2x22x16xf32, #tpu.memory_space<vmem>>, vector<2x22x16xf32>,
    %c0_289 = arith.constant 0 : index
    %c0_290 = arith.constant 0 : index
    %c0_291 = arith.constant 0 : index
    %247 = vector.load %arg6[%c0_289, %c0_290, %c0_291] : memref<2x22x16xf32, #tpu.memory_space<vmem>>, vector<2x16x16xf32>
    %248 = vector.broadcast %82 : f32 to vector<2x16x16xf32>
    %249 = arith.mulf %248, %247 : vector<2x16x16xf32>
    %c0_292 = arith.constant 0 : index
    %c0_293 = arith.constant 0 : index
    %c0_294 = arith.constant 0 : index
    %250 = vector.load %arg7[%c0_292, %c0_293, %c0_294] : memref<2x22x16xf32, #tpu.memory_space<vmem>>, vector<2x16x16xf32>
    %251 = vector.broadcast %131 : f32 to vector<2x16x16xf32>
    %252 = arith.mulf %251, %250 : vector<2x16x16xf32>
    %253 = arith.addf %249, %252 : vector<2x16x16xf32>
    %254 = arith.addf %218, %253 : vector<2x16x16xf32>
    %c0_295 = arith.constant 0 : index
    %c1_296 = arith.constant 1 : index
    %c0_297 = arith.constant 0 : index
    %255 = vector.load %arg6[%c0_295, %c1_296, %c0_297] : memref<2x22x16xf32, #tpu.memory_space<vmem>>, vector<2x16x16xf32>
    %256 = vector.broadcast %89 : f32 to vector<2x16x16xf32>
    %257 = arith.mulf %256, %255 : vector<2x16x16xf32>
    %c0_298 = arith.constant 0 : index
    %c1_299 = arith.constant 1 : index
    %c0_300 = arith.constant 0 : index
    %258 = vector.load %arg7[%c0_298, %c1_299, %c0_300] : memref<2x22x16xf32, #tpu.memory_space<vmem>>, vector<2x16x16xf32>
    %259 = vector.broadcast %138 : f32 to vector<2x16x16xf32>
    %260 = arith.mulf %259, %258 : vector<2x16x16xf32>
    %261 = arith.addf %257, %260 : vector<2x16x16xf32>
    %262 = arith.addf %226, %261 : vector<2x16x16xf32>
    %c0_301 = arith.constant 0 : index
    %c2_302 = arith.constant 2 : index
    %c0_303 = arith.constant 0 : index
    %263 = vector.load %arg6[%c0_301, %c2_302, %c0_303] : memref<2x22x16xf32, #tpu.memory_space<vmem>>, vector<2x16x16xf32>
    %264 = vector.broadcast %96 : f32 to vector<2x16x16xf32>
    %265 = arith.mulf %264, %263 : vector<2x16x16xf32>
    %c0_304 = arith.constant 0 : index
    %c2_305 = arith.constant 2 : index
    %c0_306 = arith.constant 0 : index
    %266 = vector.load %arg7[%c0_304, %c2_305, %c0_306] : memref<2x22x16xf32, #tpu.memory_space<vmem>>, vector<2x16x16xf32>
    %267 = vector.broadcast %145 : f32 to vector<2x16x16xf32>
    %268 = arith.mulf %267, %266 : vector<2x16x16xf32>
    %269 = arith.addf %265, %268 : vector<2x16x16xf32>
    %270 = arith.addf %234, %269 : vector<2x16x16xf32>
    %c0_307 = arith.constant 0 : index
    %c3_308 = arith.constant 3 : index
    %c0_309 = arith.constant 0 : index
    %271 = vector.load %arg6[%c0_307, %c3_308, %c0_309] : memref<2x22x16xf32, #tpu.memory_space<vmem>>, vector<2x16x16xf32>
    %272 = vector.broadcast %103 : f32 to vector<2x16x16xf32>
    %273 = arith.mulf %272, %271 : vector<2x16x16xf32>
    %c0_310 = arith.constant 0 : index
    %c3_311 = arith.constant 3 : index
    %c0_312 = arith.constant 0 : index
    %274 = vector.load %arg7[%c0_310, %c3_311, %c0_312] : memref<2x22x16xf32, #tpu.memory_space<vmem>>, vector<2x16x16xf32>
    %275 = vector.broadcast %152 : f32 to vector<2x16x16xf32>
    %276 = arith.mulf %275, %274 : vector<2x16x16xf32>
    %277 = arith.addf %273, %276 : vector<2x16x16xf32>
    %278 = arith.addf %242, %277 : vector<2x16x16xf32>
    %c0_313 = arith.constant 0 : index
    %c4_314 = arith.constant 4 : index
    %c0_315 = arith.constant 0 : index
    %279 = vector.load %arg6[%c0_313, %c4_314, %c0_315] : memref<2x22x16xf32, #tpu.memory_space<vmem>>, vector<2x16x16xf32>
    %280 = vector.broadcast %110 : f32 to vector<2x16x16xf32>
    %281 = arith.mulf %280, %279 : vector<2x16x16xf32>
    %c0_316 = arith.constant 0 : index
    %c4_317 = arith.constant 4 : index
    %c0_318 = arith.constant 0 : index
    %282 = vector.load %arg7[%c0_316, %c4_317, %c0_318] : memref<2x22x16xf32, #tpu.memory_space<vmem>>, vector<2x16x16xf32>
    %283 = vector.broadcast %159 : f32 to vector<2x16x16xf32>
    %284 = arith.mulf %283, %282 : vector<2x16x16xf32>
    %285 = arith.addf %281, %284 : vector<2x16x16xf32>
    %286 = arith.addf %254, %285 : vector<2x16x16xf32>
    %c0_319 = arith.constant 0 : index
    %c5_320 = arith.constant 5 : index
    %c0_321 = arith.constant 0 : index
    %287 = vector.load %arg6[%c0_319, %c5_320, %c0_321] : memref<2x22x16xf32, #tpu.memory_space<vmem>>, vector<2x16x16xf32>
    %288 = vector.broadcast %117 : f32 to vector<2x16x16xf32>
    %289 = arith.mulf %288, %287 : vector<2x16x16xf32>
    %c0_322 = arith.constant 0 : index
    %c5_323 = arith.constant 5 : index
    %c0_324 = arith.constant 0 : index
    %290 = vector.load %arg7[%c0_322, %c5_323, %c0_324] : memref<2x22x16xf32, #tpu.memory_space<vmem>>, vector<2x16x16xf32>
    %291 = vector.broadcast %166 : f32 to vector<2x16x16xf32>
    %292 = arith.mulf %291, %290 : vector<2x16x16xf32>
    %293 = arith.addf %289, %292 : vector<2x16x16xf32>
    %294 = arith.addf %262, %293 : vector<2x16x16xf32>
    %c0_325 = arith.constant 0 : index
    %c6_326 = arith.constant 6 : index
    %c0_327 = arith.constant 0 : index
    %295 = vector.load %arg6[%c0_325, %c6_326, %c0_327] : memref<2x22x16xf32, #tpu.memory_space<vmem>>, vector<2x16x16xf32>
    %296 = vector.broadcast %124 : f32 to vector<2x16x16xf32>
    %297 = arith.mulf %296, %295 : vector<2x16x16xf32>
    %c0_328 = arith.constant 0 : index
    %c6_329 = arith.constant 6 : index
    %c0_330 = arith.constant 0 : index
    %298 = vector.load %arg7[%c0_328, %c6_329, %c0_330] : memref<2x22x16xf32, #tpu.memory_space<vmem>>, vector<2x16x16xf32>
    %299 = vector.broadcast %173 : f32 to vector<2x16x16xf32>
    %300 = arith.mulf %299, %298 : vector<2x16x16xf32>
    %301 = arith.addf %297, %300 : vector<2x16x16xf32>
    %302 = arith.addf %270, %301 : vector<2x16x16xf32>
    %c0_331 = arith.constant 0 : index
    %c0_332 = arith.constant 0 : index
    %c2_333 = arith.constant 2 : index
    %303 = vector.load %arg4[%c0_331, %c0_332, %c2_333] : memref<2x22x22xf32, #tpu.memory_space<vmem>>, vector<2x22x16xf32>
    %c0_334 = arith.constant 0 : index
    %c0_335 = arith.constant 0 : index
    %c0_336 = arith.constant 0 : index
    %304 = vector.load %arg6[%c0_334, %c0_335, %c0_336] : memref<2x22x16xf32, #tpu.memory_space<vmem>>, vector<2x22x16xf32>
    tpu.vector_store %arg6[%c0_334, %c0_335, %c0_336], %303 {strides = array<i32>} : memref<2x22x16xf32, #tpu.memory_space<vmem>>, vector<2x22x16xf32>,
    %c0_337 = arith.constant 0 : index
    %c0_338 = arith.constant 0 : index
    %c2_339 = arith.constant 2 : index
    %305 = vector.load %arg5[%c0_337, %c0_338, %c2_339] : memref<2x22x22xf32, #tpu.memory_space<vmem>>, vector<2x22x16xf32>
    %c0_340 = arith.constant 0 : index
    %c0_341 = arith.constant 0 : index
    %c0_342 = arith.constant 0 : index
    %306 = vector.load %arg7[%c0_340, %c0_341, %c0_342] : memref<2x22x16xf32, #tpu.memory_space<vmem>>, vector<2x22x16xf32>
    tpu.vector_store %arg7[%c0_340, %c0_341, %c0_342], %305 {strides = array<i32>} : memref<2x22x16xf32, #tpu.memory_space<vmem>>, vector<2x22x16xf32>,
    %c0_343 = arith.constant 0 : index
    %c0_344 = arith.constant 0 : index
    %c0_345 = arith.constant 0 : index
    %307 = vector.load %arg6[%c0_343, %c0_344, %c0_345] : memref<2x22x16xf32, #tpu.memory_space<vmem>>, vector<2x16x16xf32>
    %308 = vector.broadcast %83 : f32 to vector<2x16x16xf32>
    %309 = arith.mulf %308, %307 : vector<2x16x16xf32>
    %c0_346 = arith.constant 0 : index
    %c0_347 = arith.constant 0 : index
    %c0_348 = arith.constant 0 : index
    %310 = vector.load %arg7[%c0_346, %c0_347, %c0_348] : memref<2x22x16xf32, #tpu.memory_space<vmem>>, vector<2x16x16xf32>
    %311 = vector.broadcast %132 : f32 to vector<2x16x16xf32>
    %312 = arith.mulf %311, %310 : vector<2x16x16xf32>
    %313 = arith.addf %309, %312 : vector<2x16x16xf32>
    %314 = arith.addf %278, %313 : vector<2x16x16xf32>
    %c0_349 = arith.constant 0 : index
    %c1_350 = arith.constant 1 : index
    %c0_351 = arith.constant 0 : index
    %315 = vector.load %arg6[%c0_349, %c1_350, %c0_351] : memref<2x22x16xf32, #tpu.memory_space<vmem>>, vector<2x16x16xf32>
    %316 = vector.broadcast %90 : f32 to vector<2x16x16xf32>
    %317 = arith.mulf %316, %315 : vector<2x16x16xf32>
    %c0_352 = arith.constant 0 : index
    %c1_353 = arith.constant 1 : index
    %c0_354 = arith.constant 0 : index
    %318 = vector.load %arg7[%c0_352, %c1_353, %c0_354] : memref<2x22x16xf32, #tpu.memory_space<vmem>>, vector<2x16x16xf32>
    %319 = vector.broadcast %139 : f32 to vector<2x16x16xf32>
    %320 = arith.mulf %319, %318 : vector<2x16x16xf32>
    %321 = arith.addf %317, %320 : vector<2x16x16xf32>
    %322 = arith.addf %286, %321 : vector<2x16x16xf32>
    %c0_355 = arith.constant 0 : index
    %c2_356 = arith.constant 2 : index
    %c0_357 = arith.constant 0 : index
    %323 = vector.load %arg6[%c0_355, %c2_356, %c0_357] : memref<2x22x16xf32, #tpu.memory_space<vmem>>, vector<2x16x16xf32>
    %324 = vector.broadcast %97 : f32 to vector<2x16x16xf32>
    %325 = arith.mulf %324, %323 : vector<2x16x16xf32>
    %c0_358 = arith.constant 0 : index
    %c2_359 = arith.constant 2 : index
    %c0_360 = arith.constant 0 : index
    %326 = vector.load %arg7[%c0_358, %c2_359, %c0_360] : memref<2x22x16xf32, #tpu.memory_space<vmem>>, vector<2x16x16xf32>
    %327 = vector.broadcast %146 : f32 to vector<2x16x16xf32>
    %328 = arith.mulf %327, %326 : vector<2x16x16xf32>
    %329 = arith.addf %325, %328 : vector<2x16x16xf32>
    %330 = arith.addf %294, %329 : vector<2x16x16xf32>
    %c0_361 = arith.constant 0 : index
    %c3_362 = arith.constant 3 : index
    %c0_363 = arith.constant 0 : index
    %331 = vector.load %arg6[%c0_361, %c3_362, %c0_363] : memref<2x22x16xf32, #tpu.memory_space<vmem>>, vector<2x16x16xf32>
    %332 = vector.broadcast %104 : f32 to vector<2x16x16xf32>
    %333 = arith.mulf %332, %331 : vector<2x16x16xf32>
    %c0_364 = arith.constant 0 : index
    %c3_365 = arith.constant 3 : index
    %c0_366 = arith.constant 0 : index
    %334 = vector.load %arg7[%c0_364, %c3_365, %c0_366] : memref<2x22x16xf32, #tpu.memory_space<vmem>>, vector<2x16x16xf32>
    %335 = vector.broadcast %153 : f32 to vector<2x16x16xf32>
    %336 = arith.mulf %335, %334 : vector<2x16x16xf32>
    %337 = arith.addf %333, %336 : vector<2x16x16xf32>
    %338 = arith.addf %302, %337 : vector<2x16x16xf32>
    %c0_367 = arith.constant 0 : index
    %c4_368 = arith.constant 4 : index
    %c0_369 = arith.constant 0 : index
    %339 = vector.load %arg6[%c0_367, %c4_368, %c0_369] : memref<2x22x16xf32, #tpu.memory_space<vmem>>, vector<2x16x16xf32>
    %340 = vector.broadcast %111 : f32 to vector<2x16x16xf32>
    %341 = arith.mulf %340, %339 : vector<2x16x16xf32>
    %c0_370 = arith.constant 0 : index
    %c4_371 = arith.constant 4 : index
    %c0_372 = arith.constant 0 : index
    %342 = vector.load %arg7[%c0_370, %c4_371, %c0_372] : memref<2x22x16xf32, #tpu.memory_space<vmem>>, vector<2x16x16xf32>
    %343 = vector.broadcast %160 : f32 to vector<2x16x16xf32>
    %344 = arith.mulf %343, %342 : vector<2x16x16xf32>
    %345 = arith.addf %341, %344 : vector<2x16x16xf32>
    %346 = arith.addf %314, %345 : vector<2x16x16xf32>
    %c0_373 = arith.constant 0 : index
    %c5_374 = arith.constant 5 : index
    %c0_375 = arith.constant 0 : index
    %347 = vector.load %arg6[%c0_373, %c5_374, %c0_375] : memref<2x22x16xf32, #tpu.memory_space<vmem>>, vector<2x16x16xf32>
    %348 = vector.broadcast %118 : f32 to vector<2x16x16xf32>
    %349 = arith.mulf %348, %347 : vector<2x16x16xf32>
    %c0_376 = arith.constant 0 : index
    %c5_377 = arith.constant 5 : index
    %c0_378 = arith.constant 0 : index
    %350 = vector.load %arg7[%c0_376, %c5_377, %c0_378] : memref<2x22x16xf32, #tpu.memory_space<vmem>>, vector<2x16x16xf32>
    %351 = vector.broadcast %167 : f32 to vector<2x16x16xf32>
    %352 = arith.mulf %351, %350 : vector<2x16x16xf32>
    %353 = arith.addf %349, %352 : vector<2x16x16xf32>
    %354 = arith.addf %322, %353 : vector<2x16x16xf32>
    %c0_379 = arith.constant 0 : index
    %c6_380 = arith.constant 6 : index
    %c0_381 = arith.constant 0 : index
    %355 = vector.load %arg6[%c0_379, %c6_380, %c0_381] : memref<2x22x16xf32, #tpu.memory_space<vmem>>, vector<2x16x16xf32>
    %356 = vector.broadcast %125 : f32 to vector<2x16x16xf32>
    %357 = arith.mulf %356, %355 : vector<2x16x16xf32>
    %c0_382 = arith.constant 0 : index
    %c6_383 = arith.constant 6 : index
    %c0_384 = arith.constant 0 : index
    %358 = vector.load %arg7[%c0_382, %c6_383, %c0_384] : memref<2x22x16xf32, #tpu.memory_space<vmem>>, vector<2x16x16xf32>
    %359 = vector.broadcast %174 : f32 to vector<2x16x16xf32>
    %360 = arith.mulf %359, %358 : vector<2x16x16xf32>
    %361 = arith.addf %357, %360 : vector<2x16x16xf32>
    %362 = arith.addf %330, %361 : vector<2x16x16xf32>
    %c0_385 = arith.constant 0 : index
    %c0_386 = arith.constant 0 : index
    %c3_387 = arith.constant 3 : index
    %363 = vector.load %arg4[%c0_385, %c0_386, %c3_387] : memref<2x22x22xf32, #tpu.memory_space<vmem>>, vector<2x22x16xf32>
    %c0_388 = arith.constant 0 : index
    %c0_389 = arith.constant 0 : index
    %c0_390 = arith.constant 0 : index
    %364 = vector.load %arg6[%c0_388, %c0_389, %c0_390] : memref<2x22x16xf32, #tpu.memory_space<vmem>>, vector<2x22x16xf32>
    tpu.vector_store %arg6[%c0_388, %c0_389, %c0_390], %363 {strides = array<i32>} : memref<2x22x16xf32, #tpu.memory_space<vmem>>, vector<2x22x16xf32>,
    %c0_391 = arith.constant 0 : index
    %c0_392 = arith.constant 0 : index
    %c3_393 = arith.constant 3 : index
    %365 = vector.load %arg5[%c0_391, %c0_392, %c3_393] : memref<2x22x22xf32, #tpu.memory_space<vmem>>, vector<2x22x16xf32>
    %c0_394 = arith.constant 0 : index
    %c0_395 = arith.constant 0 : index
    %c0_396 = arith.constant 0 : index
    %366 = vector.load %arg7[%c0_394, %c0_395, %c0_396] : memref<2x22x16xf32, #tpu.memory_space<vmem>>, vector<2x22x16xf32>
    tpu.vector_store %arg7[%c0_394, %c0_395, %c0_396], %365 {strides = array<i32>} : memref<2x22x16xf32, #tpu.memory_space<vmem>>, vector<2x22x16xf32>,
    %c0_397 = arith.constant 0 : index
    %c0_398 = arith.constant 0 : index
    %c0_399 = arith.constant 0 : index
    %367 = vector.load %arg6[%c0_397, %c0_398, %c0_399] : memref<2x22x16xf32, #tpu.memory_space<vmem>>, vector<2x16x16xf32>
    %368 = vector.broadcast %84 : f32 to vector<2x16x16xf32>
    %369 = arith.mulf %368, %367 : vector<2x16x16xf32>
    %c0_400 = arith.constant 0 : index
    %c0_401 = arith.constant 0 : index
    %c0_402 = arith.constant 0 : index
    %370 = vector.load %arg7[%c0_400, %c0_401, %c0_402] : memref<2x22x16xf32, #tpu.memory_space<vmem>>, vector<2x16x16xf32>
    %371 = vector.broadcast %133 : f32 to vector<2x16x16xf32>
    %372 = arith.mulf %371, %370 : vector<2x16x16xf32>
    %373 = arith.addf %369, %372 : vector<2x16x16xf32>
    %374 = arith.addf %338, %373 : vector<2x16x16xf32>
    %c0_403 = arith.constant 0 : index
    %c1_404 = arith.constant 1 : index
    %c0_405 = arith.constant 0 : index
    %375 = vector.load %arg6[%c0_403, %c1_404, %c0_405] : memref<2x22x16xf32, #tpu.memory_space<vmem>>, vector<2x16x16xf32>
    %376 = vector.broadcast %91 : f32 to vector<2x16x16xf32>
    %377 = arith.mulf %376, %375 : vector<2x16x16xf32>
    %c0_406 = arith.constant 0 : index
    %c1_407 = arith.constant 1 : index
    %c0_408 = arith.constant 0 : index
    %378 = vector.load %arg7[%c0_406, %c1_407, %c0_408] : memref<2x22x16xf32, #tpu.memory_space<vmem>>, vector<2x16x16xf32>
    %379 = vector.broadcast %140 : f32 to vector<2x16x16xf32>
    %380 = arith.mulf %379, %378 : vector<2x16x16xf32>
    %381 = arith.addf %377, %380 : vector<2x16x16xf32>
    %382 = arith.addf %346, %381 : vector<2x16x16xf32>
    %c0_409 = arith.constant 0 : index
    %c2_410 = arith.constant 2 : index
    %c0_411 = arith.constant 0 : index
    %383 = vector.load %arg6[%c0_409, %c2_410, %c0_411] : memref<2x22x16xf32, #tpu.memory_space<vmem>>, vector<2x16x16xf32>
    %384 = vector.broadcast %98 : f32 to vector<2x16x16xf32>
    %385 = arith.mulf %384, %383 : vector<2x16x16xf32>
    %c0_412 = arith.constant 0 : index
    %c2_413 = arith.constant 2 : index
    %c0_414 = arith.constant 0 : index
    %386 = vector.load %arg7[%c0_412, %c2_413, %c0_414] : memref<2x22x16xf32, #tpu.memory_space<vmem>>, vector<2x16x16xf32>
    %387 = vector.broadcast %147 : f32 to vector<2x16x16xf32>
    %388 = arith.mulf %387, %386 : vector<2x16x16xf32>
    %389 = arith.addf %385, %388 : vector<2x16x16xf32>
    %390 = arith.addf %354, %389 : vector<2x16x16xf32>
    %c0_415 = arith.constant 0 : index
    %c3_416 = arith.constant 3 : index
    %c0_417 = arith.constant 0 : index
    %391 = vector.load %arg6[%c0_415, %c3_416, %c0_417] : memref<2x22x16xf32, #tpu.memory_space<vmem>>, vector<2x16x16xf32>
    %392 = vector.broadcast %105 : f32 to vector<2x16x16xf32>
    %393 = arith.mulf %392, %391 : vector<2x16x16xf32>
    %c0_418 = arith.constant 0 : index
    %c3_419 = arith.constant 3 : index
    %c0_420 = arith.constant 0 : index
    %394 = vector.load %arg7[%c0_418, %c3_419, %c0_420] : memref<2x22x16xf32, #tpu.memory_space<vmem>>, vector<2x16x16xf32>
    %395 = vector.broadcast %154 : f32 to vector<2x16x16xf32>
    %396 = arith.mulf %395, %394 : vector<2x16x16xf32>
    %397 = arith.addf %393, %396 : vector<2x16x16xf32>
    %398 = arith.addf %362, %397 : vector<2x16x16xf32>
    %c0_421 = arith.constant 0 : index
    %c4_422 = arith.constant 4 : index
    %c0_423 = arith.constant 0 : index
    %399 = vector.load %arg6[%c0_421, %c4_422, %c0_423] : memref<2x22x16xf32, #tpu.memory_space<vmem>>, vector<2x16x16xf32>
    %400 = vector.broadcast %112 : f32 to vector<2x16x16xf32>
    %401 = arith.mulf %400, %399 : vector<2x16x16xf32>
    %c0_424 = arith.constant 0 : index
    %c4_425 = arith.constant 4 : index
    %c0_426 = arith.constant 0 : index
    %402 = vector.load %arg7[%c0_424, %c4_425, %c0_426] : memref<2x22x16xf32, #tpu.memory_space<vmem>>, vector<2x16x16xf32>
    %403 = vector.broadcast %161 : f32 to vector<2x16x16xf32>
    %404 = arith.mulf %403, %402 : vector<2x16x16xf32>
    %405 = arith.addf %401, %404 : vector<2x16x16xf32>
    %406 = arith.addf %374, %405 : vector<2x16x16xf32>
    %c0_427 = arith.constant 0 : index
    %c5_428 = arith.constant 5 : index
    %c0_429 = arith.constant 0 : index
    %407 = vector.load %arg6[%c0_427, %c5_428, %c0_429] : memref<2x22x16xf32, #tpu.memory_space<vmem>>, vector<2x16x16xf32>
    %408 = vector.broadcast %119 : f32 to vector<2x16x16xf32>
    %409 = arith.mulf %408, %407 : vector<2x16x16xf32>
    %c0_430 = arith.constant 0 : index
    %c5_431 = arith.constant 5 : index
    %c0_432 = arith.constant 0 : index
    %410 = vector.load %arg7[%c0_430, %c5_431, %c0_432] : memref<2x22x16xf32, #tpu.memory_space<vmem>>, vector<2x16x16xf32>
    %411 = vector.broadcast %168 : f32 to vector<2x16x16xf32>
    %412 = arith.mulf %411, %410 : vector<2x16x16xf32>
    %413 = arith.addf %409, %412 : vector<2x16x16xf32>
    %414 = arith.addf %382, %413 : vector<2x16x16xf32>
    %c0_433 = arith.constant 0 : index
    %c6_434 = arith.constant 6 : index
    %c0_435 = arith.constant 0 : index
    %415 = vector.load %arg6[%c0_433, %c6_434, %c0_435] : memref<2x22x16xf32, #tpu.memory_space<vmem>>, vector<2x16x16xf32>
    %416 = vector.broadcast %126 : f32 to vector<2x16x16xf32>
    %417 = arith.mulf %416, %415 : vector<2x16x16xf32>
    %c0_436 = arith.constant 0 : index
    %c6_437 = arith.constant 6 : index
    %c0_438 = arith.constant 0 : index
    %418 = vector.load %arg7[%c0_436, %c6_437, %c0_438] : memref<2x22x16xf32, #tpu.memory_space<vmem>>, vector<2x16x16xf32>
    %419 = vector.broadcast %175 : f32 to vector<2x16x16xf32>
    %420 = arith.mulf %419, %418 : vector<2x16x16xf32>
    %421 = arith.addf %417, %420 : vector<2x16x16xf32>
    %422 = arith.addf %390, %421 : vector<2x16x16xf32>
    %c0_439 = arith.constant 0 : index
    %c0_440 = arith.constant 0 : index
    %c4_441 = arith.constant 4 : index
    %423 = vector.load %arg4[%c0_439, %c0_440, %c4_441] : memref<2x22x22xf32, #tpu.memory_space<vmem>>, vector<2x22x16xf32>
    %c0_442 = arith.constant 0 : index
    %c0_443 = arith.constant 0 : index
    %c0_444 = arith.constant 0 : index
    %424 = vector.load %arg6[%c0_442, %c0_443, %c0_444] : memref<2x22x16xf32, #tpu.memory_space<vmem>>, vector<2x22x16xf32>
    tpu.vector_store %arg6[%c0_442, %c0_443, %c0_444], %423 {strides = array<i32>} : memref<2x22x16xf32, #tpu.memory_space<vmem>>, vector<2x22x16xf32>,
    %c0_445 = arith.constant 0 : index
    %c0_446 = arith.constant 0 : index
    %c4_447 = arith.constant 4 : index
    %425 = vector.load %arg5[%c0_445, %c0_446, %c4_447] : memref<2x22x22xf32, #tpu.memory_space<vmem>>, vector<2x22x16xf32>
    %c0_448 = arith.constant 0 : index
    %c0_449 = arith.constant 0 : index
    %c0_450 = arith.constant 0 : index
    %426 = vector.load %arg7[%c0_448, %c0_449, %c0_450] : memref<2x22x16xf32, #tpu.memory_space<vmem>>, vector<2x22x16xf32>
    tpu.vector_store %arg7[%c0_448, %c0_449, %c0_450], %425 {strides = array<i32>} : memref<2x22x16xf32, #tpu.memory_space<vmem>>, vector<2x22x16xf32>,
    %c0_451 = arith.constant 0 : index
    %c0_452 = arith.constant 0 : index
    %c0_453 = arith.constant 0 : index
    %427 = vector.load %arg6[%c0_451, %c0_452, %c0_453] : memref<2x22x16xf32, #tpu.memory_space<vmem>>, vector<2x16x16xf32>
    %428 = vector.broadcast %85 : f32 to vector<2x16x16xf32>
    %429 = arith.mulf %428, %427 : vector<2x16x16xf32>
    %c0_454 = arith.constant 0 : index
    %c0_455 = arith.constant 0 : index
    %c0_456 = arith.constant 0 : index
    %430 = vector.load %arg7[%c0_454, %c0_455, %c0_456] : memref<2x22x16xf32, #tpu.memory_space<vmem>>, vector<2x16x16xf32>
    %431 = vector.broadcast %134 : f32 to vector<2x16x16xf32>
    %432 = arith.mulf %431, %430 : vector<2x16x16xf32>
    %433 = arith.addf %429, %432 : vector<2x16x16xf32>
    %434 = arith.addf %398, %433 : vector<2x16x16xf32>
    %c0_457 = arith.constant 0 : index
    %c1_458 = arith.constant 1 : index
    %c0_459 = arith.constant 0 : index
    %435 = vector.load %arg6[%c0_457, %c1_458, %c0_459] : memref<2x22x16xf32, #tpu.memory_space<vmem>>, vector<2x16x16xf32>
    %436 = vector.broadcast %92 : f32 to vector<2x16x16xf32>
    %437 = arith.mulf %436, %435 : vector<2x16x16xf32>
    %c0_460 = arith.constant 0 : index
    %c1_461 = arith.constant 1 : index
    %c0_462 = arith.constant 0 : index
    %438 = vector.load %arg7[%c0_460, %c1_461, %c0_462] : memref<2x22x16xf32, #tpu.memory_space<vmem>>, vector<2x16x16xf32>
    %439 = vector.broadcast %141 : f32 to vector<2x16x16xf32>
    %440 = arith.mulf %439, %438 : vector<2x16x16xf32>
    %441 = arith.addf %437, %440 : vector<2x16x16xf32>
    %442 = arith.addf %406, %441 : vector<2x16x16xf32>
    %c0_463 = arith.constant 0 : index
    %c2_464 = arith.constant 2 : index
    %c0_465 = arith.constant 0 : index
    %443 = vector.load %arg6[%c0_463, %c2_464, %c0_465] : memref<2x22x16xf32, #tpu.memory_space<vmem>>, vector<2x16x16xf32>
    %444 = vector.broadcast %99 : f32 to vector<2x16x16xf32>
    %445 = arith.mulf %444, %443 : vector<2x16x16xf32>
    %c0_466 = arith.constant 0 : index
    %c2_467 = arith.constant 2 : index
    %c0_468 = arith.constant 0 : index
    %446 = vector.load %arg7[%c0_466, %c2_467, %c0_468] : memref<2x22x16xf32, #tpu.memory_space<vmem>>, vector<2x16x16xf32>
    %447 = vector.broadcast %148 : f32 to vector<2x16x16xf32>
    %448 = arith.mulf %447, %446 : vector<2x16x16xf32>
    %449 = arith.addf %445, %448 : vector<2x16x16xf32>
    %450 = arith.addf %414, %449 : vector<2x16x16xf32>
    %c0_469 = arith.constant 0 : index
    %c3_470 = arith.constant 3 : index
    %c0_471 = arith.constant 0 : index
    %451 = vector.load %arg6[%c0_469, %c3_470, %c0_471] : memref<2x22x16xf32, #tpu.memory_space<vmem>>, vector<2x16x16xf32>
    %452 = vector.broadcast %106 : f32 to vector<2x16x16xf32>
    %453 = arith.mulf %452, %451 : vector<2x16x16xf32>
    %c0_472 = arith.constant 0 : index
    %c3_473 = arith.constant 3 : index
    %c0_474 = arith.constant 0 : index
    %454 = vector.load %arg7[%c0_472, %c3_473, %c0_474] : memref<2x22x16xf32, #tpu.memory_space<vmem>>, vector<2x16x16xf32>
    %455 = vector.broadcast %155 : f32 to vector<2x16x16xf32>
    %456 = arith.mulf %455, %454 : vector<2x16x16xf32>
    %457 = arith.addf %453, %456 : vector<2x16x16xf32>
    %458 = arith.addf %422, %457 : vector<2x16x16xf32>
    %c0_475 = arith.constant 0 : index
    %c4_476 = arith.constant 4 : index
    %c0_477 = arith.constant 0 : index
    %459 = vector.load %arg6[%c0_475, %c4_476, %c0_477] : memref<2x22x16xf32, #tpu.memory_space<vmem>>, vector<2x16x16xf32>
    %460 = vector.broadcast %113 : f32 to vector<2x16x16xf32>
    %461 = arith.mulf %460, %459 : vector<2x16x16xf32>
    %c0_478 = arith.constant 0 : index
    %c4_479 = arith.constant 4 : index
    %c0_480 = arith.constant 0 : index
    %462 = vector.load %arg7[%c0_478, %c4_479, %c0_480] : memref<2x22x16xf32, #tpu.memory_space<vmem>>, vector<2x16x16xf32>
    %463 = vector.broadcast %162 : f32 to vector<2x16x16xf32>
    %464 = arith.mulf %463, %462 : vector<2x16x16xf32>
    %465 = arith.addf %461, %464 : vector<2x16x16xf32>
    %466 = arith.addf %434, %465 : vector<2x16x16xf32>
    %c0_481 = arith.constant 0 : index
    %c5_482 = arith.constant 5 : index
    %c0_483 = arith.constant 0 : index
    %467 = vector.load %arg6[%c0_481, %c5_482, %c0_483] : memref<2x22x16xf32, #tpu.memory_space<vmem>>, vector<2x16x16xf32>
    %468 = vector.broadcast %120 : f32 to vector<2x16x16xf32>
    %469 = arith.mulf %468, %467 : vector<2x16x16xf32>
    %c0_484 = arith.constant 0 : index
    %c5_485 = arith.constant 5 : index
    %c0_486 = arith.constant 0 : index
    %470 = vector.load %arg7[%c0_484, %c5_485, %c0_486] : memref<2x22x16xf32, #tpu.memory_space<vmem>>, vector<2x16x16xf32>
    %471 = vector.broadcast %169 : f32 to vector<2x16x16xf32>
    %472 = arith.mulf %471, %470 : vector<2x16x16xf32>
    %473 = arith.addf %469, %472 : vector<2x16x16xf32>
    %474 = arith.addf %442, %473 : vector<2x16x16xf32>
    %c0_487 = arith.constant 0 : index
    %c6_488 = arith.constant 6 : index
    %c0_489 = arith.constant 0 : index
    %475 = vector.load %arg6[%c0_487, %c6_488, %c0_489] : memref<2x22x16xf32, #tpu.memory_space<vmem>>, vector<2x16x16xf32>
    %476 = vector.broadcast %127 : f32 to vector<2x16x16xf32>
    %477 = arith.mulf %476, %475 : vector<2x16x16xf32>
    %c0_490 = arith.constant 0 : index
    %c6_491 = arith.constant 6 : index
    %c0_492 = arith.constant 0 : index
    %478 = vector.load %arg7[%c0_490, %c6_491, %c0_492] : memref<2x22x16xf32, #tpu.memory_space<vmem>>, vector<2x16x16xf32>
    %479 = vector.broadcast %176 : f32 to vector<2x16x16xf32>
    %480 = arith.mulf %479, %478 : vector<2x16x16xf32>
    %481 = arith.addf %477, %480 : vector<2x16x16xf32>
    %482 = arith.addf %450, %481 : vector<2x16x16xf32>
    %c0_493 = arith.constant 0 : index
    %c0_494 = arith.constant 0 : index
    %c5_495 = arith.constant 5 : index
    %483 = vector.load %arg4[%c0_493, %c0_494, %c5_495] : memref<2x22x22xf32, #tpu.memory_space<vmem>>, vector<2x22x16xf32>
    %c0_496 = arith.constant 0 : index
    %c0_497 = arith.constant 0 : index
    %c0_498 = arith.constant 0 : index
    %484 = vector.load %arg6[%c0_496, %c0_497, %c0_498] : memref<2x22x16xf32, #tpu.memory_space<vmem>>, vector<2x22x16xf32>
    tpu.vector_store %arg6[%c0_496, %c0_497, %c0_498], %483 {strides = array<i32>} : memref<2x22x16xf32, #tpu.memory_space<vmem>>, vector<2x22x16xf32>,
    %c0_499 = arith.constant 0 : index
    %c0_500 = arith.constant 0 : index
    %c5_501 = arith.constant 5 : index
    %485 = vector.load %arg5[%c0_499, %c0_500, %c5_501] : memref<2x22x22xf32, #tpu.memory_space<vmem>>, vector<2x22x16xf32>
    %c0_502 = arith.constant 0 : index
    %c0_503 = arith.constant 0 : index
    %c0_504 = arith.constant 0 : index
    %486 = vector.load %arg7[%c0_502, %c0_503, %c0_504] : memref<2x22x16xf32, #tpu.memory_space<vmem>>, vector<2x22x16xf32>
    tpu.vector_store %arg7[%c0_502, %c0_503, %c0_504], %485 {strides = array<i32>} : memref<2x22x16xf32, #tpu.memory_space<vmem>>, vector<2x22x16xf32>,
    %c0_505 = arith.constant 0 : index
    %c0_506 = arith.constant 0 : index
    %c0_507 = arith.constant 0 : index
    %487 = vector.load %arg6[%c0_505, %c0_506, %c0_507] : memref<2x22x16xf32, #tpu.memory_space<vmem>>, vector<2x16x16xf32>
    %488 = vector.broadcast %86 : f32 to vector<2x16x16xf32>
    %489 = arith.mulf %488, %487 : vector<2x16x16xf32>
    %c0_508 = arith.constant 0 : index
    %c0_509 = arith.constant 0 : index
    %c0_510 = arith.constant 0 : index
    %490 = vector.load %arg7[%c0_508, %c0_509, %c0_510] : memref<2x22x16xf32, #tpu.memory_space<vmem>>, vector<2x16x16xf32>
    %491 = vector.broadcast %135 : f32 to vector<2x16x16xf32>
    %492 = arith.mulf %491, %490 : vector<2x16x16xf32>
    %493 = arith.addf %489, %492 : vector<2x16x16xf32>
    %494 = arith.addf %458, %493 : vector<2x16x16xf32>
    %c0_511 = arith.constant 0 : index
    %c1_512 = arith.constant 1 : index
    %c0_513 = arith.constant 0 : index
    %495 = vector.load %arg6[%c0_511, %c1_512, %c0_513] : memref<2x22x16xf32, #tpu.memory_space<vmem>>, vector<2x16x16xf32>
    %496 = vector.broadcast %93 : f32 to vector<2x16x16xf32>
    %497 = arith.mulf %496, %495 : vector<2x16x16xf32>
    %c0_514 = arith.constant 0 : index
    %c1_515 = arith.constant 1 : index
    %c0_516 = arith.constant 0 : index
    %498 = vector.load %arg7[%c0_514, %c1_515, %c0_516] : memref<2x22x16xf32, #tpu.memory_space<vmem>>, vector<2x16x16xf32>
    %499 = vector.broadcast %142 : f32 to vector<2x16x16xf32>
    %500 = arith.mulf %499, %498 : vector<2x16x16xf32>
    %501 = arith.addf %497, %500 : vector<2x16x16xf32>
    %502 = arith.addf %466, %501 : vector<2x16x16xf32>
    %c0_517 = arith.constant 0 : index
    %c2_518 = arith.constant 2 : index
    %c0_519 = arith.constant 0 : index
    %503 = vector.load %arg6[%c0_517, %c2_518, %c0_519] : memref<2x22x16xf32, #tpu.memory_space<vmem>>, vector<2x16x16xf32>
    %504 = vector.broadcast %100 : f32 to vector<2x16x16xf32>
    %505 = arith.mulf %504, %503 : vector<2x16x16xf32>
    %c0_520 = arith.constant 0 : index
    %c2_521 = arith.constant 2 : index
    %c0_522 = arith.constant 0 : index
    %506 = vector.load %arg7[%c0_520, %c2_521, %c0_522] : memref<2x22x16xf32, #tpu.memory_space<vmem>>, vector<2x16x16xf32>
    %507 = vector.broadcast %149 : f32 to vector<2x16x16xf32>
    %508 = arith.mulf %507, %506 : vector<2x16x16xf32>
    %509 = arith.addf %505, %508 : vector<2x16x16xf32>
    %510 = arith.addf %474, %509 : vector<2x16x16xf32>
    %c0_523 = arith.constant 0 : index
    %c3_524 = arith.constant 3 : index
    %c0_525 = arith.constant 0 : index
    %511 = vector.load %arg6[%c0_523, %c3_524, %c0_525] : memref<2x22x16xf32, #tpu.memory_space<vmem>>, vector<2x16x16xf32>
    %512 = vector.broadcast %107 : f32 to vector<2x16x16xf32>
    %513 = arith.mulf %512, %511 : vector<2x16x16xf32>
    %c0_526 = arith.constant 0 : index
    %c3_527 = arith.constant 3 : index
    %c0_528 = arith.constant 0 : index
    %514 = vector.load %arg7[%c0_526, %c3_527, %c0_528] : memref<2x22x16xf32, #tpu.memory_space<vmem>>, vector<2x16x16xf32>
    %515 = vector.broadcast %156 : f32 to vector<2x16x16xf32>
    %516 = arith.mulf %515, %514 : vector<2x16x16xf32>
    %517 = arith.addf %513, %516 : vector<2x16x16xf32>
    %518 = arith.addf %482, %517 : vector<2x16x16xf32>
    %c0_529 = arith.constant 0 : index
    %c4_530 = arith.constant 4 : index
    %c0_531 = arith.constant 0 : index
    %519 = vector.load %arg6[%c0_529, %c4_530, %c0_531] : memref<2x22x16xf32, #tpu.memory_space<vmem>>, vector<2x16x16xf32>
    %520 = vector.broadcast %114 : f32 to vector<2x16x16xf32>
    %521 = arith.mulf %520, %519 : vector<2x16x16xf32>
    %c0_532 = arith.constant 0 : index
    %c4_533 = arith.constant 4 : index
    %c0_534 = arith.constant 0 : index
    %522 = vector.load %arg7[%c0_532, %c4_533, %c0_534] : memref<2x22x16xf32, #tpu.memory_space<vmem>>, vector<2x16x16xf32>
    %523 = vector.broadcast %163 : f32 to vector<2x16x16xf32>
    %524 = arith.mulf %523, %522 : vector<2x16x16xf32>
    %525 = arith.addf %521, %524 : vector<2x16x16xf32>
    %526 = arith.addf %494, %525 : vector<2x16x16xf32>
    %c0_535 = arith.constant 0 : index
    %c5_536 = arith.constant 5 : index
    %c0_537 = arith.constant 0 : index
    %527 = vector.load %arg6[%c0_535, %c5_536, %c0_537] : memref<2x22x16xf32, #tpu.memory_space<vmem>>, vector<2x16x16xf32>
    %528 = vector.broadcast %121 : f32 to vector<2x16x16xf32>
    %529 = arith.mulf %528, %527 : vector<2x16x16xf32>
    %c0_538 = arith.constant 0 : index
    %c5_539 = arith.constant 5 : index
    %c0_540 = arith.constant 0 : index
    %530 = vector.load %arg7[%c0_538, %c5_539, %c0_540] : memref<2x22x16xf32, #tpu.memory_space<vmem>>, vector<2x16x16xf32>
    %531 = vector.broadcast %170 : f32 to vector<2x16x16xf32>
    %532 = arith.mulf %531, %530 : vector<2x16x16xf32>
    %533 = arith.addf %529, %532 : vector<2x16x16xf32>
    %534 = arith.addf %502, %533 : vector<2x16x16xf32>
    %c0_541 = arith.constant 0 : index
    %c6_542 = arith.constant 6 : index
    %c0_543 = arith.constant 0 : index
    %535 = vector.load %arg6[%c0_541, %c6_542, %c0_543] : memref<2x22x16xf32, #tpu.memory_space<vmem>>, vector<2x16x16xf32>
    %536 = vector.broadcast %128 : f32 to vector<2x16x16xf32>
    %537 = arith.mulf %536, %535 : vector<2x16x16xf32>
    %c0_544 = arith.constant 0 : index
    %c6_545 = arith.constant 6 : index
    %c0_546 = arith.constant 0 : index
    %538 = vector.load %arg7[%c0_544, %c6_545, %c0_546] : memref<2x22x16xf32, #tpu.memory_space<vmem>>, vector<2x16x16xf32>
    %539 = vector.broadcast %177 : f32 to vector<2x16x16xf32>
    %540 = arith.mulf %539, %538 : vector<2x16x16xf32>
    %541 = arith.addf %537, %540 : vector<2x16x16xf32>
    %542 = arith.addf %510, %541 : vector<2x16x16xf32>
    %c0_547 = arith.constant 0 : index
    %c0_548 = arith.constant 0 : index
    %c6_549 = arith.constant 6 : index
    %543 = vector.load %arg4[%c0_547, %c0_548, %c6_549] : memref<2x22x22xf32, #tpu.memory_space<vmem>>, vector<2x22x16xf32>
    %c0_550 = arith.constant 0 : index
    %c0_551 = arith.constant 0 : index
    %c0_552 = arith.constant 0 : index
    %544 = vector.load %arg6[%c0_550, %c0_551, %c0_552] : memref<2x22x16xf32, #tpu.memory_space<vmem>>, vector<2x22x16xf32>
    tpu.vector_store %arg6[%c0_550, %c0_551, %c0_552], %543 {strides = array<i32>} : memref<2x22x16xf32, #tpu.memory_space<vmem>>, vector<2x22x16xf32>,
    %c0_553 = arith.constant 0 : index
    %c0_554 = arith.constant 0 : index
    %c6_555 = arith.constant 6 : index
    %545 = vector.load %arg5[%c0_553, %c0_554, %c6_555] : memref<2x22x22xf32, #tpu.memory_space<vmem>>, vector<2x22x16xf32>
    %c0_556 = arith.constant 0 : index
    %c0_557 = arith.constant 0 : index
    %c0_558 = arith.constant 0 : index
    %546 = vector.load %arg7[%c0_556, %c0_557, %c0_558] : memref<2x22x16xf32, #tpu.memory_space<vmem>>, vector<2x22x16xf32>
    tpu.vector_store %arg7[%c0_556, %c0_557, %c0_558], %545 {strides = array<i32>} : memref<2x22x16xf32, #tpu.memory_space<vmem>>, vector<2x22x16xf32>,
    %c0_559 = arith.constant 0 : index
    %c0_560 = arith.constant 0 : index
    %c0_561 = arith.constant 0 : index
    %547 = vector.load %arg6[%c0_559, %c0_560, %c0_561] : memref<2x22x16xf32, #tpu.memory_space<vmem>>, vector<2x16x16xf32>
    %548 = vector.broadcast %87 : f32 to vector<2x16x16xf32>
    %549 = arith.mulf %548, %547 : vector<2x16x16xf32>
    %c0_562 = arith.constant 0 : index
    %c0_563 = arith.constant 0 : index
    %c0_564 = arith.constant 0 : index
    %550 = vector.load %arg7[%c0_562, %c0_563, %c0_564] : memref<2x22x16xf32, #tpu.memory_space<vmem>>, vector<2x16x16xf32>
    %551 = vector.broadcast %136 : f32 to vector<2x16x16xf32>
    %552 = arith.mulf %551, %550 : vector<2x16x16xf32>
    %553 = arith.addf %549, %552 : vector<2x16x16xf32>
    %554 = arith.addf %518, %553 : vector<2x16x16xf32>
    %c0_565 = arith.constant 0 : index
    %c1_566 = arith.constant 1 : index
    %c0_567 = arith.constant 0 : index
    %555 = vector.load %arg6[%c0_565, %c1_566, %c0_567] : memref<2x22x16xf32, #tpu.memory_space<vmem>>, vector<2x16x16xf32>
    %556 = vector.broadcast %94 : f32 to vector<2x16x16xf32>
    %557 = arith.mulf %556, %555 : vector<2x16x16xf32>
    %c0_568 = arith.constant 0 : index
    %c1_569 = arith.constant 1 : index
    %c0_570 = arith.constant 0 : index
    %558 = vector.load %arg7[%c0_568, %c1_569, %c0_570] : memref<2x22x16xf32, #tpu.memory_space<vmem>>, vector<2x16x16xf32>
    %559 = vector.broadcast %143 : f32 to vector<2x16x16xf32>
    %560 = arith.mulf %559, %558 : vector<2x16x16xf32>
    %561 = arith.addf %557, %560 : vector<2x16x16xf32>
    %562 = arith.addf %526, %561 : vector<2x16x16xf32>
    %c0_571 = arith.constant 0 : index
    %c2_572 = arith.constant 2 : index
    %c0_573 = arith.constant 0 : index
    %563 = vector.load %arg6[%c0_571, %c2_572, %c0_573] : memref<2x22x16xf32, #tpu.memory_space<vmem>>, vector<2x16x16xf32>
    %564 = vector.broadcast %101 : f32 to vector<2x16x16xf32>
    %565 = arith.mulf %564, %563 : vector<2x16x16xf32>
    %c0_574 = arith.constant 0 : index
    %c2_575 = arith.constant 2 : index
    %c0_576 = arith.constant 0 : index
    %566 = vector.load %arg7[%c0_574, %c2_575, %c0_576] : memref<2x22x16xf32, #tpu.memory_space<vmem>>, vector<2x16x16xf32>
    %567 = vector.broadcast %150 : f32 to vector<2x16x16xf32>
    %568 = arith.mulf %567, %566 : vector<2x16x16xf32>
    %569 = arith.addf %565, %568 : vector<2x16x16xf32>
    %570 = arith.addf %534, %569 : vector<2x16x16xf32>
    %c0_577 = arith.constant 0 : index
    %c3_578 = arith.constant 3 : index
    %c0_579 = arith.constant 0 : index
    %571 = vector.load %arg6[%c0_577, %c3_578, %c0_579] : memref<2x22x16xf32, #tpu.memory_space<vmem>>, vector<2x16x16xf32>
    %572 = vector.broadcast %108 : f32 to vector<2x16x16xf32>
    %573 = arith.mulf %572, %571 : vector<2x16x16xf32>
    %c0_580 = arith.constant 0 : index
    %c3_581 = arith.constant 3 : index
    %c0_582 = arith.constant 0 : index
    %574 = vector.load %arg7[%c0_580, %c3_581, %c0_582] : memref<2x22x16xf32, #tpu.memory_space<vmem>>, vector<2x16x16xf32>
    %575 = vector.broadcast %157 : f32 to vector<2x16x16xf32>
    %576 = arith.mulf %575, %574 : vector<2x16x16xf32>
    %577 = arith.addf %573, %576 : vector<2x16x16xf32>
    %578 = arith.addf %542, %577 : vector<2x16x16xf32>
    %c0_583 = arith.constant 0 : index
    %c4_584 = arith.constant 4 : index
    %c0_585 = arith.constant 0 : index
    %579 = vector.load %arg6[%c0_583, %c4_584, %c0_585] : memref<2x22x16xf32, #tpu.memory_space<vmem>>, vector<2x16x16xf32>
    %580 = vector.broadcast %115 : f32 to vector<2x16x16xf32>
    %581 = arith.mulf %580, %579 : vector<2x16x16xf32>
    %c0_586 = arith.constant 0 : index
    %c4_587 = arith.constant 4 : index
    %c0_588 = arith.constant 0 : index
    %582 = vector.load %arg7[%c0_586, %c4_587, %c0_588] : memref<2x22x16xf32, #tpu.memory_space<vmem>>, vector<2x16x16xf32>
    %583 = vector.broadcast %164 : f32 to vector<2x16x16xf32>
    %584 = arith.mulf %583, %582 : vector<2x16x16xf32>
    %585 = arith.addf %581, %584 : vector<2x16x16xf32>
    %586 = arith.addf %554, %585 : vector<2x16x16xf32>
    %c0_589 = arith.constant 0 : index
    %c5_590 = arith.constant 5 : index
    %c0_591 = arith.constant 0 : index
    %587 = vector.load %arg6[%c0_589, %c5_590, %c0_591] : memref<2x22x16xf32, #tpu.memory_space<vmem>>, vector<2x16x16xf32>
    %588 = vector.broadcast %122 : f32 to vector<2x16x16xf32>
    %589 = arith.mulf %588, %587 : vector<2x16x16xf32>
    %c0_592 = arith.constant 0 : index
    %c5_593 = arith.constant 5 : index
    %c0_594 = arith.constant 0 : index
    %590 = vector.load %arg7[%c0_592, %c5_593, %c0_594] : memref<2x22x16xf32, #tpu.memory_space<vmem>>, vector<2x16x16xf32>
    %591 = vector.broadcast %171 : f32 to vector<2x16x16xf32>
    %592 = arith.mulf %591, %590 : vector<2x16x16xf32>
    %593 = arith.addf %589, %592 : vector<2x16x16xf32>
    %594 = arith.addf %562, %593 : vector<2x16x16xf32>
    %c0_595 = arith.constant 0 : index
    %c6_596 = arith.constant 6 : index
    %c0_597 = arith.constant 0 : index
    %595 = vector.load %arg6[%c0_595, %c6_596, %c0_597] : memref<2x22x16xf32, #tpu.memory_space<vmem>>, vector<2x16x16xf32>
    %596 = vector.broadcast %129 : f32 to vector<2x16x16xf32>
    %597 = arith.mulf %596, %595 : vector<2x16x16xf32>
    %c0_598 = arith.constant 0 : index
    %c6_599 = arith.constant 6 : index
    %c0_600 = arith.constant 0 : index
    %598 = vector.load %arg7[%c0_598, %c6_599, %c0_600] : memref<2x22x16xf32, #tpu.memory_space<vmem>>, vector<2x16x16xf32>
    %599 = vector.broadcast %178 : f32 to vector<2x16x16xf32>
    %600 = arith.mulf %599, %598 : vector<2x16x16xf32>
    %601 = arith.addf %597, %600 : vector<2x16x16xf32>
    %602 = arith.addf %570, %601 : vector<2x16x16xf32>
    %603 = arith.addf %602, %594 : vector<2x16x16xf32>
    %604 = arith.addf %586, %578 : vector<2x16x16xf32>
    %605 = arith.addf %603, %604 : vector<2x16x16xf32>
    %606 = arith.negf %605 : vector<2x16x16xf32>
    %607 = math.exp %606 : vector<2x16x16xf32>
    %cst_601 = arith.constant 1.000000e+00 : f32
    %608 = vector.broadcast %cst_601 : f32 to vector<2x16x16xf32>
    %609 = arith.addf %608, %607 : vector<2x16x16xf32>
    %610 = arith.divf %608, %609 : vector<2x16x16xf32>
    %c0_602 = arith.constant 0 : index
    %c0_603 = arith.constant 0 : index
    %c0_604 = arith.constant 0 : index
    %611 = vector.load %arg10[%c0_602, %c0_603, %c0_604] : memref<2x16x16xf32, #tpu.memory_space<vmem>>, vector<2x16x16xf32>
    tpu.vector_store %arg10[%c0_602, %c0_603, %c0_604], %610 {strides = array<i32>} : memref<2x16x16xf32, #tpu.memory_space<vmem>>, vector<2x16x16xf32>,
    %c0_605 = arith.constant 0 : index
    %c0_606 = arith.constant 0 : index
    %c0_607 = arith.constant 0 : index
    %612 = vector.load %arg10[%c0_605, %c0_606, %c0_607] : memref<2x16x16xf32, #tpu.memory_space<vmem>>, vector<2x1x16xf32>
    %c0_608 = arith.constant 0 : index
    %c0_609 = arith.constant 0 : index
    %c0_610 = arith.constant 0 : index
    %613 = vector.load %arg11[%c0_608, %c0_609, %c0_610] : memref<2x1x256xf32, #tpu.memory_space<vmem>>, vector<2x1x16xf32>
    tpu.vector_store %arg11[%c0_608, %c0_609, %c0_610], %612 {strides = array<i32>} : memref<2x1x256xf32, #tpu.memory_space<vmem>>, vector<2x1x16xf32>,
    %c0_611 = arith.constant 0 : index
    %c1_612 = arith.constant 1 : index
    %c0_613 = arith.constant 0 : index
    %614 = vector.load %arg10[%c0_611, %c1_612, %c0_613] : memref<2x16x16xf32, #tpu.memory_space<vmem>>, vector<2x1x16xf32>
    %c0_614 = arith.constant 0 : index
    %c0_615 = arith.constant 0 : index
    %c16_616 = arith.constant 16 : index
    %615 = vector.load %arg11[%c0_614, %c0_615, %c16_616] : memref<2x1x256xf32, #tpu.memory_space<vmem>>, vector<2x1x16xf32>
    tpu.vector_store %arg11[%c0_614, %c0_615, %c16_616], %614 {strides = array<i32>} : memref<2x1x256xf32, #tpu.memory_space<vmem>>, vector<2x1x16xf32>,
    %c0_617 = arith.constant 0 : index
    %c2_618 = arith.constant 2 : index
    %c0_619 = arith.constant 0 : index
    %616 = vector.load %arg10[%c0_617, %c2_618, %c0_619] : memref<2x16x16xf32, #tpu.memory_space<vmem>>, vector<2x1x16xf32>
    %c0_620 = arith.constant 0 : index
    %c0_621 = arith.constant 0 : index
    %c32_622 = arith.constant 32 : index
    %617 = vector.load %arg11[%c0_620, %c0_621, %c32_622] : memref<2x1x256xf32, #tpu.memory_space<vmem>>, vector<2x1x16xf32>
    tpu.vector_store %arg11[%c0_620, %c0_621, %c32_622], %616 {strides = array<i32>} : memref<2x1x256xf32, #tpu.memory_space<vmem>>, vector<2x1x16xf32>,
    %c0_623 = arith.constant 0 : index
    %c3_624 = arith.constant 3 : index
    %c0_625 = arith.constant 0 : index
    %618 = vector.load %arg10[%c0_623, %c3_624, %c0_625] : memref<2x16x16xf32, #tpu.memory_space<vmem>>, vector<2x1x16xf32>
    %c0_626 = arith.constant 0 : index
    %c0_627 = arith.constant 0 : index
    %c48_628 = arith.constant 48 : index
    %619 = vector.load %arg11[%c0_626, %c0_627, %c48_628] : memref<2x1x256xf32, #tpu.memory_space<vmem>>, vector<2x1x16xf32>
    tpu.vector_store %arg11[%c0_626, %c0_627, %c48_628], %618 {strides = array<i32>} : memref<2x1x256xf32, #tpu.memory_space<vmem>>, vector<2x1x16xf32>,
    %c0_629 = arith.constant 0 : index
    %c4_630 = arith.constant 4 : index
    %c0_631 = arith.constant 0 : index
    %620 = vector.load %arg10[%c0_629, %c4_630, %c0_631] : memref<2x16x16xf32, #tpu.memory_space<vmem>>, vector<2x1x16xf32>
    %c0_632 = arith.constant 0 : index
    %c0_633 = arith.constant 0 : index
    %c64_634 = arith.constant 64 : index
    %621 = vector.load %arg11[%c0_632, %c0_633, %c64_634] : memref<2x1x256xf32, #tpu.memory_space<vmem>>, vector<2x1x16xf32>
    tpu.vector_store %arg11[%c0_632, %c0_633, %c64_634], %620 {strides = array<i32>} : memref<2x1x256xf32, #tpu.memory_space<vmem>>, vector<2x1x16xf32>,
    %c0_635 = arith.constant 0 : index
    %c5_636 = arith.constant 5 : index
    %c0_637 = arith.constant 0 : index
    %622 = vector.load %arg10[%c0_635, %c5_636, %c0_637] : memref<2x16x16xf32, #tpu.memory_space<vmem>>, vector<2x1x16xf32>
    %c0_638 = arith.constant 0 : index
    %c0_639 = arith.constant 0 : index
    %c80_640 = arith.constant 80 : index
    %623 = vector.load %arg11[%c0_638, %c0_639, %c80_640] : memref<2x1x256xf32, #tpu.memory_space<vmem>>, vector<2x1x16xf32>
    tpu.vector_store %arg11[%c0_638, %c0_639, %c80_640], %622 {strides = array<i32>} : memref<2x1x256xf32, #tpu.memory_space<vmem>>, vector<2x1x16xf32>,
    %c0_641 = arith.constant 0 : index
    %c6_642 = arith.constant 6 : index
    %c0_643 = arith.constant 0 : index
    %624 = vector.load %arg10[%c0_641, %c6_642, %c0_643] : memref<2x16x16xf32, #tpu.memory_space<vmem>>, vector<2x1x16xf32>
    %c0_644 = arith.constant 0 : index
    %c0_645 = arith.constant 0 : index
    %c96_646 = arith.constant 96 : index
    %625 = vector.load %arg11[%c0_644, %c0_645, %c96_646] : memref<2x1x256xf32, #tpu.memory_space<vmem>>, vector<2x1x16xf32>
    tpu.vector_store %arg11[%c0_644, %c0_645, %c96_646], %624 {strides = array<i32>} : memref<2x1x256xf32, #tpu.memory_space<vmem>>, vector<2x1x16xf32>,
    %c0_647 = arith.constant 0 : index
    %c7_648 = arith.constant 7 : index
    %c0_649 = arith.constant 0 : index
    %626 = vector.load %arg10[%c0_647, %c7_648, %c0_649] : memref<2x16x16xf32, #tpu.memory_space<vmem>>, vector<2x1x16xf32>
    %c0_650 = arith.constant 0 : index
    %c0_651 = arith.constant 0 : index
    %c112_652 = arith.constant 112 : index
    %627 = vector.load %arg11[%c0_650, %c0_651, %c112_652] : memref<2x1x256xf32, #tpu.memory_space<vmem>>, vector<2x1x16xf32>
    tpu.vector_store %arg11[%c0_650, %c0_651, %c112_652], %626 {strides = array<i32>} : memref<2x1x256xf32, #tpu.memory_space<vmem>>, vector<2x1x16xf32>,
    %c0_653 = arith.constant 0 : index
    %c8_654 = arith.constant 8 : index
    %c0_655 = arith.constant 0 : index
    %628 = vector.load %arg10[%c0_653, %c8_654, %c0_655] : memref<2x16x16xf32, #tpu.memory_space<vmem>>, vector<2x1x16xf32>
    %c0_656 = arith.constant 0 : index
    %c0_657 = arith.constant 0 : index
    %c128_658 = arith.constant 128 : index
    %629 = vector.load %arg11[%c0_656, %c0_657, %c128_658] : memref<2x1x256xf32, #tpu.memory_space<vmem>>, vector<2x1x16xf32>
    tpu.vector_store %arg11[%c0_656, %c0_657, %c128_658], %628 {strides = array<i32>} : memref<2x1x256xf32, #tpu.memory_space<vmem>>, vector<2x1x16xf32>,
    %c0_659 = arith.constant 0 : index
    %c9_660 = arith.constant 9 : index
    %c0_661 = arith.constant 0 : index
    %630 = vector.load %arg10[%c0_659, %c9_660, %c0_661] : memref<2x16x16xf32, #tpu.memory_space<vmem>>, vector<2x1x16xf32>
    %c0_662 = arith.constant 0 : index
    %c0_663 = arith.constant 0 : index
    %c144_664 = arith.constant 144 : index
    %631 = vector.load %arg11[%c0_662, %c0_663, %c144_664] : memref<2x1x256xf32, #tpu.memory_space<vmem>>, vector<2x1x16xf32>
    tpu.vector_store %arg11[%c0_662, %c0_663, %c144_664], %630 {strides = array<i32>} : memref<2x1x256xf32, #tpu.memory_space<vmem>>, vector<2x1x16xf32>,
    %c0_665 = arith.constant 0 : index
    %c10_666 = arith.constant 10 : index
    %c0_667 = arith.constant 0 : index
    %632 = vector.load %arg10[%c0_665, %c10_666, %c0_667] : memref<2x16x16xf32, #tpu.memory_space<vmem>>, vector<2x1x16xf32>
    %c0_668 = arith.constant 0 : index
    %c0_669 = arith.constant 0 : index
    %c160_670 = arith.constant 160 : index
    %633 = vector.load %arg11[%c0_668, %c0_669, %c160_670] : memref<2x1x256xf32, #tpu.memory_space<vmem>>, vector<2x1x16xf32>
    tpu.vector_store %arg11[%c0_668, %c0_669, %c160_670], %632 {strides = array<i32>} : memref<2x1x256xf32, #tpu.memory_space<vmem>>, vector<2x1x16xf32>,
    %c0_671 = arith.constant 0 : index
    %c11_672 = arith.constant 11 : index
    %c0_673 = arith.constant 0 : index
    %634 = vector.load %arg10[%c0_671, %c11_672, %c0_673] : memref<2x16x16xf32, #tpu.memory_space<vmem>>, vector<2x1x16xf32>
    %c0_674 = arith.constant 0 : index
    %c0_675 = arith.constant 0 : index
    %c176_676 = arith.constant 176 : index
    %635 = vector.load %arg11[%c0_674, %c0_675, %c176_676] : memref<2x1x256xf32, #tpu.memory_space<vmem>>, vector<2x1x16xf32>
    tpu.vector_store %arg11[%c0_674, %c0_675, %c176_676], %634 {strides = array<i32>} : memref<2x1x256xf32, #tpu.memory_space<vmem>>, vector<2x1x16xf32>,
    %c0_677 = arith.constant 0 : index
    %c12_678 = arith.constant 12 : index
    %c0_679 = arith.constant 0 : index
    %636 = vector.load %arg10[%c0_677, %c12_678, %c0_679] : memref<2x16x16xf32, #tpu.memory_space<vmem>>, vector<2x1x16xf32>
    %c0_680 = arith.constant 0 : index
    %c0_681 = arith.constant 0 : index
    %c192_682 = arith.constant 192 : index
    %637 = vector.load %arg11[%c0_680, %c0_681, %c192_682] : memref<2x1x256xf32, #tpu.memory_space<vmem>>, vector<2x1x16xf32>
    tpu.vector_store %arg11[%c0_680, %c0_681, %c192_682], %636 {strides = array<i32>} : memref<2x1x256xf32, #tpu.memory_space<vmem>>, vector<2x1x16xf32>,
    %c0_683 = arith.constant 0 : index
    %c13_684 = arith.constant 13 : index
    %c0_685 = arith.constant 0 : index
    %638 = vector.load %arg10[%c0_683, %c13_684, %c0_685] : memref<2x16x16xf32, #tpu.memory_space<vmem>>, vector<2x1x16xf32>
    %c0_686 = arith.constant 0 : index
    %c0_687 = arith.constant 0 : index
    %c208_688 = arith.constant 208 : index
    %639 = vector.load %arg11[%c0_686, %c0_687, %c208_688] : memref<2x1x256xf32, #tpu.memory_space<vmem>>, vector<2x1x16xf32>
    tpu.vector_store %arg11[%c0_686, %c0_687, %c208_688], %638 {strides = array<i32>} : memref<2x1x256xf32, #tpu.memory_space<vmem>>, vector<2x1x16xf32>,
    %c0_689 = arith.constant 0 : index
    %c14_690 = arith.constant 14 : index
    %c0_691 = arith.constant 0 : index
    %640 = vector.load %arg10[%c0_689, %c14_690, %c0_691] : memref<2x16x16xf32, #tpu.memory_space<vmem>>, vector<2x1x16xf32>
    %c0_692 = arith.constant 0 : index
    %c0_693 = arith.constant 0 : index
    %c224_694 = arith.constant 224 : index
    %641 = vector.load %arg11[%c0_692, %c0_693, %c224_694] : memref<2x1x256xf32, #tpu.memory_space<vmem>>, vector<2x1x16xf32>
    tpu.vector_store %arg11[%c0_692, %c0_693, %c224_694], %640 {strides = array<i32>} : memref<2x1x256xf32, #tpu.memory_space<vmem>>, vector<2x1x16xf32>,
    %c0_695 = arith.constant 0 : index
    %c15_696 = arith.constant 15 : index
    %c0_697 = arith.constant 0 : index
    %642 = vector.load %arg10[%c0_695, %c15_696, %c0_697] : memref<2x16x16xf32, #tpu.memory_space<vmem>>, vector<2x1x16xf32>
    %c0_698 = arith.constant 0 : index
    %c0_699 = arith.constant 0 : index
    %c240_700 = arith.constant 240 : index
    %643 = vector.load %arg11[%c0_698, %c0_699, %c240_700] : memref<2x1x256xf32, #tpu.memory_space<vmem>>, vector<2x1x16xf32>
    tpu.vector_store %arg11[%c0_698, %c0_699, %c240_700], %642 {strides = array<i32>} : memref<2x1x256xf32, #tpu.memory_space<vmem>>, vector<2x1x16xf32>,
    %c0_701 = arith.constant 0 : index
    %c0_702 = arith.constant 0 : index
    %c0_703 = arith.constant 0 : index
    %644 = vector.load %arg11[%c0_701, %c0_702, %c0_703] : memref<2x1x256xf32, #tpu.memory_space<vmem>>, vector<2x1x256xf32>
    %c0_704 = arith.constant 0 : index
    %c0_705 = arith.constant 0 : index
    %c0_706 = arith.constant 0 : index
    %645 = vector.load %arg2[%c0_704, %c0_705, %c0_706] : memref<2x4x256xf32, #tpu.memory_space<vmem>>, vector<2x4x256xf32>
    %646 = vector.broadcast %644 : vector<2x1x256xf32> to vector<2x4x256xf32>
    %647 = arith.mulf %645, %646 : vector<2x4x256xf32>
    %c0_707 = arith.constant 0 : index
    %c0_708 = arith.constant 0 : index
    %c0_709 = arith.constant 0 : index
    %648 = vector.load %arg3[%c0_707, %c0_708, %c0_709] : memref<2x4x256xf32, #tpu.memory_space<vmem>>, vector<2x4x256xf32>
    tpu.vector_store %arg3[%c0_707, %c0_708, %c0_709], %647 {strides = array<i32>} : memref<2x4x256xf32, #tpu.memory_space<vmem>>, vector<2x4x256xf32>,
    return
  }
  func.func @transform_0(%arg0: i32, %arg1: memref<98xf32, #tpu.memory_space<smem>>) -> (i32, i32, i32) {
    %c0_i32 = arith.constant 0 : i32
    %c0_i32_0 = arith.constant 0 : i32
    %c0_i32_1 = arith.constant 0 : i32
    return %arg0, %c0_i32, %c0_i32_0 : i32, i32, i32
  }
  func.func @transform_1(%arg0: i32, %arg1: memref<98xf32, #tpu.memory_space<smem>>) -> (i32, i32, i32) {
    %c0_i32 = arith.constant 0 : i32
    %c0_i32_0 = arith.constant 0 : i32
    %c0_i32_1 = arith.constant 0 : i32
    return %arg0, %c0_i32, %c0_i32_0 : i32, i32, i32
  }
}

</mosaic_0001>

<llo_original>
// kernel: sam_forward.1
$region0: #{sam_forward.1}
  #allocation0 [shape = 'u32[]', space=smem, size = 0x4, offset = 0x4, fixed_abs, tag = 'smem constant byte address 0x4 - core index']
  #allocation1 [shape = 'u32[144,128]{1,0:T(1,128)}', space=vmem, size = 0x12000, scoped, tag = 'internal scratch']
  #allocation2 [shape = 'f32[2,22,22]{2,1,0:T(8,128)}', space=vmem, size = 0x6000, scoped, tag = 'scratch operand']
  #allocation3 [shape = 'f32[2,22,22]{2,1,0:T(8,128)}', space=vmem, size = 0x6000, scoped, tag = 'scratch operand']
  #allocation4 [shape = 'f32[2,22,16]{2,1,0:T(8,128)}', space=vmem, size = 0x6000, scoped, tag = 'scratch operand']
  #allocation5 [shape = 'f32[2,22,16]{2,1,0:T(8,128)}', space=vmem, size = 0x6000, scoped, tag = 'scratch operand']
  #allocation6 [shape = 'f32[2,1,256]{2,1,0:T(1,128)}', space=vmem, size = 0x800, scoped, tag = 'scratch operand']
  #allocation7 [shape = 'f32[2,1,256]{2,1,0:T(1,128)}', space=vmem, size = 0x800, scoped, tag = 'scratch operand']
  #allocation8 [shape = 'f32[2,16,16]{2,1,0:T(8,128)}', space=vmem, size = 0x4000, scoped, tag = 'scratch operand']
  #allocation9 [shape = 'f32[2,1,256]{2,1,0:T(1,128)}', space=vmem, size = 0x800, scoped, tag = 'scratch operand']
  #allocation10 [shape = 's32[1]{0}', space=sflag, size = 0x4, scoped, tag = 'scoped memory for sam_forward.1']
  #allocation11 [shape = 'u8[512]{0}', space=smem, size = 0x200, scoped, tag = 'prefetched SMEM operand 0']
  %s0 = inlined_call_operand.vmem [shape: f32[98], index: 0, kind: input, shape index: {}]
  %s1 = inlined_call_operand.vmem [shape: f32[2,4,256], index: 1, kind: input, shape index: {}]
  %s2 = inlined_call_operand.vmem [shape: f32[2,4,256], index: 2, kind: output, shape index: {}]
  %s3 = sld [smem:[#allocation0]]
  $region14: #{sam_forward.1} parent=0
    _
  %s5 = ssub.s32 1, %s3
  %s6 = scalar_select 0, %s5, %s3
  %s7 = sshll.u32 %s0, 4
  %s8 = int_to_ptr.vmem [resolvable:$true] %s7
  %10 = dma.vmem_to_smem %s8, 16, [#allocation11], [#allocation10]
  %11 = dma.done [#allocation10], 16
  %12 = sfence
  // Predicated region
  $region2: #{sam_forward.1} parent=0 // pred_check
    _
  $region3: #{sam_forward.1} parent=0 // pred_check_branch
    %14 = sbr.rel (0) target = $region5
  $region4: #{sam_forward.1} parent=0 // pred_region
    _
  $region5: #{sam_forward.1} parent=0 // pred_fallthru
    _
  %v15 = vld [vmem:[%s1] sm:$0xff]
  %v16 = vld [vmem:[%s1 + $0x8] sm:$0xff]
  %v19 = vcombine.high %v15, %v15
  %v20 = vcombine.high %v16, %v16
  %vm23 = vcmask 1043456
  %v24 = vsel %vm23, %v15, 0.0
  %v25 = vrot.slane %v24, 4
  %v26 = vadd.f32 %v24, %v25
  %v27 = vrot.slane %v26, 2
  %v28 = vadd.f32 %v26, %v27
  %v29 = vrot.slane %v28, 1
  %v30 = vadd.f32 %v28, %v29
  %v31 = vsel %vm23, %v19, 0.0
  %v32 = vrot.slane %v31, 4
  %v33 = vadd.f32 %v31, %v32
  %v34 = vrot.slane %v33, 2
  %v35 = vadd.f32 %v33, %v34
  %v36 = vrot.slane %v35, 1
  %v37 = vadd.f32 %v35, %v36
  %v38 = vsel %vm23, %v16, 0.0
  %v39 = vrot.slane %v38, 4
  %v40 = vadd.f32 %v38, %v39
  %v41 = vrot.slane %v40, 2
  %v42 = vadd.f32 %v40, %v41
  %v43 = vrot.slane %v42, 1
  %v44 = vadd.f32 %v42, %v43
  %v45 = vsel %vm23, %v20, 0.0
  %v46 = vrot.slane %v45, 4
  %v47 = vadd.f32 %v45, %v46
  %v48 = vrot.slane %v47, 2
  %v49 = vadd.f32 %v47, %v48
  %v50 = vrot.slane %v49, 1
  %v51 = vadd.f32 %v49, %v50
  %v52 = vsel %vm23, %v15, -inf
  %v53 = vrot.slane %v52, 4
  %v54 = vmax.f32 %v52, %v53
  %v55 = vrot.slane %v54, 2
  %v56 = vmax.f32 %v54, %v55
  %v57 = vrot.slane %v56, 1
  %v58 = vmax.f32 %v56, %v57
  %v59 = vsel %vm23, %v19, -inf
  %v60 = vrot.slane %v59, 4
  %v61 = vmax.f32 %v59, %v60
  %v62 = vrot.slane %v61, 2
  %v63 = vmax.f32 %v61, %v62
  %v64 = vrot.slane %v63, 1
  %v65 = vmax.f32 %v63, %v64
  %v66 = vsel %vm23, %v16, -inf
  %v67 = vrot.slane %v66, 4
  %v68 = vmax.f32 %v66, %v67
  %v69 = vrot.slane %v68, 2
  %v70 = vmax.f32 %v68, %v69
  %v71 = vrot.slane %v70, 1
  %v72 = vmax.f32 %v70, %v71
  %v73 = vsel %vm23, %v20, -inf
  %v74 = vrot.slane %v73, 4
  %v75 = vmax.f32 %v73, %v74
  %v76 = vrot.slane %v75, 2
  %v77 = vmax.f32 %v75, %v76
  %v78 = vrot.slane %v77, 1
  %v79 = vmax.f32 %v77, %v78
  %v84 = vcombine.low %v30, %v37
  %v86 = vunpack.c.l.s4 1966171168
  %v87 = vunpack.c.0.s8 %v86
  %v88 = vlaneseq
  %v89 = vshrl.u32 %v88, 7
  %v90 = vsub.s32 %v87, %v89
  %v91 = vrot.slane %v84, %v90
  %v93 = vunpack.c.l.s4 1966171168
  %v94 = vunpack.c.0.s8 %v93
  %v95 = vlaneseq
  %v96 = vshrl.u32 %v95, 7
  %v97 = vsub.s32 %v94, %v96
  %v98 = vrot.slane %v91, %v97
  %v99 = vcombine.low %v44, %v51
  %v101 = vunpack.c.l.s4 1966171168
  %v102 = vunpack.c.0.s8 %v101
  %v103 = vlaneseq
  %v104 = vshrl.u32 %v103, 7
  %v105 = vsub.s32 %v102, %v104
  %v106 = vrot.slane %v99, %v105
  %v108 = vunpack.c.l.s4 1966171168
  %v109 = vunpack.c.0.s8 %v108
  %v110 = vlaneseq
  %v111 = vshrl.u32 %v110, 7
  %v112 = vsub.s32 %v109, %v111
  %v113 = vrot.slane %v106, %v112
  %v116 = vlaneseq
  %vm117 = vcmp.ge.s32.totalorder %v116, 0
  %vm118 = vcmp.lt.s32.totalorder %v116, 256
  %vm119 = vmand %vm117, %vm118
  %120 = vst.msk [vmem:[#allocation6] sm:$0x3] %vm119, %v98
  %121 = vst.msk [vmem:[#allocation6 + $0x2] sm:$0x3] %vm119, %v113
  %v126 = vcombine.low %v58, %v65
  %v128 = vunpack.c.l.s4 1966171168
  %v129 = vunpack.c.0.s8 %v128
  %v130 = vlaneseq
  %v131 = vshrl.u32 %v130, 7
  %v132 = vsub.s32 %v129, %v131
  %v133 = vrot.slane %v126, %v132
  %v135 = vunpack.c.l.s4 1966171168
  %v136 = vunpack.c.0.s8 %v135
  %v137 = vlaneseq
  %v138 = vshrl.u32 %v137, 7
  %v139 = vsub.s32 %v136, %v138
  %v140 = vrot.slane %v133, %v139
  %v141 = vcombine.low %v72, %v79
  %v143 = vunpack.c.l.s4 1966171168
  %v144 = vunpack.c.0.s8 %v143
  %v145 = vlaneseq
  %v146 = vshrl.u32 %v145, 7
  %v147 = vsub.s32 %v144, %v146
  %v148 = vrot.slane %v141, %v147
  %v150 = vunpack.c.l.s4 1966171168
  %v151 = vunpack.c.0.s8 %v150
  %v152 = vlaneseq
  %v153 = vshrl.u32 %v152, 7
  %v154 = vsub.s32 %v151, %v153
  %v155 = vrot.slane %v148, %v154
  %158 = vst.msk [vmem:[#allocation7] sm:$0x3] %vm119, %v140
  %159 = vst.msk [vmem:[#allocation7 + $0x2] sm:$0x3] %vm119, %v155
  %vm160 = vcmask 174080
  %161 = vst.msk [vmem:[#allocation2] sm:$0x7] %vm160, 0.0
  %162 = vst.msk [vmem:[#allocation2 + $0x18] sm:$0x7] %vm160, 0.0
  %163 = vst.msk [vmem:[#allocation2 + $0x13] sm:$0x7] %vm160, 0.0
  %164 = vst.msk [vmem:[#allocation2 + $0x2b] sm:$0x7] %vm160, 0.0
  %vm165 = vcmask 23552
  %166 = vst.msk [vmem:[#allocation2 + $0x3] sm:$0xff] %vm165, 0.0
  %167 = vst.msk [vmem:[#allocation2 + $0xb] sm:$0xff] %vm165, 0.0
  %168 = vst.msk [vmem:[#allocation2 + $0x1b] sm:$0xff] %vm165, 0.0
  %169 = vst.msk [vmem:[#allocation2 + $0x23] sm:$0xff] %vm165, 0.0
  %vm170 = vcmask 179352
  %171 = vst.msk [vmem:[#allocation2 + $0x3] sm:$0xff] %vm170, 0.0
  %172 = vst.msk [vmem:[#allocation2 + $0xb] sm:$0xff] %vm170, 0.0
  %173 = vst.msk [vmem:[#allocation2 + $0x1b] sm:$0xff] %vm170, 0.0
  %174 = vst.msk [vmem:[#allocation2 + $0x23] sm:$0xff] %vm170, 0.0
  %175 = vst.msk [vmem:[#allocation3] sm:$0x7] %vm160, 0.0
  %176 = vst.msk [vmem:[#allocation3 + $0x18] sm:$0x7] %vm160, 0.0
  %177 = vst.msk [vmem:[#allocation3 + $0x13] sm:$0x7] %vm160, 0.0
  %178 = vst.msk [vmem:[#allocation3 + $0x2b] sm:$0x7] %vm160, 0.0
  %179 = vst.msk [vmem:[#allocation3 + $0x3] sm:$0xff] %vm165, 0.0
  %180 = vst.msk [vmem:[#allocation3 + $0xb] sm:$0xff] %vm165, 0.0
  %181 = vst.msk [vmem:[#allocation3 + $0x1b] sm:$0xff] %vm165, 0.0
  %182 = vst.msk [vmem:[#allocation3 + $0x23] sm:$0xff] %vm165, 0.0
  %183 = vst.msk [vmem:[#allocation3 + $0x3] sm:$0xff] %vm170, 0.0
  %184 = vst.msk [vmem:[#allocation3 + $0xb] sm:$0xff] %vm170, 0.0
  %185 = vst.msk [vmem:[#allocation3 + $0x1b] sm:$0xff] %vm170, 0.0
  %186 = vst.msk [vmem:[#allocation3 + $0x23] sm:$0xff] %vm170, 0.0
  %v187 = vld [vmem:[#allocation6] sm:$0x1]
  %v188 = vld [vmem:[#allocation6 + $0x2] sm:$0x1]
  %v191 = vlaneseq
  %v192 = vshrl.u32 %v191, 7
  %v193 = vsub.s32 0, %v192
  %v194 = vrot.slane %v187, %v193
  %v195 = vlaneseq
  %v196 = vshrl.u32 %v195, 7
  %v197 = vsub.s32 0, %v196
  %v198 = vrot.slane %v188, %v197
  %199 = vrot.lane.b32.xlu0 %v194, 3
  %v200 = vpop.permute.xlu0 %199
  %201 = vrot.lane.b32.xlu0 %v198, 3
  %v202 = vpop.permute.xlu0 %201
  %vm205 = vcmask 147480
  %206 = vst.msk [vmem:[#allocation2 + $0x3] sm:$0x1] %vm205, %v200
  %207 = vst.msk [vmem:[#allocation2 + $0x1b] sm:$0x1] %vm205, %v202
  %v208 = vld [vmem:[#allocation7] sm:$0x1]
  %v209 = vld [vmem:[#allocation7 + $0x2] sm:$0x1]
  %v212 = vlaneseq
  %v213 = vshrl.u32 %v212, 7
  %v214 = vsub.s32 0, %v213
  %v215 = vrot.slane %v208, %v214
  %v216 = vlaneseq
  %v217 = vshrl.u32 %v216, 7
  %v218 = vsub.s32 0, %v217
  %v219 = vrot.slane %v209, %v218
  %220 = vrot.lane.b32.xlu0 %v215, 3
  %v221 = vpop.permute.xlu0 %220
  %222 = vrot.lane.b32.xlu0 %v219, 3
  %v223 = vpop.permute.xlu0 %222
  %226 = vst.msk [vmem:[#allocation3 + $0x3] sm:$0x1] %vm205, %v221
  %227 = vst.msk [vmem:[#allocation3 + $0x1b] sm:$0x1] %vm205, %v223
  %v228 = vld [vmem:[#allocation6] sm:$0x1]
  %v229 = vld [vmem:[#allocation6 + $0x2] sm:$0x1]
  %v232 = vlaneseq
  %v233 = vshrl.u32 %v232, 7
  %v234 = vsub.s32 0, %v233
  %v235 = vrot.slane %v228, %v234
  %v236 = vlaneseq
  %v237 = vshrl.u32 %v236, 7
  %v238 = vsub.s32 0, %v237
  %v239 = vrot.slane %v229, %v238
  %240 = vrot.lane.b32.xlu0 %v235, 115
  %v241 = vpop.permute.xlu0 %240
  %242 = vrot.lane.b32.xlu0 %v239, 115
  %v243 = vpop.permute.xlu0 %242
  %246 = vst.msk [vmem:[#allocation2 + $0x4] sm:$0x1] %vm205, %v241
  %247 = vst.msk [vmem:[#allocation2 + $0x1c] sm:$0x1] %vm205, %v243
  %v248 = vld [vmem:[#allocation7] sm:$0x1]
  %v249 = vld [vmem:[#allocation7 + $0x2] sm:$0x1]
  %v252 = vlaneseq
  %v253 = vshrl.u32 %v252, 7
  %v254 = vsub.s32 0, %v253
  %v255 = vrot.slane %v248, %v254
  %v256 = vlaneseq
  %v257 = vshrl.u32 %v256, 7
  %v258 = vsub.s32 0, %v257
  %v259 = vrot.slane %v249, %v258
  %260 = vrot.lane.b32.xlu0 %v255, 115
  %v261 = vpop.permute.xlu0 %260
  %262 = vrot.lane.b32.xlu0 %v259, 115
  %v263 = vpop.permute.xlu0 %262
  %266 = vst.msk [vmem:[#allocation3 + $0x4] sm:$0x1] %vm205, %v261
  %267 = vst.msk [vmem:[#allocation3 + $0x1c] sm:$0x1] %vm205, %v263
  %v268 = vld [vmem:[#allocation6] sm:$0x1]
  %v269 = vld [vmem:[#allocation6 + $0x2] sm:$0x1]
  %v272 = vlaneseq
  %v273 = vshrl.u32 %v272, 7
  %v274 = vsub.s32 0, %v273
  %v275 = vrot.slane %v268, %v274
  %v276 = vlaneseq
  %v277 = vshrl.u32 %v276, 7
  %v278 = vsub.s32 0, %v277
  %v279 = vrot.slane %v269, %v278
  %280 = vrot.lane.b32.xlu0 %v275, 99
  %v281 = vpop.permute.xlu0 %280
  %282 = vrot.lane.b32.xlu0 %v279, 99
  %v283 = vpop.permute.xlu0 %282
  %286 = vst.msk [vmem:[#allocation2 + $0x5] sm:$0x1] %vm205, %v281
  %287 = vst.msk [vmem:[#allocation2 + $0x1d] sm:$0x1] %vm205, %v283
  %v288 = vld [vmem:[#allocation7] sm:$0x1]
  %v289 = vld [vmem:[#allocation7 + $0x2] sm:$0x1]
  %v292 = vlaneseq
  %v293 = vshrl.u32 %v292, 7
  %v294 = vsub.s32 0, %v293
  %v295 = vrot.slane %v288, %v294
  %v296 = vlaneseq
  %v297 = vshrl.u32 %v296, 7
  %v298 = vsub.s32 0, %v297
  %v299 = vrot.slane %v289, %v298
  %300 = vrot.lane.b32.xlu0 %v295, 99
  %v301 = vpop.permute.xlu0 %300
  %302 = vrot.lane.b32.xlu0 %v299, 99
  %v303 = vpop.permute.xlu0 %302
  %306 = vst.msk [vmem:[#allocation3 + $0x5] sm:$0x1] %vm205, %v301
  %307 = vst.msk [vmem:[#allocation3 + $0x1d] sm:$0x1] %vm205, %v303
  %v308 = vld [vmem:[#allocation6] sm:$0x1]
  %v309 = vld [vmem:[#allocation6 + $0x2] sm:$0x1]
  %v312 = vlaneseq
  %v313 = vshrl.u32 %v312, 7
  %v314 = vsub.s32 0, %v313
  %v315 = vrot.slane %v308, %v314
  %v316 = vlaneseq
  %v317 = vshrl.u32 %v316, 7
  %v318 = vsub.s32 0, %v317
  %v319 = vrot.slane %v309, %v318
  %320 = vrot.lane.b32.xlu0 %v315, 83
  %v321 = vpop.permute.xlu0 %320
  %322 = vrot.lane.b32.xlu0 %v319, 83
  %v323 = vpop.permute.xlu0 %322
  %326 = vst.msk [vmem:[#allocation2 + $0x6] sm:$0x1] %vm205, %v321
  %327 = vst.msk [vmem:[#allocation2 + $0x1e] sm:$0x1] %vm205, %v323
  %v328 = vld [vmem:[#allocation7] sm:$0x1]
  %v329 = vld [vmem:[#allocation7 + $0x2] sm:$0x1]
  %v332 = vlaneseq
  %v333 = vshrl.u32 %v332, 7
  %v334 = vsub.s32 0, %v333
  %v335 = vrot.slane %v328, %v334
  %v336 = vlaneseq
  %v337 = vshrl.u32 %v336, 7
  %v338 = vsub.s32 0, %v337
  %v339 = vrot.slane %v329, %v338
  %340 = vrot.lane.b32.xlu0 %v335, 83
  %v341 = vpop.permute.xlu0 %340
  %342 = vrot.lane.b32.xlu0 %v339, 83
  %v343 = vpop.permute.xlu0 %342
  %346 = vst.msk [vmem:[#allocation3 + $0x6] sm:$0x1] %vm205, %v341
  %347 = vst.msk [vmem:[#allocation3 + $0x1e] sm:$0x1] %vm205, %v343
  %v348 = vld [vmem:[#allocation6] sm:$0x1]
  %v349 = vld [vmem:[#allocation6 + $0x2] sm:$0x1]
  %v352 = vlaneseq
  %v353 = vshrl.u32 %v352, 7
  %v354 = vsub.s32 0, %v353
  %v355 = vrot.slane %v348, %v354
  %v356 = vlaneseq
  %v357 = vshrl.u32 %v356, 7
  %v358 = vsub.s32 0, %v357
  %v359 = vrot.slane %v349, %v358
  %360 = vrot.lane.b32.xlu0 %v355, 67
  %v361 = vpop.permute.xlu0 %360
  %362 = vrot.lane.b32.xlu0 %v359, 67
  %v363 = vpop.permute.xlu0 %362
  %366 = vst.msk [vmem:[#allocation2 + $0x7] sm:$0x1] %vm205, %v361
  %367 = vst.msk [vmem:[#allocation2 + $0x1f] sm:$0x1] %vm205, %v363
  %v368 = vld [vmem:[#allocation7] sm:$0x1]
  %v369 = vld [vmem:[#allocation7 + $0x2] sm:$0x1]
  %v372 = vlaneseq
  %v373 = vshrl.u32 %v372, 7
  %v374 = vsub.s32 0, %v373
  %v375 = vrot.slane %v368, %v374
  %v376 = vlaneseq
  %v377 = vshrl.u32 %v376, 7
  %v378 = vsub.s32 0, %v377
  %v379 = vrot.slane %v369, %v378
  %380 = vrot.lane.b32.xlu0 %v375, 67
  %v381 = vpop.permute.xlu0 %380
  %382 = vrot.lane.b32.xlu0 %v379, 67
  %v383 = vpop.permute.xlu0 %382
  %386 = vst.msk [vmem:[#allocation3 + $0x7] sm:$0x1] %vm205, %v381
  %387 = vst.msk [vmem:[#allocation3 + $0x1f] sm:$0x1] %vm205, %v383
  %v388 = vld [vmem:[#allocation6] sm:$0x1]
  %v389 = vld [vmem:[#allocation6 + $0x2] sm:$0x1]
  %v392 = vlaneseq
  %v393 = vshrl.u32 %v392, 7
  %v394 = vsub.s32 0, %v393
  %v395 = vrot.slane %v388, %v394
  %v396 = vlaneseq
  %v397 = vshrl.u32 %v396, 7
  %v398 = vsub.s32 0, %v397
  %v399 = vrot.slane %v389, %v398
  %400 = vrot.lane.b32.xlu0 %v395, 51
  %v401 = vpop.permute.xlu0 %400
  %402 = vrot.lane.b32.xlu0 %v399, 51
  %v403 = vpop.permute.xlu0 %402
  %406 = vst.msk [vmem:[#allocation2 + $0x8] sm:$0x1] %vm205, %v401
  %407 = vst.msk [vmem:[#allocation2 + $0x20] sm:$0x1] %vm205, %v403
  %v408 = vld [vmem:[#allocation7] sm:$0x1]
  %v409 = vld [vmem:[#allocation7 + $0x2] sm:$0x1]
  %v412 = vlaneseq
  %v413 = vshrl.u32 %v412, 7
  %v414 = vsub.s32 0, %v413
  %v415 = vrot.slane %v408, %v414
  %v416 = vlaneseq
  %v417 = vshrl.u32 %v416, 7
  %v418 = vsub.s32 0, %v417
  %v419 = vrot.slane %v409, %v418
  %420 = vrot.lane.b32.xlu0 %v415, 51
  %v421 = vpop.permute.xlu0 %420
  %422 = vrot.lane.b32.xlu0 %v419, 51
  %v423 = vpop.permute.xlu0 %422
  %426 = vst.msk [vmem:[#allocation3 + $0x8] sm:$0x1] %vm205, %v421
  %427 = vst.msk [vmem:[#allocation3 + $0x20] sm:$0x1] %vm205, %v423
  %v428 = vld [vmem:[#allocation6] sm:$0x1]
  %v429 = vld [vmem:[#allocation6 + $0x2] sm:$0x1]
  %v432 = vlaneseq
  %v433 = vshrl.u32 %v432, 7
  %v434 = vsub.s32 0, %v433
  %v435 = vrot.slane %v428, %v434
  %v436 = vlaneseq
  %v437 = vshrl.u32 %v436, 7
  %v438 = vsub.s32 0, %v437
  %v439 = vrot.slane %v429, %v438
  %440 = vrot.lane.b32.xlu0 %v435, 35
  %v441 = vpop.permute.xlu0 %440
  %442 = vrot.lane.b32.xlu0 %v439, 35
  %v443 = vpop.permute.xlu0 %442
  %446 = vst.msk [vmem:[#allocation2 + $0x9] sm:$0x1] %vm205, %v441
  %447 = vst.msk [vmem:[#allocation2 + $0x21] sm:$0x1] %vm205, %v443
  %v448 = vld [vmem:[#allocation7] sm:$0x1]
  %v449 = vld [vmem:[#allocation7 + $0x2] sm:$0x1]
  %v452 = vlaneseq
  %v453 = vshrl.u32 %v452, 7
  %v454 = vsub.s32 0, %v453
  %v455 = vrot.slane %v448, %v454
  %v456 = vlaneseq
  %v457 = vshrl.u32 %v456, 7
  %v458 = vsub.s32 0, %v457
  %v459 = vrot.slane %v449, %v458
  %460 = vrot.lane.b32.xlu0 %v455, 35
  %v461 = vpop.permute.xlu0 %460
  %462 = vrot.lane.b32.xlu0 %v459, 35
  %v463 = vpop.permute.xlu0 %462
  %466 = vst.msk [vmem:[#allocation3 + $0x9] sm:$0x1] %vm205, %v461
  %467 = vst.msk [vmem:[#allocation3 + $0x21] sm:$0x1] %vm205, %v463
  %v468 = vld [vmem:[#allocation6] sm:$0x1]
  %v469 = vld [vmem:[#allocation6 + $0x2] sm:$0x1]
  %v472 = vlaneseq
  %v473 = vshrl.u32 %v472, 7
  %v474 = vsub.s32 0, %v473
  %v475 = vrot.slane %v468, %v474
  %v476 = vlaneseq
  %v477 = vshrl.u32 %v476, 7
  %v478 = vsub.s32 0, %v477
  %v479 = vrot.slane %v469, %v478
  %480 = vrot.lane.b32.xlu0 %v475, 19
  %v481 = vpop.permute.xlu0 %480
  %482 = vrot.lane.b32.xlu0 %v479, 19
  %v483 = vpop.permute.xlu0 %482
  %486 = vst.msk [vmem:[#allocation2 + $0xa] sm:$0x1] %vm205, %v481
  %487 = vst.msk [vmem:[#allocation2 + $0x22] sm:$0x1] %vm205, %v483
  %v488 = vld [vmem:[#allocation7] sm:$0x1]
  %v489 = vld [vmem:[#allocation7 + $0x2] sm:$0x1]
  %v492 = vlaneseq
  %v493 = vshrl.u32 %v492, 7
  %v494 = vsub.s32 0, %v493
  %v495 = vrot.slane %v488, %v494
  %v496 = vlaneseq
  %v497 = vshrl.u32 %v496, 7
  %v498 = vsub.s32 0, %v497
  %v499 = vrot.slane %v489, %v498
  %500 = vrot.lane.b32.xlu0 %v495, 19
  %v501 = vpop.permute.xlu0 %500
  %502 = vrot.lane.b32.xlu0 %v499, 19
  %v503 = vpop.permute.xlu0 %502
  %506 = vst.msk [vmem:[#allocation3 + $0xa] sm:$0x1] %vm205, %v501
  %507 = vst.msk [vmem:[#allocation3 + $0x22] sm:$0x1] %vm205, %v503
  %v508 = vld [vmem:[#allocation6 + $0x1] sm:$0x1]
  %v509 = vld [vmem:[#allocation6 + $0x3] sm:$0x1]
  %v512 = vlaneseq
  %v513 = vshrl.u32 %v512, 7
  %v514 = vsub.s32 0, %v513
  %v515 = vrot.slane %v508, %v514
  %v516 = vlaneseq
  %v517 = vshrl.u32 %v516, 7
  %v518 = vsub.s32 0, %v517
  %v519 = vrot.slane %v509, %v518
  %520 = vrot.lane.b32.xlu0 %v515, 3
  %v521 = vpop.permute.xlu0 %520
  %522 = vrot.lane.b32.xlu0 %v519, 3
  %v523 = vpop.permute.xlu0 %522
  %526 = vst.msk [vmem:[#allocation2 + $0xb] sm:$0x1] %vm205, %v521
  %527 = vst.msk [vmem:[#allocation2 + $0x23] sm:$0x1] %vm205, %v523
  %v528 = vld [vmem:[#allocation7 + $0x1] sm:$0x1]
  %v529 = vld [vmem:[#allocation7 + $0x3] sm:$0x1]
  %v532 = vlaneseq
  %v533 = vshrl.u32 %v532, 7
  %v534 = vsub.s32 0, %v533
  %v535 = vrot.slane %v528, %v534
  %v536 = vlaneseq
  %v537 = vshrl.u32 %v536, 7
  %v538 = vsub.s32 0, %v537
  %v539 = vrot.slane %v529, %v538
  %540 = vrot.lane.b32.xlu0 %v535, 3
  %v541 = vpop.permute.xlu0 %540
  %542 = vrot.lane.b32.xlu0 %v539, 3
  %v543 = vpop.permute.xlu0 %542
  %546 = vst.msk [vmem:[#allocation3 + $0xb] sm:$0x1] %vm205, %v541
  %547 = vst.msk [vmem:[#allocation3 + $0x23] sm:$0x1] %vm205, %v543
  %v548 = vld [vmem:[#allocation6 + $0x1] sm:$0x1]
  %v549 = vld [vmem:[#allocation6 + $0x3] sm:$0x1]
  %v552 = vlaneseq
  %v553 = vshrl.u32 %v552, 7
  %v554 = vsub.s32 0, %v553
  %v555 = vrot.slane %v548, %v554
  %v556 = vlaneseq
  %v557 = vshrl.u32 %v556, 7
  %v558 = vsub.s32 0, %v557
  %v559 = vrot.slane %v549, %v558
  %560 = vrot.lane.b32.xlu0 %v555, 115
  %v561 = vpop.permute.xlu0 %560
  %562 = vrot.lane.b32.xlu0 %v559, 115
  %v563 = vpop.permute.xlu0 %562
  %566 = vst.msk [vmem:[#allocation2 + $0xc] sm:$0x1] %vm205, %v561
  %567 = vst.msk [vmem:[#allocation2 + $0x24] sm:$0x1] %vm205, %v563
  %v568 = vld [vmem:[#allocation7 + $0x1] sm:$0x1]
  %v569 = vld [vmem:[#allocation7 + $0x3] sm:$0x1]
  %v572 = vlaneseq
  %v573 = vshrl.u32 %v572, 7
  %v574 = vsub.s32 0, %v573
  %v575 = vrot.slane %v568, %v574
  %v576 = vlaneseq
  %v577 = vshrl.u32 %v576, 7
  %v578 = vsub.s32 0, %v577
  %v579 = vrot.slane %v569, %v578
  %580 = vrot.lane.b32.xlu0 %v575, 115
  %v581 = vpop.permute.xlu0 %580
  %582 = vrot.lane.b32.xlu0 %v579, 115
  %v583 = vpop.permute.xlu0 %582
  %586 = vst.msk [vmem:[#allocation3 + $0xc] sm:$0x1] %vm205, %v581
  %587 = vst.msk [vmem:[#allocation3 + $0x24] sm:$0x1] %vm205, %v583
  %v588 = vld [vmem:[#allocation6 + $0x1] sm:$0x1]
  %v589 = vld [vmem:[#allocation6 + $0x3] sm:$0x1]
  %v592 = vlaneseq
  %v593 = vshrl.u32 %v592, 7
  %v594 = vsub.s32 0, %v593
  %v595 = vrot.slane %v588, %v594
  %v596 = vlaneseq
  %v597 = vshrl.u32 %v596, 7
  %v598 = vsub.s32 0, %v597
  %v599 = vrot.slane %v589, %v598
  %600 = vrot.lane.b32.xlu0 %v595, 99
  %v601 = vpop.permute.xlu0 %600
  %602 = vrot.lane.b32.xlu0 %v599, 99
  %v603 = vpop.permute.xlu0 %602
  %606 = vst.msk [vmem:[#allocation2 + $0xd] sm:$0x1] %vm205, %v601
  %607 = vst.msk [vmem:[#allocation2 + $0x25] sm:$0x1] %vm205, %v603
  %v608 = vld [vmem:[#allocation7 + $0x1] sm:$0x1]
  %v609 = vld [vmem:[#allocation7 + $0x3] sm:$0x1]
  %v612 = vlaneseq
  %v613 = vshrl.u32 %v612, 7
  %v614 = vsub.s32 0, %v613
  %v615 = vrot.slane %v608, %v614
  %v616 = vlaneseq
  %v617 = vshrl.u32 %v616, 7
  %v618 = vsub.s32 0, %v617
  %v619 = vrot.slane %v609, %v618
  %620 = vrot.lane.b32.xlu0 %v615, 99
  %v621 = vpop.permute.xlu0 %620
  %622 = vrot.lane.b32.xlu0 %v619, 99
  %v623 = vpop.permute.xlu0 %622
  %626 = vst.msk [vmem:[#allocation3 + $0xd] sm:$0x1] %vm205, %v621
  %627 = vst.msk [vmem:[#allocation3 + $0x25] sm:$0x1] %vm205, %v623
  %v628 = vld [vmem:[#allocation6 + $0x1] sm:$0x1]
  %v629 = vld [vmem:[#allocation6 + $0x3] sm:$0x1]
  %v632 = vlaneseq
  %v633 = vshrl.u32 %v632, 7
  %v634 = vsub.s32 0, %v633
  %v635 = vrot.slane %v628, %v634
  %v636 = vlaneseq
  %v637 = vshrl.u32 %v636, 7
  %v638 = vsub.s32 0, %v637
  %v639 = vrot.slane %v629, %v638
  %640 = vrot.lane.b32.xlu0 %v635, 83
  %v641 = vpop.permute.xlu0 %640
  %642 = vrot.lane.b32.xlu0 %v639, 83
  %v643 = vpop.permute.xlu0 %642
  %646 = vst.msk [vmem:[#allocation2 + $0xe] sm:$0x1] %vm205, %v641
  %647 = vst.msk [vmem:[#allocation2 + $0x26] sm:$0x1] %vm205, %v643
  %v648 = vld [vmem:[#allocation7 + $0x1] sm:$0x1]
  %v649 = vld [vmem:[#allocation7 + $0x3] sm:$0x1]
  %v652 = vlaneseq
  %v653 = vshrl.u32 %v652, 7
  %v654 = vsub.s32 0, %v653
  %v655 = vrot.slane %v648, %v654
  %v656 = vlaneseq
  %v657 = vshrl.u32 %v656, 7
  %v658 = vsub.s32 0, %v657
  %v659 = vrot.slane %v649, %v658
  %660 = vrot.lane.b32.xlu0 %v655, 83
  %v661 = vpop.permute.xlu0 %660
  %662 = vrot.lane.b32.xlu0 %v659, 83
  %v663 = vpop.permute.xlu0 %662
  %666 = vst.msk [vmem:[#allocation3 + $0xe] sm:$0x1] %vm205, %v661
  %667 = vst.msk [vmem:[#allocation3 + $0x26] sm:$0x1] %vm205, %v663
  %v668 = vld [vmem:[#allocation6 + $0x1] sm:$0x1]
  %v669 = vld [vmem:[#allocation6 + $0x3] sm:$0x1]
  %v672 = vlaneseq
  %v673 = vshrl.u32 %v672, 7
  %v674 = vsub.s32 0, %v673
  %v675 = vrot.slane %v668, %v674
  %v676 = vlaneseq
  %v677 = vshrl.u32 %v676, 7
  %v678 = vsub.s32 0, %v677
  %v679 = vrot.slane %v669, %v678
  %680 = vrot.lane.b32.xlu0 %v675, 67
  %v681 = vpop.permute.xlu0 %680
  %682 = vrot.lane.b32.xlu0 %v679, 67
  %v683 = vpop.permute.xlu0 %682
  %686 = vst.msk [vmem:[#allocation2 + $0xf] sm:$0x1] %vm205, %v681
  %687 = vst.msk [vmem:[#allocation2 + $0x27] sm:$0x1] %vm205, %v683
  %v688 = vld [vmem:[#allocation7 + $0x1] sm:$0x1]
  %v689 = vld [vmem:[#allocation7 + $0x3] sm:$0x1]
  %v692 = vlaneseq
  %v693 = vshrl.u32 %v692, 7
  %v694 = vsub.s32 0, %v693
  %v695 = vrot.slane %v688, %v694
  %v696 = vlaneseq
  %v697 = vshrl.u32 %v696, 7
  %v698 = vsub.s32 0, %v697
  %v699 = vrot.slane %v689, %v698
  %700 = vrot.lane.b32.xlu0 %v695, 67
  %v701 = vpop.permute.xlu0 %700
  %702 = vrot.lane.b32.xlu0 %v699, 67
  %v703 = vpop.permute.xlu0 %702
  %706 = vst.msk [vmem:[#allocation3 + $0xf] sm:$0x1] %vm205, %v701
  %707 = vst.msk [vmem:[#allocation3 + $0x27] sm:$0x1] %vm205, %v703
  %v708 = vld [vmem:[#allocation6 + $0x1] sm:$0x1]
  %v709 = vld [vmem:[#allocation6 + $0x3] sm:$0x1]
  %v712 = vlaneseq
  %v713 = vshrl.u32 %v712, 7
  %v714 = vsub.s32 0, %v713
  %v715 = vrot.slane %v708, %v714
  %v716 = vlaneseq
  %v717 = vshrl.u32 %v716, 7
  %v718 = vsub.s32 0, %v717
  %v719 = vrot.slane %v709, %v718
  %720 = vrot.lane.b32.xlu0 %v715, 51
  %v721 = vpop.permute.xlu0 %720
  %722 = vrot.lane.b32.xlu0 %v719, 51
  %v723 = vpop.permute.xlu0 %722
  %726 = vst.msk [vmem:[#allocation2 + $0x10] sm:$0x1] %vm205, %v721
  %727 = vst.msk [vmem:[#allocation2 + $0x28] sm:$0x1] %vm205, %v723
  %v728 = vld [vmem:[#allocation7 + $0x1] sm:$0x1]
  %v729 = vld [vmem:[#allocation7 + $0x3] sm:$0x1]
  %v732 = vlaneseq
  %v733 = vshrl.u32 %v732, 7
  %v734 = vsub.s32 0, %v733
  %v735 = vrot.slane %v728, %v734
  %v736 = vlaneseq
  %v737 = vshrl.u32 %v736, 7
  %v738 = vsub.s32 0, %v737
  %v739 = vrot.slane %v729, %v738
  %740 = vrot.lane.b32.xlu0 %v735, 51
  %v741 = vpop.permute.xlu0 %740
  %742 = vrot.lane.b32.xlu0 %v739, 51
  %v743 = vpop.permute.xlu0 %742
  %746 = vst.msk [vmem:[#allocation3 + $0x10] sm:$0x1] %vm205, %v741
  %747 = vst.msk [vmem:[#allocation3 + $0x28] sm:$0x1] %vm205, %v743
  %v748 = vld [vmem:[#allocation6 + $0x1] sm:$0x1]
  %v749 = vld [vmem:[#allocation6 + $0x3] sm:$0x1]
  %v752 = vlaneseq
  %v753 = vshrl.u32 %v752, 7
  %v754 = vsub.s32 0, %v753
  %v755 = vrot.slane %v748, %v754
  %v756 = vlaneseq
  %v757 = vshrl.u32 %v756, 7
  %v758 = vsub.s32 0, %v757
  %v759 = vrot.slane %v749, %v758
  %760 = vrot.lane.b32.xlu0 %v755, 35
  %v761 = vpop.permute.xlu0 %760
  %762 = vrot.lane.b32.xlu0 %v759, 35
  %v763 = vpop.permute.xlu0 %762
  %766 = vst.msk [vmem:[#allocation2 + $0x11] sm:$0x1] %vm205, %v761
  %767 = vst.msk [vmem:[#allocation2 + $0x29] sm:$0x1] %vm205, %v763
  %v768 = vld [vmem:[#allocation7 + $0x1] sm:$0x1]
  %v769 = vld [vmem:[#allocation7 + $0x3] sm:$0x1]
  %v772 = vlaneseq
  %v773 = vshrl.u32 %v772, 7
  %v774 = vsub.s32 0, %v773
  %v775 = vrot.slane %v768, %v774
  %v776 = vlaneseq
  %v777 = vshrl.u32 %v776, 7
  %v778 = vsub.s32 0, %v777
  %v779 = vrot.slane %v769, %v778
  %780 = vrot.lane.b32.xlu0 %v775, 35
  %v781 = vpop.permute.xlu0 %780
  %782 = vrot.lane.b32.xlu0 %v779, 35
  %v783 = vpop.permute.xlu0 %782
  %786 = vst.msk [vmem:[#allocation3 + $0x11] sm:$0x1] %vm205, %v781
  %787 = vst.msk [vmem:[#allocation3 + $0x29] sm:$0x1] %vm205, %v783
  %v788 = vld [vmem:[#allocation6 + $0x1] sm:$0x1]
  %v789 = vld [vmem:[#allocation6 + $0x3] sm:$0x1]
  %v792 = vlaneseq
  %v793 = vshrl.u32 %v792, 7
  %v794 = vsub.s32 0, %v793
  %v795 = vrot.slane %v788, %v794
  %v796 = vlaneseq
  %v797 = vshrl.u32 %v796, 7
  %v798 = vsub.s32 0, %v797
  %v799 = vrot.slane %v789, %v798
  %800 = vrot.lane.b32.xlu0 %v795, 19
  %v801 = vpop.permute.xlu0 %800
  %802 = vrot.lane.b32.xlu0 %v799, 19
  %v803 = vpop.permute.xlu0 %802
  %806 = vst.msk [vmem:[#allocation2 + $0x12] sm:$0x1] %vm205, %v801
  %807 = vst.msk [vmem:[#allocation2 + $0x2a] sm:$0x1] %vm205, %v803
  %v808 = vld [vmem:[#allocation7 + $0x1] sm:$0x1]
  %v809 = vld [vmem:[#allocation7 + $0x3] sm:$0x1]
  %v812 = vlaneseq
  %v813 = vshrl.u32 %v812, 7
  %v814 = vsub.s32 0, %v813
  %v815 = vrot.slane %v808, %v814
  %v816 = vlaneseq
  %v817 = vshrl.u32 %v816, 7
  %v818 = vsub.s32 0, %v817
  %v819 = vrot.slane %v809, %v818
  %820 = vrot.lane.b32.xlu0 %v815, 19
  %v821 = vpop.permute.xlu0 %820
  %822 = vrot.lane.b32.xlu0 %v819, 19
  %v823 = vpop.permute.xlu0 %822
  %826 = vst.msk [vmem:[#allocation3 + $0x12] sm:$0x1] %vm205, %v821
  %827 = vst.msk [vmem:[#allocation3 + $0x2a] sm:$0x1] %vm205, %v823
  %s828 = sld [smem:[#allocation11]]
  %s829 = sld [smem:[#allocation11 + $0x1]]
  %s830 = sld [smem:[#allocation11 + $0x2]]
  %s831 = sld [smem:[#allocation11 + $0x3]]
  %s832 = sld [smem:[#allocation11 + $0x4]]
  %s833 = sld [smem:[#allocation11 + $0x5]]
  %s834 = sld [smem:[#allocation11 + $0x6]]
  %s835 = sld [smem:[#allocation11 + $0x7]]
  %s836 = sld [smem:[#allocation11 + $0x8]]
  %s837 = sld [smem:[#allocation11 + $0x9]]
  %s838 = sld [smem:[#allocation11 + $0xa]]
  %s839 = sld [smem:[#allocation11 + $0xb]]
  %s840 = sld [smem:[#allocation11 + $0xc]]
  %s841 = sld [smem:[#allocation11 + $0xd]]
  %s842 = sld [smem:[#allocation11 + $0xe]]
  %s843 = sld [smem:[#allocation11 + $0xf]]
  %s844 = sld [smem:[#allocation11 + $0x10]]
  %s845 = sld [smem:[#allocation11 + $0x11]]
  %s846 = sld [smem:[#allocation11 + $0x12]]
  %s847 = sld [smem:[#allocation11 + $0x13]]
  %s848 = sld [smem:[#allocation11 + $0x14]]
  %s849 = sld [smem:[#allocation11 + $0x15]]
  %s850 = sld [smem:[#allocation11 + $0x16]]
  %s851 = sld [smem:[#allocation11 + $0x17]]
  %s852 = sld [smem:[#allocation11 + $0x18]]
  %s853 = sld [smem:[#allocation11 + $0x19]]
  %s854 = sld [smem:[#allocation11 + $0x1a]]
  %s855 = sld [smem:[#allocation11 + $0x1b]]
  %s856 = sld [smem:[#allocation11 + $0x1c]]
  %s857 = sld [smem:[#allocation11 + $0x1d]]
  %s858 = sld [smem:[#allocation11 + $0x1e]]
  %s859 = sld [smem:[#allocation11 + $0x1f]]
  %s860 = sld [smem:[#allocation11 + $0x20]]
  %s861 = sld [smem:[#allocation11 + $0x21]]
  %s862 = sld [smem:[#allocation11 + $0x22]]
  %s863 = sld [smem:[#allocation11 + $0x23]]
  %s864 = sld [smem:[#allocation11 + $0x24]]
  %s865 = sld [smem:[#allocation11 + $0x25]]
  %s866 = sld [smem:[#allocation11 + $0x26]]
  %s867 = sld [smem:[#allocation11 + $0x27]]
  %s868 = sld [smem:[#allocation11 + $0x28]]
  %s869 = sld [smem:[#allocation11 + $0x29]]
  %s870 = sld [smem:[#allocation11 + $0x2a]]
  %s871 = sld [smem:[#allocation11 + $0x2b]]
  %s872 = sld [smem:[#allocation11 + $0x2c]]
  %s873 = sld [smem:[#allocation11 + $0x2d]]
  %s874 = sld [smem:[#allocation11 + $0x2e]]
  %s875 = sld [smem:[#allocation11 + $0x2f]]
  %s876 = sld [smem:[#allocation11 + $0x30]]
  %s877 = sld [smem:[#allocation11 + $0x31]]
  %s878 = sld [smem:[#allocation11 + $0x32]]
  %s879 = sld [smem:[#allocation11 + $0x33]]
  %s880 = sld [smem:[#allocation11 + $0x34]]
  %s881 = sld [smem:[#allocation11 + $0x35]]
  %s882 = sld [smem:[#allocation11 + $0x36]]
  %s883 = sld [smem:[#allocation11 + $0x37]]
  %s884 = sld [smem:[#allocation11 + $0x38]]
  %s885 = sld [smem:[#allocation11 + $0x39]]
  %s886 = sld [smem:[#allocation11 + $0x3a]]
  %s887 = sld [smem:[#allocation11 + $0x3b]]
  %s888 = sld [smem:[#allocation11 + $0x3c]]
  %s889 = sld [smem:[#allocation11 + $0x3d]]
  %s890 = sld [smem:[#allocation11 + $0x3e]]
  %s891 = sld [smem:[#allocation11 + $0x3f]]
  %s892 = sld [smem:[#allocation11 + $0x40]]
  %s893 = sld [smem:[#allocation11 + $0x41]]
  %s894 = sld [smem:[#allocation11 + $0x42]]
  %s895 = sld [smem:[#allocation11 + $0x43]]
  %s896 = sld [smem:[#allocation11 + $0x44]]
  %s897 = sld [smem:[#allocation11 + $0x45]]
  %s898 = sld [smem:[#allocation11 + $0x46]]
  %s899 = sld [smem:[#allocation11 + $0x47]]
  %s900 = sld [smem:[#allocation11 + $0x48]]
  %s901 = sld [smem:[#allocation11 + $0x49]]
  %s902 = sld [smem:[#allocation11 + $0x4a]]
  %s903 = sld [smem:[#allocation11 + $0x4b]]
  %s904 = sld [smem:[#allocation11 + $0x4c]]
  %s905 = sld [smem:[#allocation11 + $0x4d]]
  %s906 = sld [smem:[#allocation11 + $0x4e]]
  %s907 = sld [smem:[#allocation11 + $0x4f]]
  %s908 = sld [smem:[#allocation11 + $0x50]]
  %s909 = sld [smem:[#allocation11 + $0x51]]
  %s910 = sld [smem:[#allocation11 + $0x52]]
  %s911 = sld [smem:[#allocation11 + $0x53]]
  %s912 = sld [smem:[#allocation11 + $0x54]]
  %s913 = sld [smem:[#allocation11 + $0x55]]
  %s914 = sld [smem:[#allocation11 + $0x56]]
  %s915 = sld [smem:[#allocation11 + $0x57]]
  %s916 = sld [smem:[#allocation11 + $0x58]]
  %s917 = sld [smem:[#allocation11 + $0x59]]
  %s918 = sld [smem:[#allocation11 + $0x5a]]
  %s919 = sld [smem:[#allocation11 + $0x5b]]
  %s920 = sld [smem:[#allocation11 + $0x5c]]
  %s921 = sld [smem:[#allocation11 + $0x5d]]
  %s922 = sld [smem:[#allocation11 + $0x5e]]
  %s923 = sld [smem:[#allocation11 + $0x5f]]
  %s924 = sld [smem:[#allocation11 + $0x60]]
  %s925 = sld [smem:[#allocation11 + $0x61]]
  %v926 = vld [vmem:[#allocation2] sm:$0xff]
  %v927 = vld [vmem:[#allocation2 + $0x8] sm:$0xff]
  %v928 = vld [vmem:[#allocation2 + $0x10] sm:$0x3f]
  %v929 = vld [vmem:[#allocation2 + $0x18] sm:$0xff]
  %v930 = vld [vmem:[#allocation2 + $0x20] sm:$0xff]
  %v931 = vld [vmem:[#allocation2 + $0x28] sm:$0x3f]
  %vm932 = vcmask 130048
  %933 = vst.msk [vmem:[#allocation4] sm:$0xff] %vm932, %v926
  %934 = vst.msk [vmem:[#allocation4 + $0x8] sm:$0xff] %vm932, %v927
  %vm935 = vcmask 128000
  %936 = vst.msk [vmem:[#allocation4 + $0x10] sm:$0x3f] %vm935, %v928
  %937 = vst.msk [vmem:[#allocation4 + $0x18] sm:$0xff] %vm932, %v929
  %938 = vst.msk [vmem:[#allocation4 + $0x20] sm:$0xff] %vm932, %v930
  %939 = vst.msk [vmem:[#allocation4 + $0x28] sm:$0x3f] %vm935, %v931
  %v940 = vld [vmem:[#allocation3] sm:$0xff]
  %v941 = vld [vmem:[#allocation3 + $0x8] sm:$0xff]
  %v942 = vld [vmem:[#allocation3 + $0x10] sm:$0x3f]
  %v943 = vld [vmem:[#allocation3 + $0x18] sm:$0xff]
  %v944 = vld [vmem:[#allocation3 + $0x20] sm:$0xff]
  %v945 = vld [vmem:[#allocation3 + $0x28] sm:$0x3f]
  %946 = vst.msk [vmem:[#allocation5] sm:$0xff] %vm932, %v940
  %947 = vst.msk [vmem:[#allocation5 + $0x8] sm:$0xff] %vm932, %v941
  %948 = vst.msk [vmem:[#allocation5 + $0x10] sm:$0x3f] %vm935, %v942
  %949 = vst.msk [vmem:[#allocation5 + $0x18] sm:$0xff] %vm932, %v943
  %950 = vst.msk [vmem:[#allocation5 + $0x20] sm:$0xff] %vm932, %v944
  %951 = vst.msk [vmem:[#allocation5 + $0x28] sm:$0x3f] %vm935, %v945
  %v952 = vld [vmem:[#allocation4] sm:$0xff]
  %v953 = vld [vmem:[#allocation4 + $0x8] sm:$0xff]
  %v954 = vld [vmem:[#allocation4 + $0x18] sm:$0xff]
  %v955 = vld [vmem:[#allocation4 + $0x20] sm:$0xff]
  %v956 = vstv %s828
  %v957 = vmul.f32 %v956, %v952
  %v958 = vmul.f32 %v956, %v953
  %v959 = vmul.f32 %v956, %v954
  %v960 = vmul.f32 %v956, %v955
  %v961 = vld [vmem:[#allocation5] sm:$0xff]
  %v962 = vld [vmem:[#allocation5 + $0x8] sm:$0xff]
  %v963 = vld [vmem:[#allocation5 + $0x18] sm:$0xff]
  %v964 = vld [vmem:[#allocation5 + $0x20] sm:$0xff]
  %v965 = vstv %s877
  %v966 = vmul.f32 %v965, %v961
  %v967 = vmul.f32 %v965, %v962
  %v968 = vmul.f32 %v965, %v963
  %v969 = vmul.f32 %v965, %v964
  %v970 = vadd.f32 %v957, %v966
  %v971 = vadd.f32 %v958, %v967
  %v972 = vadd.f32 %v959, %v968
  %v973 = vadd.f32 %v960, %v969
  %v974 = vadd.f32 %v970, 0.0
  %v975 = vadd.f32 %v971, 0.0
  %v976 = vadd.f32 %v972, 0.0
  %v977 = vadd.f32 %v973, 0.0
  %v978 = vld [vmem:[#allocation4 + $0x1] sm:$0xff]
  %v979 = vld [vmem:[#allocation4 + $0x9] sm:$0xff]
  %v980 = vld [vmem:[#allocation4 + $0x19] sm:$0xff]
  %v981 = vld [vmem:[#allocation4 + $0x21] sm:$0xff]
  %v982 = vstv %s835
  %v983 = vmul.f32 %v982, %v978
  %v984 = vmul.f32 %v982, %v979
  %v985 = vmul.f32 %v982, %v980
  %v986 = vmul.f32 %v982, %v981
  %v987 = vld [vmem:[#allocation5 + $0x1] sm:$0xff]
  %v988 = vld [vmem:[#allocation5 + $0x9] sm:$0xff]
  %v989 = vld [vmem:[#allocation5 + $0x19] sm:$0xff]
  %v990 = vld [vmem:[#allocation5 + $0x21] sm:$0xff]
  %v991 = vstv %s884
  %v992 = vmul.f32 %v991, %v987
  %v993 = vmul.f32 %v991, %v988
  %v994 = vmul.f32 %v991, %v989
  %v995 = vmul.f32 %v991, %v990
  %v996 = vadd.f32 %v983, %v992
  %v997 = vadd.f32 %v984, %v993
  %v998 = vadd.f32 %v985, %v994
  %v999 = vadd.f32 %v986, %v995
  %v1000 = vadd.f32 %v996, 0.0
  %v1001 = vadd.f32 %v997, 0.0
  %v1002 = vadd.f32 %v998, 0.0
  %v1003 = vadd.f32 %v999, 0.0
  %v1004 = vld [vmem:[#allocation4 + $0x2] sm:$0xff]
  %v1005 = vld [vmem:[#allocation4 + $0xa] sm:$0xff]
  %v1006 = vld [vmem:[#allocation4 + $0x1a] sm:$0xff]
  %v1007 = vld [vmem:[#allocation4 + $0x22] sm:$0xff]
  %v1008 = vstv %s842
  %v1009 = vmul.f32 %v1008, %v1004
  %v1010 = vmul.f32 %v1008, %v1005
  %v1011 = vmul.f32 %v1008, %v1006
  %v1012 = vmul.f32 %v1008, %v1007
  %v1013 = vld [vmem:[#allocation5 + $0x2] sm:$0xff]
  %v1014 = vld [vmem:[#allocation5 + $0xa] sm:$0xff]
  %v1015 = vld [vmem:[#allocation5 + $0x1a] sm:$0xff]
  %v1016 = vld [vmem:[#allocation5 + $0x22] sm:$0xff]
  %v1017 = vstv %s891
  %v1018 = vmul.f32 %v1017, %v1013
  %v1019 = vmul.f32 %v1017, %v1014
  %v1020 = vmul.f32 %v1017, %v1015
  %v1021 = vmul.f32 %v1017, %v1016
  %v1022 = vadd.f32 %v1009, %v1018
  %v1023 = vadd.f32 %v1010, %v1019
  %v1024 = vadd.f32 %v1011, %v1020
  %v1025 = vadd.f32 %v1012, %v1021
  %v1026 = vadd.f32 %v1022, 0.0
  %v1027 = vadd.f32 %v1023, 0.0
  %v1028 = vadd.f32 %v1024, 0.0
  %v1029 = vadd.f32 %v1025, 0.0
  %v1030 = vld [vmem:[#allocation4 + $0x3] sm:$0xff]
  %v1031 = vld [vmem:[#allocation4 + $0xb] sm:$0xff]
  %v1032 = vld [vmem:[#allocation4 + $0x1b] sm:$0xff]
  %v1033 = vld [vmem:[#allocation4 + $0x23] sm:$0xff]
  %v1034 = vstv %s849
  %v1035 = vmul.f32 %v1034, %v1030
  %v1036 = vmul.f32 %v1034, %v1031
  %v1037 = vmul.f32 %v1034, %v1032
  %v1038 = vmul.f32 %v1034, %v1033
  %v1039 = vld [vmem:[#allocation5 + $0x3] sm:$0xff]
  %v1040 = vld [vmem:[#allocation5 + $0xb] sm:$0xff]
  %v1041 = vld [vmem:[#allocation5 + $0x1b] sm:$0xff]
  %v1042 = vld [vmem:[#allocation5 + $0x23] sm:$0xff]
  %v1043 = vstv %s898
  %v1044 = vmul.f32 %v1043, %v1039
  %v1045 = vmul.f32 %v1043, %v1040
  %v1046 = vmul.f32 %v1043, %v1041
  %v1047 = vmul.f32 %v1043, %v1042
  %v1048 = vadd.f32 %v1035, %v1044
  %v1049 = vadd.f32 %v1036, %v1045
  %v1050 = vadd.f32 %v1037, %v1046
  %v1051 = vadd.f32 %v1038, %v1047
  %v1052 = vadd.f32 %v1048, 0.0
  %v1053 = vadd.f32 %v1049, 0.0
  %v1054 = vadd.f32 %v1050, 0.0
  %v1055 = vadd.f32 %v1051, 0.0
  %v1056 = vld [vmem:[#allocation4 + $0x4] sm:$0xff]
  %v1057 = vld [vmem:[#allocation4 + $0xc] sm:$0xff]
  %v1058 = vld [vmem:[#allocation4 + $0x1c] sm:$0xff]
  %v1059 = vld [vmem:[#allocation4 + $0x24] sm:$0xff]
  %v1060 = vstv %s856
  %v1061 = vmul.f32 %v1060, %v1056
  %v1062 = vmul.f32 %v1060, %v1057
  %v1063 = vmul.f32 %v1060, %v1058
  %v1064 = vmul.f32 %v1060, %v1059
  %v1065 = vld [vmem:[#allocation5 + $0x4] sm:$0xff]
  %v1066 = vld [vmem:[#allocation5 + $0xc] sm:$0xff]
  %v1067 = vld [vmem:[#allocation5 + $0x1c] sm:$0xff]
  %v1068 = vld [vmem:[#allocation5 + $0x24] sm:$0xff]
  %v1069 = vstv %s905
  %v1070 = vmul.f32 %v1069, %v1065
  %v1071 = vmul.f32 %v1069, %v1066
  %v1072 = vmul.f32 %v1069, %v1067
  %v1073 = vmul.f32 %v1069, %v1068
  %v1074 = vadd.f32 %v1061, %v1070
  %v1075 = vadd.f32 %v1062, %v1071
  %v1076 = vadd.f32 %v1063, %v1072
  %v1077 = vadd.f32 %v1064, %v1073
  %v1078 = vadd.f32 %v974, %v1074
  %v1079 = vadd.f32 %v975, %v1075
  %v1080 = vadd.f32 %v976, %v1076
  %v1081 = vadd.f32 %v977, %v1077
  %v1082 = vld [vmem:[#allocation4 + $0x5] sm:$0xff]
  %v1083 = vld [vmem:[#allocation4 + $0xd] sm:$0xff]
  %v1084 = vld [vmem:[#allocation4 + $0x1d] sm:$0xff]
  %v1085 = vld [vmem:[#allocation4 + $0x25] sm:$0xff]
  %v1086 = vstv %s863
  %v1087 = vmul.f32 %v1086, %v1082
  %v1088 = vmul.f32 %v1086, %v1083
  %v1089 = vmul.f32 %v1086, %v1084
  %v1090 = vmul.f32 %v1086, %v1085
  %v1091 = vld [vmem:[#allocation5 + $0x5] sm:$0xff]
  %v1092 = vld [vmem:[#allocation5 + $0xd] sm:$0xff]
  %v1093 = vld [vmem:[#allocation5 + $0x1d] sm:$0xff]
  %v1094 = vld [vmem:[#allocation5 + $0x25] sm:$0xff]
  %v1095 = vstv %s912
  %v1096 = vmul.f32 %v1095, %v1091
  %v1097 = vmul.f32 %v1095, %v1092
  %v1098 = vmul.f32 %v1095, %v1093
  %v1099 = vmul.f32 %v1095, %v1094
  %v1100 = vadd.f32 %v1087, %v1096
  %v1101 = vadd.f32 %v1088, %v1097
  %v1102 = vadd.f32 %v1089, %v1098
  %v1103 = vadd.f32 %v1090, %v1099
  %v1104 = vadd.f32 %v1000, %v1100
  %v1105 = vadd.f32 %v1001, %v1101
  %v1106 = vadd.f32 %v1002, %v1102
  %v1107 = vadd.f32 %v1003, %v1103
  %v1108 = vld [vmem:[#allocation4 + $0x6] sm:$0xff]
  %v1109 = vld [vmem:[#allocation4 + $0xe] sm:$0xff]
  %v1110 = vld [vmem:[#allocation4 + $0x1e] sm:$0xff]
  %v1111 = vld [vmem:[#allocation4 + $0x26] sm:$0xff]
  %v1112 = vstv %s870
  %v1113 = vmul.f32 %v1112, %v1108
  %v1114 = vmul.f32 %v1112, %v1109
  %v1115 = vmul.f32 %v1112, %v1110
  %v1116 = vmul.f32 %v1112, %v1111
  %v1117 = vld [vmem:[#allocation5 + $0x6] sm:$0xff]
  %v1118 = vld [vmem:[#allocation5 + $0xe] sm:$0xff]
  %v1119 = vld [vmem:[#allocation5 + $0x1e] sm:$0xff]
  %v1120 = vld [vmem:[#allocation5 + $0x26] sm:$0xff]
  %v1121 = vstv %s919
  %v1122 = vmul.f32 %v1121, %v1117
  %v1123 = vmul.f32 %v1121, %v1118
  %v1124 = vmul.f32 %v1121, %v1119
  %v1125 = vmul.f32 %v1121, %v1120
  %v1126 = vadd.f32 %v1113, %v1122
  %v1127 = vadd.f32 %v1114, %v1123
  %v1128 = vadd.f32 %v1115, %v1124
  %v1129 = vadd.f32 %v1116, %v1125
  %v1130 = vadd.f32 %v1026, %v1126
  %v1131 = vadd.f32 %v1027, %v1127
  %v1132 = vadd.f32 %v1028, %v1128
  %v1133 = vadd.f32 %v1029, %v1129
  %v1134 = vld [vmem:[#allocation2] sm:$0xff]
  %v1135 = vld [vmem:[#allocation2 + $0x8] sm:$0xff]
  %v1136 = vld [vmem:[#allocation2 + $0x10] sm:$0x3f]
  %v1137 = vld [vmem:[#allocation2 + $0x18] sm:$0xff]
  %v1138 = vld [vmem:[#allocation2 + $0x20] sm:$0xff]
  %v1139 = vld [vmem:[#allocation2 + $0x28] sm:$0x3f]
  %1146 = vrot.lane.b32.xlu0 %v1134, 127
  %v1147 = vpop.permute.xlu0 %1146
  %1148 = vrot.lane.b32.xlu0 %v1135, 127
  %v1149 = vpop.permute.xlu0 %1148
  %1150 = vrot.lane.b32.xlu0 %v1136, 127
  %v1151 = vpop.permute.xlu0 %1150
  %1152 = vrot.lane.b32.xlu0 %v1137, 127
  %v1153 = vpop.permute.xlu0 %1152
  %1154 = vrot.lane.b32.xlu0 %v1138, 127
  %v1155 = vpop.permute.xlu0 %1154
  %1156 = vrot.lane.b32.xlu0 %v1139, 127
  %v1157 = vpop.permute.xlu0 %1156
  %1164 = vst.msk [vmem:[#allocation4] sm:$0xff] %vm932, %v1147
  %1165 = vst.msk [vmem:[#allocation4 + $0x8] sm:$0xff] %vm932, %v1149
  %1166 = vst.msk [vmem:[#allocation4 + $0x10] sm:$0x3f] %vm935, %v1151
  %1167 = vst.msk [vmem:[#allocation4 + $0x18] sm:$0xff] %vm932, %v1153
  %1168 = vst.msk [vmem:[#allocation4 + $0x20] sm:$0xff] %vm932, %v1155
  %1169 = vst.msk [vmem:[#allocation4 + $0x28] sm:$0x3f] %vm935, %v1157
  %v1170 = vld [vmem:[#allocation3] sm:$0xff]
  %v1171 = vld [vmem:[#allocation3 + $0x8] sm:$0xff]
  %v1172 = vld [vmem:[#allocation3 + $0x10] sm:$0x3f]
  %v1173 = vld [vmem:[#allocation3 + $0x18] sm:$0xff]
  %v1174 = vld [vmem:[#allocation3 + $0x20] sm:$0xff]
  %v1175 = vld [vmem:[#allocation3 + $0x28] sm:$0x3f]
  %1182 = vrot.lane.b32.xlu0 %v1170, 127
  %v1183 = vpop.permute.xlu0 %1182
  %1184 = vrot.lane.b32.xlu0 %v1171, 127
  %v1185 = vpop.permute.xlu0 %1184
  %1186 = vrot.lane.b32.xlu0 %v1172, 127
  %v1187 = vpop.permute.xlu0 %1186
  %1188 = vrot.lane.b32.xlu0 %v1173, 127
  %v1189 = vpop.permute.xlu0 %1188
  %1190 = vrot.lane.b32.xlu0 %v1174, 127
  %v1191 = vpop.permute.xlu0 %1190
  %1192 = vrot.lane.b32.xlu0 %v1175, 127
  %v1193 = vpop.permute.xlu0 %1192
  %1200 = vst.msk [vmem:[#allocation5] sm:$0xff] %vm932, %v1183
  %1201 = vst.msk [vmem:[#allocation5 + $0x8] sm:$0xff] %vm932, %v1185
  %1202 = vst.msk [vmem:[#allocation5 + $0x10] sm:$0x3f] %vm935, %v1187
  %1203 = vst.msk [vmem:[#allocation5 + $0x18] sm:$0xff] %vm932, %v1189
  %1204 = vst.msk [vmem:[#allocation5 + $0x20] sm:$0xff] %vm932, %v1191
  %1205 = vst.msk [vmem:[#allocation5 + $0x28] sm:$0x3f] %vm935, %v1193
  %v1206 = vld [vmem:[#allocation4] sm:$0xff]
  %v1207 = vld [vmem:[#allocation4 + $0x8] sm:$0xff]
  %v1208 = vld [vmem:[#allocation4 + $0x18] sm:$0xff]
  %v1209 = vld [vmem:[#allocation4 + $0x20] sm:$0xff]
  %v1210 = vstv %s829
  %v1211 = vmul.f32 %v1210, %v1206
  %v1212 = vmul.f32 %v1210, %v1207
  %v1213 = vmul.f32 %v1210, %v1208
  %v1214 = vmul.f32 %v1210, %v1209
  %v1215 = vld [vmem:[#allocation5] sm:$0xff]
  %v1216 = vld [vmem:[#allocation5 + $0x8] sm:$0xff]
  %v1217 = vld [vmem:[#allocation5 + $0x18] sm:$0xff]
  %v1218 = vld [vmem:[#allocation5 + $0x20] sm:$0xff]
  %v1219 = vstv %s878
  %v1220 = vmul.f32 %v1219, %v1215
  %v1221 = vmul.f32 %v1219, %v1216
  %v1222 = vmul.f32 %v1219, %v1217
  %v1223 = vmul.f32 %v1219, %v1218
  %v1224 = vadd.f32 %v1211, %v1220
  %v1225 = vadd.f32 %v1212, %v1221
  %v1226 = vadd.f32 %v1213, %v1222
  %v1227 = vadd.f32 %v1214, %v1223
  %v1228 = vadd.f32 %v1052, %v1224
  %v1229 = vadd.f32 %v1053, %v1225
  %v1230 = vadd.f32 %v1054, %v1226
  %v1231 = vadd.f32 %v1055, %v1227
  %v1232 = vld [vmem:[#allocation4 + $0x1] sm:$0xff]
  %v1233 = vld [vmem:[#allocation4 + $0x9] sm:$0xff]
  %v1234 = vld [vmem:[#allocation4 + $0x19] sm:$0xff]
  %v1235 = vld [vmem:[#allocation4 + $0x21] sm:$0xff]
  %v1236 = vstv %s836
  %v1237 = vmul.f32 %v1236, %v1232
  %v1238 = vmul.f32 %v1236, %v1233
  %v1239 = vmul.f32 %v1236, %v1234
  %v1240 = vmul.f32 %v1236, %v1235
  %v1241 = vld [vmem:[#allocation5 + $0x1] sm:$0xff]
  %v1242 = vld [vmem:[#allocation5 + $0x9] sm:$0xff]
  %v1243 = vld [vmem:[#allocation5 + $0x19] sm:$0xff]
  %v1244 = vld [vmem:[#allocation5 + $0x21] sm:$0xff]
  %v1245 = vstv %s885
  %v1246 = vmul.f32 %v1245, %v1241
  %v1247 = vmul.f32 %v1245, %v1242
  %v1248 = vmul.f32 %v1245, %v1243
  %v1249 = vmul.f32 %v1245, %v1244
  %v1250 = vadd.f32 %v1237, %v1246
  %v1251 = vadd.f32 %v1238, %v1247
  %v1252 = vadd.f32 %v1239, %v1248
  %v1253 = vadd.f32 %v1240, %v1249
  %v1254 = vadd.f32 %v1078, %v1250
  %v1255 = vadd.f32 %v1079, %v1251
  %v1256 = vadd.f32 %v1080, %v1252
  %v1257 = vadd.f32 %v1081, %v1253
  %v1258 = vld [vmem:[#allocation4 + $0x2] sm:$0xff]
  %v1259 = vld [vmem:[#allocation4 + $0xa] sm:$0xff]
  %v1260 = vld [vmem:[#allocation4 + $0x1a] sm:$0xff]
  %v1261 = vld [vmem:[#allocation4 + $0x22] sm:$0xff]
  %v1262 = vstv %s843
  %v1263 = vmul.f32 %v1262, %v1258
  %v1264 = vmul.f32 %v1262, %v1259
  %v1265 = vmul.f32 %v1262, %v1260
  %v1266 = vmul.f32 %v1262, %v1261
  %v1267 = vld [vmem:[#allocation5 + $0x2] sm:$0xff]
  %v1268 = vld [vmem:[#allocation5 + $0xa] sm:$0xff]
  %v1269 = vld [vmem:[#allocation5 + $0x1a] sm:$0xff]
  %v1270 = vld [vmem:[#allocation5 + $0x22] sm:$0xff]
  %v1271 = vstv %s892
  %v1272 = vmul.f32 %v1271, %v1267
  %v1273 = vmul.f32 %v1271, %v1268
  %v1274 = vmul.f32 %v1271, %v1269
  %v1275 = vmul.f32 %v1271, %v1270
  %v1276 = vadd.f32 %v1263, %v1272
  %v1277 = vadd.f32 %v1264, %v1273
  %v1278 = vadd.f32 %v1265, %v1274
  %v1279 = vadd.f32 %v1266, %v1275
  %v1280 = vadd.f32 %v1104, %v1276
  %v1281 = vadd.f32 %v1105, %v1277
  %v1282 = vadd.f32 %v1106, %v1278
  %v1283 = vadd.f32 %v1107, %v1279
  %v1284 = vld [vmem:[#allocation4 + $0x3] sm:$0xff]
  %v1285 = vld [vmem:[#allocation4 + $0xb] sm:$0xff]
  %v1286 = vld [vmem:[#allocation4 + $0x1b] sm:$0xff]
  %v1287 = vld [vmem:[#allocation4 + $0x23] sm:$0xff]
  %v1288 = vstv %s850
  %v1289 = vmul.f32 %v1288, %v1284
  %v1290 = vmul.f32 %v1288, %v1285
  %v1291 = vmul.f32 %v1288, %v1286
  %v1292 = vmul.f32 %v1288, %v1287
  %v1293 = vld [vmem:[#allocation5 + $0x3] sm:$0xff]
  %v1294 = vld [vmem:[#allocation5 + $0xb] sm:$0xff]
  %v1295 = vld [vmem:[#allocation5 + $0x1b] sm:$0xff]
  %v1296 = vld [vmem:[#allocation5 + $0x23] sm:$0xff]
  %v1297 = vstv %s899
  %v1298 = vmul.f32 %v1297, %v1293
  %v1299 = vmul.f32 %v1297, %v1294
  %v1300 = vmul.f32 %v1297, %v1295
  %v1301 = vmul.f32 %v1297, %v1296
  %v1302 = vadd.f32 %v1289, %v1298
  %v1303 = vadd.f32 %v1290, %v1299
  %v1304 = vadd.f32 %v1291, %v1300
  %v1305 = vadd.f32 %v1292, %v1301
  %v1306 = vadd.f32 %v1130, %v1302
  %v1307 = vadd.f32 %v1131, %v1303
  %v1308 = vadd.f32 %v1132, %v1304
  %v1309 = vadd.f32 %v1133, %v1305
  %v1310 = vld [vmem:[#allocation4 + $0x4] sm:$0xff]
  %v1311 = vld [vmem:[#allocation4 + $0xc] sm:$0xff]
  %v1312 = vld [vmem:[#allocation4 + $0x1c] sm:$0xff]
  %v1313 = vld [vmem:[#allocation4 + $0x24] sm:$0xff]
  %v1314 = vstv %s857
  %v1315 = vmul.f32 %v1314, %v1310
  %v1316 = vmul.f32 %v1314, %v1311
  %v1317 = vmul.f32 %v1314, %v1312
  %v1318 = vmul.f32 %v1314, %v1313
  %v1319 = vld [vmem:[#allocation5 + $0x4] sm:$0xff]
  %v1320 = vld [vmem:[#allocation5 + $0xc] sm:$0xff]
  %v1321 = vld [vmem:[#allocation5 + $0x1c] sm:$0xff]
  %v1322 = vld [vmem:[#allocation5 + $0x24] sm:$0xff]
  %v1323 = vstv %s906
  %v1324 = vmul.f32 %v1323, %v1319
  %v1325 = vmul.f32 %v1323, %v1320
  %v1326 = vmul.f32 %v1323, %v1321
  %v1327 = vmul.f32 %v1323, %v1322
  %v1328 = vadd.f32 %v1315, %v1324
  %v1329 = vadd.f32 %v1316, %v1325
  %v1330 = vadd.f32 %v1317, %v1326
  %v1331 = vadd.f32 %v1318, %v1327
  %v1332 = vadd.f32 %v1228, %v1328
  %v1333 = vadd.f32 %v1229, %v1329
  %v1334 = vadd.f32 %v1230, %v1330
  %v1335 = vadd.f32 %v1231, %v1331
  %v1336 = vld [vmem:[#allocation4 + $0x5] sm:$0xff]
  %v1337 = vld [vmem:[#allocation4 + $0xd] sm:$0xff]
  %v1338 = vld [vmem:[#allocation4 + $0x1d] sm:$0xff]
  %v1339 = vld [vmem:[#allocation4 + $0x25] sm:$0xff]
  %v1340 = vstv %s864
  %v1341 = vmul.f32 %v1340, %v1336
  %v1342 = vmul.f32 %v1340, %v1337
  %v1343 = vmul.f32 %v1340, %v1338
  %v1344 = vmul.f32 %v1340, %v1339
  %v1345 = vld [vmem:[#allocation5 + $0x5] sm:$0xff]
  %v1346 = vld [vmem:[#allocation5 + $0xd] sm:$0xff]
  %v1347 = vld [vmem:[#allocation5 + $0x1d] sm:$0xff]
  %v1348 = vld [vmem:[#allocation5 + $0x25] sm:$0xff]
  %v1349 = vstv %s913
  %v1350 = vmul.f32 %v1349, %v1345
  %v1351 = vmul.f32 %v1349, %v1346
  %v1352 = vmul.f32 %v1349, %v1347
  %v1353 = vmul.f32 %v1349, %v1348
  %v1354 = vadd.f32 %v1341, %v1350
  %v1355 = vadd.f32 %v1342, %v1351
  %v1356 = vadd.f32 %v1343, %v1352
  %v1357 = vadd.f32 %v1344, %v1353
  %v1358 = vadd.f32 %v1254, %v1354
  %v1359 = vadd.f32 %v1255, %v1355
  %v1360 = vadd.f32 %v1256, %v1356
  %v1361 = vadd.f32 %v1257, %v1357
  %v1362 = vld [vmem:[#allocation4 + $0x6] sm:$0xff]
  %v1363 = vld [vmem:[#allocation4 + $0xe] sm:$0xff]
  %v1364 = vld [vmem:[#allocation4 + $0x1e] sm:$0xff]
  %v1365 = vld [vmem:[#allocation4 + $0x26] sm:$0xff]
  %v1366 = vstv %s871
  %v1367 = vmul.f32 %v1366, %v1362
  %v1368 = vmul.f32 %v1366, %v1363
  %v1369 = vmul.f32 %v1366, %v1364
  %v1370 = vmul.f32 %v1366, %v1365
  %v1371 = vld [vmem:[#allocation5 + $0x6] sm:$0xff]
  %v1372 = vld [vmem:[#allocation5 + $0xe] sm:$0xff]
  %v1373 = vld [vmem:[#allocation5 + $0x1e] sm:$0xff]
  %v1374 = vld [vmem:[#allocation5 + $0x26] sm:$0xff]
  %v1375 = vstv %s920
  %v1376 = vmul.f32 %v1375, %v1371
  %v1377 = vmul.f32 %v1375, %v1372
  %v1378 = vmul.f32 %v1375, %v1373
  %v1379 = vmul.f32 %v1375, %v1374
  %v1380 = vadd.f32 %v1367, %v1376
  %v1381 = vadd.f32 %v1368, %v1377
  %v1382 = vadd.f32 %v1369, %v1378
  %v1383 = vadd.f32 %v1370, %v1379
  %v1384 = vadd.f32 %v1280, %v1380
  %v1385 = vadd.f32 %v1281, %v1381
  %v1386 = vadd.f32 %v1282, %v1382
  %v1387 = vadd.f32 %v1283, %v1383
  %v1388 = vld [vmem:[#allocation2] sm:$0xff]
  %v1389 = vld [vmem:[#allocation2 + $0x8] sm:$0xff]
  %v1390 = vld [vmem:[#allocation2 + $0x10] sm:$0x3f]
  %v1391 = vld [vmem:[#allocation2 + $0x18] sm:$0xff]
  %v1392 = vld [vmem:[#allocation2 + $0x20] sm:$0xff]
  %v1393 = vld [vmem:[#allocation2 + $0x28] sm:$0x3f]
  %1400 = vrot.lane.b32.xlu0 %v1388, 126
  %v1401 = vpop.permute.xlu0 %1400
  %1402 = vrot.lane.b32.xlu0 %v1389, 126
  %v1403 = vpop.permute.xlu0 %1402
  %1404 = vrot.lane.b32.xlu0 %v1390, 126
  %v1405 = vpop.permute.xlu0 %1404
  %1406 = vrot.lane.b32.xlu0 %v1391, 126
  %v1407 = vpop.permute.xlu0 %1406
  %1408 = vrot.lane.b32.xlu0 %v1392, 126
  %v1409 = vpop.permute.xlu0 %1408
  %1410 = vrot.lane.b32.xlu0 %v1393, 126
  %v1411 = vpop.permute.xlu0 %1410
  %1418 = vst.msk [vmem:[#allocation4] sm:$0xff] %vm932, %v1401
  %1419 = vst.msk [vmem:[#allocation4 + $0x8] sm:$0xff] %vm932, %v1403
  %1420 = vst.msk [vmem:[#allocation4 + $0x10] sm:$0x3f] %vm935, %v1405
  %1421 = vst.msk [vmem:[#allocation4 + $0x18] sm:$0xff] %vm932, %v1407
  %1422 = vst.msk [vmem:[#allocation4 + $0x20] sm:$0xff] %vm932, %v1409
  %1423 = vst.msk [vmem:[#allocation4 + $0x28] sm:$0x3f] %vm935, %v1411
  %v1424 = vld [vmem:[#allocation3] sm:$0xff]
  %v1425 = vld [vmem:[#allocation3 + $0x8] sm:$0xff]
  %v1426 = vld [vmem:[#allocation3 + $0x10] sm:$0x3f]
  %v1427 = vld [vmem:[#allocation3 + $0x18] sm:$0xff]
  %v1428 = vld [vmem:[#allocation3 + $0x20] sm:$0xff]
  %v1429 = vld [vmem:[#allocation3 + $0x28] sm:$0x3f]
  %1436 = vrot.lane.b32.xlu0 %v1424, 126
  %v1437 = vpop.permute.xlu0 %1436
  %1438 = vrot.lane.b32.xlu0 %v1425, 126
  %v1439 = vpop.permute.xlu0 %1438
  %1440 = vrot.lane.b32.xlu0 %v1426, 126
  %v1441 = vpop.permute.xlu0 %1440
  %1442 = vrot.lane.b32.xlu0 %v1427, 126
  %v1443 = vpop.permute.xlu0 %1442
  %1444 = vrot.lane.b32.xlu0 %v1428, 126
  %v1445 = vpop.permute.xlu0 %1444
  %1446 = vrot.lane.b32.xlu0 %v1429, 126
  %v1447 = vpop.permute.xlu0 %1446
  %1454 = vst.msk [vmem:[#allocation5] sm:$0xff] %vm932, %v1437
  %1455 = vst.msk [vmem:[#allocation5 + $0x8] sm:$0xff] %vm932, %v1439
  %1456 = vst.msk [vmem:[#allocation5 + $0x10] sm:$0x3f] %vm935, %v1441
  %1457 = vst.msk [vmem:[#allocation5 + $0x18] sm:$0xff] %vm932, %v1443
  %1458 = vst.msk [vmem:[#allocation5 + $0x20] sm:$0xff] %vm932, %v1445
  %1459 = vst.msk [vmem:[#allocation5 + $0x28] sm:$0x3f] %vm935, %v1447
  %v1460 = vld [vmem:[#allocation4] sm:$0xff]
  %v1461 = vld [vmem:[#allocation4 + $0x8] sm:$0xff]
  %v1462 = vld [vmem:[#allocation4 + $0x18] sm:$0xff]
  %v1463 = vld [vmem:[#allocation4 + $0x20] sm:$0xff]
  %v1464 = vstv %s830
  %v1465 = vmul.f32 %v1464, %v1460
  %v1466 = vmul.f32 %v1464, %v1461
  %v1467 = vmul.f32 %v1464, %v1462
  %v1468 = vmul.f32 %v1464, %v1463
  %v1469 = vld [vmem:[#allocation5] sm:$0xff]
  %v1470 = vld [vmem:[#allocation5 + $0x8] sm:$0xff]
  %v1471 = vld [vmem:[#allocation5 + $0x18] sm:$0xff]
  %v1472 = vld [vmem:[#allocation5 + $0x20] sm:$0xff]
  %v1473 = vstv %s879
  %v1474 = vmul.f32 %v1473, %v1469
  %v1475 = vmul.f32 %v1473, %v1470
  %v1476 = vmul.f32 %v1473, %v1471
  %v1477 = vmul.f32 %v1473, %v1472
  %v1478 = vadd.f32 %v1465, %v1474
  %v1479 = vadd.f32 %v1466, %v1475
  %v1480 = vadd.f32 %v1467, %v1476
  %v1481 = vadd.f32 %v1468, %v1477
  %v1482 = vadd.f32 %v1306, %v1478
  %v1483 = vadd.f32 %v1307, %v1479
  %v1484 = vadd.f32 %v1308, %v1480
  %v1485 = vadd.f32 %v1309, %v1481
  %v1486 = vld [vmem:[#allocation4 + $0x1] sm:$0xff]
  %v1487 = vld [vmem:[#allocation4 + $0x9] sm:$0xff]
  %v1488 = vld [vmem:[#allocation4 + $0x19] sm:$0xff]
  %v1489 = vld [vmem:[#allocation4 + $0x21] sm:$0xff]
  %v1490 = vstv %s837
  %v1491 = vmul.f32 %v1490, %v1486
  %v1492 = vmul.f32 %v1490, %v1487
  %v1493 = vmul.f32 %v1490, %v1488
  %v1494 = vmul.f32 %v1490, %v1489
  %v1495 = vld [vmem:[#allocation5 + $0x1] sm:$0xff]
  %v1496 = vld [vmem:[#allocation5 + $0x9] sm:$0xff]
  %v1497 = vld [vmem:[#allocation5 + $0x19] sm:$0xff]
  %v1498 = vld [vmem:[#allocation5 + $0x21] sm:$0xff]
  %v1499 = vstv %s886
  %v1500 = vmul.f32 %v1499, %v1495
  %v1501 = vmul.f32 %v1499, %v1496
  %v1502 = vmul.f32 %v1499, %v1497
  %v1503 = vmul.f32 %v1499, %v1498
  %v1504 = vadd.f32 %v1491, %v1500
  %v1505 = vadd.f32 %v1492, %v1501
  %v1506 = vadd.f32 %v1493, %v1502
  %v1507 = vadd.f32 %v1494, %v1503
  %v1508 = vadd.f32 %v1332, %v1504
  %v1509 = vadd.f32 %v1333, %v1505
  %v1510 = vadd.f32 %v1334, %v1506
  %v1511 = vadd.f32 %v1335, %v1507
  %v1512 = vld [vmem:[#allocation4 + $0x2] sm:$0xff]
  %v1513 = vld [vmem:[#allocation4 + $0xa] sm:$0xff]
  %v1514 = vld [vmem:[#allocation4 + $0x1a] sm:$0xff]
  %v1515 = vld [vmem:[#allocation4 + $0x22] sm:$0xff]
  %v1516 = vstv %s844
  %v1517 = vmul.f32 %v1516, %v1512
  %v1518 = vmul.f32 %v1516, %v1513
  %v1519 = vmul.f32 %v1516, %v1514
  %v1520 = vmul.f32 %v1516, %v1515
  %v1521 = vld [vmem:[#allocation5 + $0x2] sm:$0xff]
  %v1522 = vld [vmem:[#allocation5 + $0xa] sm:$0xff]
  %v1523 = vld [vmem:[#allocation5 + $0x1a] sm:$0xff]
  %v1524 = vld [vmem:[#allocation5 + $0x22] sm:$0xff]
  %v1525 = vstv %s893
  %v1526 = vmul.f32 %v1525, %v1521
  %v1527 = vmul.f32 %v1525, %v1522
  %v1528 = vmul.f32 %v1525, %v1523
  %v1529 = vmul.f32 %v1525, %v1524
  %v1530 = vadd.f32 %v1517, %v1526
  %v1531 = vadd.f32 %v1518, %v1527
  %v1532 = vadd.f32 %v1519, %v1528
  %v1533 = vadd.f32 %v1520, %v1529
  %v1534 = vadd.f32 %v1358, %v1530
  %v1535 = vadd.f32 %v1359, %v1531
  %v1536 = vadd.f32 %v1360, %v1532
  %v1537 = vadd.f32 %v1361, %v1533
  %v1538 = vld [vmem:[#allocation4 + $0x3] sm:$0xff]
  %v1539 = vld [vmem:[#allocation4 + $0xb] sm:$0xff]
  %v1540 = vld [vmem:[#allocation4 + $0x1b] sm:$0xff]
  %v1541 = vld [vmem:[#allocation4 + $0x23] sm:$0xff]
  %v1542 = vstv %s851
  %v1543 = vmul.f32 %v1542, %v1538
  %v1544 = vmul.f32 %v1542, %v1539
  %v1545 = vmul.f32 %v1542, %v1540
  %v1546 = vmul.f32 %v1542, %v1541
  %v1547 = vld [vmem:[#allocation5 + $0x3] sm:$0xff]
  %v1548 = vld [vmem:[#allocation5 + $0xb] sm:$0xff]
  %v1549 = vld [vmem:[#allocation5 + $0x1b] sm:$0xff]
  %v1550 = vld [vmem:[#allocation5 + $0x23] sm:$0xff]
  %v1551 = vstv %s900
  %v1552 = vmul.f32 %v1551, %v1547
  %v1553 = vmul.f32 %v1551, %v1548
  %v1554 = vmul.f32 %v1551, %v1549
  %v1555 = vmul.f32 %v1551, %v1550
  %v1556 = vadd.f32 %v1543, %v1552
  %v1557 = vadd.f32 %v1544, %v1553
  %v1558 = vadd.f32 %v1545, %v1554
  %v1559 = vadd.f32 %v1546, %v1555
  %v1560 = vadd.f32 %v1384, %v1556
  %v1561 = vadd.f32 %v1385, %v1557
  %v1562 = vadd.f32 %v1386, %v1558
  %v1563 = vadd.f32 %v1387, %v1559
  %v1564 = vld [vmem:[#allocation4 + $0x4] sm:$0xff]
  %v1565 = vld [vmem:[#allocation4 + $0xc] sm:$0xff]
  %v1566 = vld [vmem:[#allocation4 + $0x1c] sm:$0xff]
  %v1567 = vld [vmem:[#allocation4 + $0x24] sm:$0xff]
  %v1568 = vstv %s858
  %v1569 = vmul.f32 %v1568, %v1564
  %v1570 = vmul.f32 %v1568, %v1565
  %v1571 = vmul.f32 %v1568, %v1566
  %v1572 = vmul.f32 %v1568, %v1567
  %v1573 = vld [vmem:[#allocation5 + $0x4] sm:$0xff]
  %v1574 = vld [vmem:[#allocation5 + $0xc] sm:$0xff]
  %v1575 = vld [vmem:[#allocation5 + $0x1c] sm:$0xff]
  %v1576 = vld [vmem:[#allocation5 + $0x24] sm:$0xff]
  %v1577 = vstv %s907
  %v1578 = vmul.f32 %v1577, %v1573
  %v1579 = vmul.f32 %v1577, %v1574
  %v1580 = vmul.f32 %v1577, %v1575
  %v1581 = vmul.f32 %v1577, %v1576
  %v1582 = vadd.f32 %v1569, %v1578
  %v1583 = vadd.f32 %v1570, %v1579
  %v1584 = vadd.f32 %v1571, %v1580
  %v1585 = vadd.f32 %v1572, %v1581
  %v1586 = vadd.f32 %v1482, %v1582
  %v1587 = vadd.f32 %v1483, %v1583
  %v1588 = vadd.f32 %v1484, %v1584
  %v1589 = vadd.f32 %v1485, %v1585
  %v1590 = vld [vmem:[#allocation4 + $0x5] sm:$0xff]
  %v1591 = vld [vmem:[#allocation4 + $0xd] sm:$0xff]
  %v1592 = vld [vmem:[#allocation4 + $0x1d] sm:$0xff]
  %v1593 = vld [vmem:[#allocation4 + $0x25] sm:$0xff]
  %v1594 = vstv %s865
  %v1595 = vmul.f32 %v1594, %v1590
  %v1596 = vmul.f32 %v1594, %v1591
  %v1597 = vmul.f32 %v1594, %v1592
  %v1598 = vmul.f32 %v1594, %v1593
  %v1599 = vld [vmem:[#allocation5 + $0x5] sm:$0xff]
  %v1600 = vld [vmem:[#allocation5 + $0xd] sm:$0xff]
  %v1601 = vld [vmem:[#allocation5 + $0x1d] sm:$0xff]
  %v1602 = vld [vmem:[#allocation5 + $0x25] sm:$0xff]
  %v1603 = vstv %s914
  %v1604 = vmul.f32 %v1603, %v1599
  %v1605 = vmul.f32 %v1603, %v1600
  %v1606 = vmul.f32 %v1603, %v1601
  %v1607 = vmul.f32 %v1603, %v1602
  %v1608 = vadd.f32 %v1595, %v1604
  %v1609 = vadd.f32 %v1596, %v1605
  %v1610 = vadd.f32 %v1597, %v1606
  %v1611 = vadd.f32 %v1598, %v1607
  %v1612 = vadd.f32 %v1508, %v1608
  %v1613 = vadd.f32 %v1509, %v1609
  %v1614 = vadd.f32 %v1510, %v1610
  %v1615 = vadd.f32 %v1511, %v1611
  %v1616 = vld [vmem:[#allocation4 + $0x6] sm:$0xff]
  %v1617 = vld [vmem:[#allocation4 + $0xe] sm:$0xff]
  %v1618 = vld [vmem:[#allocation4 + $0x1e] sm:$0xff]
  %v1619 = vld [vmem:[#allocation4 + $0x26] sm:$0xff]
  %v1620 = vstv %s872
  %v1621 = vmul.f32 %v1620, %v1616
  %v1622 = vmul.f32 %v1620, %v1617
  %v1623 = vmul.f32 %v1620, %v1618
  %v1624 = vmul.f32 %v1620, %v1619
  %v1625 = vld [vmem:[#allocation5 + $0x6] sm:$0xff]
  %v1626 = vld [vmem:[#allocation5 + $0xe] sm:$0xff]
  %v1627 = vld [vmem:[#allocation5 + $0x1e] sm:$0xff]
  %v1628 = vld [vmem:[#allocation5 + $0x26] sm:$0xff]
  %v1629 = vstv %s921
  %v1630 = vmul.f32 %v1629, %v1625
  %v1631 = vmul.f32 %v1629, %v1626
  %v1632 = vmul.f32 %v1629, %v1627
  %v1633 = vmul.f32 %v1629, %v1628
  %v1634 = vadd.f32 %v1621, %v1630
  %v1635 = vadd.f32 %v1622, %v1631
  %v1636 = vadd.f32 %v1623, %v1632
  %v1637 = vadd.f32 %v1624, %v1633
  %v1638 = vadd.f32 %v1534, %v1634
  %v1639 = vadd.f32 %v1535, %v1635
  %v1640 = vadd.f32 %v1536, %v1636
  %v1641 = vadd.f32 %v1537, %v1637
  %v1642 = vld [vmem:[#allocation2] sm:$0xff]
  %v1643 = vld [vmem:[#allocation2 + $0x8] sm:$0xff]
  %v1644 = vld [vmem:[#allocation2 + $0x10] sm:$0x3f]
  %v1645 = vld [vmem:[#allocation2 + $0x18] sm:$0xff]
  %v1646 = vld [vmem:[#allocation2 + $0x20] sm:$0xff]
  %v1647 = vld [vmem:[#allocation2 + $0x28] sm:$0x3f]
  %1654 = vrot.lane.b32.xlu0 %v1642, 125
  %v1655 = vpop.permute.xlu0 %1654
  %1656 = vrot.lane.b32.xlu0 %v1643, 125
  %v1657 = vpop.permute.xlu0 %1656
  %1658 = vrot.lane.b32.xlu0 %v1644, 125
  %v1659 = vpop.permute.xlu0 %1658
  %1660 = vrot.lane.b32.xlu0 %v1645, 125
  %v1661 = vpop.permute.xlu0 %1660
  %1662 = vrot.lane.b32.xlu0 %v1646, 125
  %v1663 = vpop.permute.xlu0 %1662
  %1664 = vrot.lane.b32.xlu0 %v1647, 125
  %v1665 = vpop.permute.xlu0 %1664
  %1672 = vst.msk [vmem:[#allocation4] sm:$0xff] %vm932, %v1655
  %1673 = vst.msk [vmem:[#allocation4 + $0x8] sm:$0xff] %vm932, %v1657
  %1674 = vst.msk [vmem:[#allocation4 + $0x10] sm:$0x3f] %vm935, %v1659
  %1675 = vst.msk [vmem:[#allocation4 + $0x18] sm:$0xff] %vm932, %v1661
  %1676 = vst.msk [vmem:[#allocation4 + $0x20] sm:$0xff] %vm932, %v1663
  %1677 = vst.msk [vmem:[#allocation4 + $0x28] sm:$0x3f] %vm935, %v1665
  %v1678 = vld [vmem:[#allocation3] sm:$0xff]
  %v1679 = vld [vmem:[#allocation3 + $0x8] sm:$0xff]
  %v1680 = vld [vmem:[#allocation3 + $0x10] sm:$0x3f]
  %v1681 = vld [vmem:[#allocation3 + $0x18] sm:$0xff]
  %v1682 = vld [vmem:[#allocation3 + $0x20] sm:$0xff]
  %v1683 = vld [vmem:[#allocation3 + $0x28] sm:$0x3f]
  %1690 = vrot.lane.b32.xlu0 %v1678, 125
  %v1691 = vpop.permute.xlu0 %1690
  %1692 = vrot.lane.b32.xlu0 %v1679, 125
  %v1693 = vpop.permute.xlu0 %1692
  %1694 = vrot.lane.b32.xlu0 %v1680, 125
  %v1695 = vpop.permute.xlu0 %1694
  %1696 = vrot.lane.b32.xlu0 %v1681, 125
  %v1697 = vpop.permute.xlu0 %1696
  %1698 = vrot.lane.b32.xlu0 %v1682, 125
  %v1699 = vpop.permute.xlu0 %1698
  %1700 = vrot.lane.b32.xlu0 %v1683, 125
  %v1701 = vpop.permute.xlu0 %1700
  %1708 = vst.msk [vmem:[#allocation5] sm:$0xff] %vm932, %v1691
  %1709 = vst.msk [vmem:[#allocation5 + $0x8] sm:$0xff] %vm932, %v1693
  %1710 = vst.msk [vmem:[#allocation5 + $0x10] sm:$0x3f] %vm935, %v1695
  %1711 = vst.msk [vmem:[#allocation5 + $0x18] sm:$0xff] %vm932, %v1697
  %1712 = vst.msk [vmem:[#allocation5 + $0x20] sm:$0xff] %vm932, %v1699
  %1713 = vst.msk [vmem:[#allocation5 + $0x28] sm:$0x3f] %vm935, %v1701
  %v1714 = vld [vmem:[#allocation4] sm:$0xff]
  %v1715 = vld [vmem:[#allocation4 + $0x8] sm:$0xff]
  %v1716 = vld [vmem:[#allocation4 + $0x18] sm:$0xff]
  %v1717 = vld [vmem:[#allocation4 + $0x20] sm:$0xff]
  %v1718 = vstv %s831
  %v1719 = vmul.f32 %v1718, %v1714
  %v1720 = vmul.f32 %v1718, %v1715
  %v1721 = vmul.f32 %v1718, %v1716
  %v1722 = vmul.f32 %v1718, %v1717
  %v1723 = vld [vmem:[#allocation5] sm:$0xff]
  %v1724 = vld [vmem:[#allocation5 + $0x8] sm:$0xff]
  %v1725 = vld [vmem:[#allocation5 + $0x18] sm:$0xff]
  %v1726 = vld [vmem:[#allocation5 + $0x20] sm:$0xff]
  %v1727 = vstv %s880
  %v1728 = vmul.f32 %v1727, %v1723
  %v1729 = vmul.f32 %v1727, %v1724
  %v1730 = vmul.f32 %v1727, %v1725
  %v1731 = vmul.f32 %v1727, %v1726
  %v1732 = vadd.f32 %v1719, %v1728
  %v1733 = vadd.f32 %v1720, %v1729
  %v1734 = vadd.f32 %v1721, %v1730
  %v1735 = vadd.f32 %v1722, %v1731
  %v1736 = vadd.f32 %v1560, %v1732
  %v1737 = vadd.f32 %v1561, %v1733
  %v1738 = vadd.f32 %v1562, %v1734
  %v1739 = vadd.f32 %v1563, %v1735
  %v1740 = vld [vmem:[#allocation4 + $0x1] sm:$0xff]
  %v1741 = vld [vmem:[#allocation4 + $0x9] sm:$0xff]
  %v1742 = vld [vmem:[#allocation4 + $0x19] sm:$0xff]
  %v1743 = vld [vmem:[#allocation4 + $0x21] sm:$0xff]
  %v1744 = vstv %s838
  %v1745 = vmul.f32 %v1744, %v1740
  %v1746 = vmul.f32 %v1744, %v1741
  %v1747 = vmul.f32 %v1744, %v1742
  %v1748 = vmul.f32 %v1744, %v1743
  %v1749 = vld [vmem:[#allocation5 + $0x1] sm:$0xff]
  %v1750 = vld [vmem:[#allocation5 + $0x9] sm:$0xff]
  %v1751 = vld [vmem:[#allocation5 + $0x19] sm:$0xff]
  %v1752 = vld [vmem:[#allocation5 + $0x21] sm:$0xff]
  %v1753 = vstv %s887
  %v1754 = vmul.f32 %v1753, %v1749
  %v1755 = vmul.f32 %v1753, %v1750
  %v1756 = vmul.f32 %v1753, %v1751
  %v1757 = vmul.f32 %v1753, %v1752
  %v1758 = vadd.f32 %v1745, %v1754
  %v1759 = vadd.f32 %v1746, %v1755
  %v1760 = vadd.f32 %v1747, %v1756
  %v1761 = vadd.f32 %v1748, %v1757
  %v1762 = vadd.f32 %v1586, %v1758
  %v1763 = vadd.f32 %v1587, %v1759
  %v1764 = vadd.f32 %v1588, %v1760
  %v1765 = vadd.f32 %v1589, %v1761
  %v1766 = vld [vmem:[#allocation4 + $0x2] sm:$0xff]
  %v1767 = vld [vmem:[#allocation4 + $0xa] sm:$0xff]
  %v1768 = vld [vmem:[#allocation4 + $0x1a] sm:$0xff]
  %v1769 = vld [vmem:[#allocation4 + $0x22] sm:$0xff]
  %v1770 = vstv %s845
  %v1771 = vmul.f32 %v1770, %v1766
  %v1772 = vmul.f32 %v1770, %v1767
  %v1773 = vmul.f32 %v1770, %v1768
  %v1774 = vmul.f32 %v1770, %v1769
  %v1775 = vld [vmem:[#allocation5 + $0x2] sm:$0xff]
  %v1776 = vld [vmem:[#allocation5 + $0xa] sm:$0xff]
  %v1777 = vld [vmem:[#allocation5 + $0x1a] sm:$0xff]
  %v1778 = vld [vmem:[#allocation5 + $0x22] sm:$0xff]
  %v1779 = vstv %s894
  %v1780 = vmul.f32 %v1779, %v1775
  %v1781 = vmul.f32 %v1779, %v1776
  %v1782 = vmul.f32 %v1779, %v1777
  %v1783 = vmul.f32 %v1779, %v1778
  %v1784 = vadd.f32 %v1771, %v1780
  %v1785 = vadd.f32 %v1772, %v1781
  %v1786 = vadd.f32 %v1773, %v1782
  %v1787 = vadd.f32 %v1774, %v1783
  %v1788 = vadd.f32 %v1612, %v1784
  %v1789 = vadd.f32 %v1613, %v1785
  %v1790 = vadd.f32 %v1614, %v1786
  %v1791 = vadd.f32 %v1615, %v1787
  %v1792 = vld [vmem:[#allocation4 + $0x3] sm:$0xff]
  %v1793 = vld [vmem:[#allocation4 + $0xb] sm:$0xff]
  %v1794 = vld [vmem:[#allocation4 + $0x1b] sm:$0xff]
  %v1795 = vld [vmem:[#allocation4 + $0x23] sm:$0xff]
  %v1796 = vstv %s852
  %v1797 = vmul.f32 %v1796, %v1792
  %v1798 = vmul.f32 %v1796, %v1793
  %v1799 = vmul.f32 %v1796, %v1794
  %v1800 = vmul.f32 %v1796, %v1795
  %v1801 = vld [vmem:[#allocation5 + $0x3] sm:$0xff]
  %v1802 = vld [vmem:[#allocation5 + $0xb] sm:$0xff]
  %v1803 = vld [vmem:[#allocation5 + $0x1b] sm:$0xff]
  %v1804 = vld [vmem:[#allocation5 + $0x23] sm:$0xff]
  %v1805 = vstv %s901
  %v1806 = vmul.f32 %v1805, %v1801
  %v1807 = vmul.f32 %v1805, %v1802
  %v1808 = vmul.f32 %v1805, %v1803
  %v1809 = vmul.f32 %v1805, %v1804
  %v1810 = vadd.f32 %v1797, %v1806
  %v1811 = vadd.f32 %v1798, %v1807
  %v1812 = vadd.f32 %v1799, %v1808
  %v1813 = vadd.f32 %v1800, %v1809
  %v1814 = vadd.f32 %v1638, %v1810
  %v1815 = vadd.f32 %v1639, %v1811
  %v1816 = vadd.f32 %v1640, %v1812
  %v1817 = vadd.f32 %v1641, %v1813
  %v1818 = vld [vmem:[#allocation4 + $0x4] sm:$0xff]
  %v1819 = vld [vmem:[#allocation4 + $0xc] sm:$0xff]
  %v1820 = vld [vmem:[#allocation4 + $0x1c] sm:$0xff]
  %v1821 = vld [vmem:[#allocation4 + $0x24] sm:$0xff]
  %v1822 = vstv %s859
  %v1823 = vmul.f32 %v1822, %v1818
  %v1824 = vmul.f32 %v1822, %v1819
  %v1825 = vmul.f32 %v1822, %v1820
  %v1826 = vmul.f32 %v1822, %v1821
  %v1827 = vld [vmem:[#allocation5 + $0x4] sm:$0xff]
  %v1828 = vld [vmem:[#allocation5 + $0xc] sm:$0xff]
  %v1829 = vld [vmem:[#allocation5 + $0x1c] sm:$0xff]
  %v1830 = vld [vmem:[#allocation5 + $0x24] sm:$0xff]
  %v1831 = vstv %s908
  %v1832 = vmul.f32 %v1831, %v1827
  %v1833 = vmul.f32 %v1831, %v1828
  %v1834 = vmul.f32 %v1831, %v1829
  %v1835 = vmul.f32 %v1831, %v1830
  %v1836 = vadd.f32 %v1823, %v1832
  %v1837 = vadd.f32 %v1824, %v1833
  %v1838 = vadd.f32 %v1825, %v1834
  %v1839 = vadd.f32 %v1826, %v1835
  %v1840 = vadd.f32 %v1736, %v1836
  %v1841 = vadd.f32 %v1737, %v1837
  %v1842 = vadd.f32 %v1738, %v1838
  %v1843 = vadd.f32 %v1739, %v1839
  %v1844 = vld [vmem:[#allocation4 + $0x5] sm:$0xff]
  %v1845 = vld [vmem:[#allocation4 + $0xd] sm:$0xff]
  %v1846 = vld [vmem:[#allocation4 + $0x1d] sm:$0xff]
  %v1847 = vld [vmem:[#allocation4 + $0x25] sm:$0xff]
  %v1848 = vstv %s866
  %v1849 = vmul.f32 %v1848, %v1844
  %v1850 = vmul.f32 %v1848, %v1845
  %v1851 = vmul.f32 %v1848, %v1846
  %v1852 = vmul.f32 %v1848, %v1847
  %v1853 = vld [vmem:[#allocation5 + $0x5] sm:$0xff]
  %v1854 = vld [vmem:[#allocation5 + $0xd] sm:$0xff]
  %v1855 = vld [vmem:[#allocation5 + $0x1d] sm:$0xff]
  %v1856 = vld [vmem:[#allocation5 + $0x25] sm:$0xff]
  %v1857 = vstv %s915
  %v1858 = vmul.f32 %v1857, %v1853
  %v1859 = vmul.f32 %v1857, %v1854
  %v1860 = vmul.f32 %v1857, %v1855
  %v1861 = vmul.f32 %v1857, %v1856
  %v1862 = vadd.f32 %v1849, %v1858
  %v1863 = vadd.f32 %v1850, %v1859
  %v1864 = vadd.f32 %v1851, %v1860
  %v1865 = vadd.f32 %v1852, %v1861
  %v1866 = vadd.f32 %v1762, %v1862
  %v1867 = vadd.f32 %v1763, %v1863
  %v1868 = vadd.f32 %v1764, %v1864
  %v1869 = vadd.f32 %v1765, %v1865
  %v1870 = vld [vmem:[#allocation4 + $0x6] sm:$0xff]
  %v1871 = vld [vmem:[#allocation4 + $0xe] sm:$0xff]
  %v1872 = vld [vmem:[#allocation4 + $0x1e] sm:$0xff]
  %v1873 = vld [vmem:[#allocation4 + $0x26] sm:$0xff]
  %v1874 = vstv %s873
  %v1875 = vmul.f32 %v1874, %v1870
  %v1876 = vmul.f32 %v1874, %v1871
  %v1877 = vmul.f32 %v1874, %v1872
  %v1878 = vmul.f32 %v1874, %v1873
  %v1879 = vld [vmem:[#allocation5 + $0x6] sm:$0xff]
  %v1880 = vld [vmem:[#allocation5 + $0xe] sm:$0xff]
  %v1881 = vld [vmem:[#allocation5 + $0x1e] sm:$0xff]
  %v1882 = vld [vmem:[#allocation5 + $0x26] sm:$0xff]
  %v1883 = vstv %s922
  %v1884 = vmul.f32 %v1883, %v1879
  %v1885 = vmul.f32 %v1883, %v1880
  %v1886 = vmul.f32 %v1883, %v1881
  %v1887 = vmul.f32 %v1883, %v1882
  %v1888 = vadd.f32 %v1875, %v1884
  %v1889 = vadd.f32 %v1876, %v1885
  %v1890 = vadd.f32 %v1877, %v1886
  %v1891 = vadd.f32 %v1878, %v1887
  %v1892 = vadd.f32 %v1788, %v1888
  %v1893 = vadd.f32 %v1789, %v1889
  %v1894 = vadd.f32 %v1790, %v1890
  %v1895 = vadd.f32 %v1791, %v1891
  %v1896 = vld [vmem:[#allocation2] sm:$0xff]
  %v1897 = vld [vmem:[#allocation2 + $0x8] sm:$0xff]
  %v1898 = vld [vmem:[#allocation2 + $0x10] sm:$0x3f]
  %v1899 = vld [vmem:[#allocation2 + $0x18] sm:$0xff]
  %v1900 = vld [vmem:[#allocation2 + $0x20] sm:$0xff]
  %v1901 = vld [vmem:[#allocation2 + $0x28] sm:$0x3f]
  %1908 = vrot.lane.b32.xlu0 %v1896, 124
  %v1909 = vpop.permute.xlu0 %1908
  %1910 = vrot.lane.b32.xlu0 %v1897, 124
  %v1911 = vpop.permute.xlu0 %1910
  %1912 = vrot.lane.b32.xlu0 %v1898, 124
  %v1913 = vpop.permute.xlu0 %1912
  %1914 = vrot.lane.b32.xlu0 %v1899, 124
  %v1915 = vpop.permute.xlu0 %1914
  %1916 = vrot.lane.b32.xlu0 %v1900, 124
  %v1917 = vpop.permute.xlu0 %1916
  %1918 = vrot.lane.b32.xlu0 %v1901, 124
  %v1919 = vpop.permute.xlu0 %1918
  %1926 = vst.msk [vmem:[#allocation4] sm:$0xff] %vm932, %v1909
  %1927 = vst.msk [vmem:[#allocation4 + $0x8] sm:$0xff] %vm932, %v1911
  %1928 = vst.msk [vmem:[#allocation4 + $0x10] sm:$0x3f] %vm935, %v1913
  %1929 = vst.msk [vmem:[#allocation4 + $0x18] sm:$0xff] %vm932, %v1915
  %1930 = vst.msk [vmem:[#allocation4 + $0x20] sm:$0xff] %vm932, %v1917
  %1931 = vst.msk [vmem:[#allocation4 + $0x28] sm:$0x3f] %vm935, %v1919
  %v1932 = vld [vmem:[#allocation3] sm:$0xff]
  %v1933 = vld [vmem:[#allocation3 + $0x8] sm:$0xff]
  %v1934 = vld [vmem:[#allocation3 + $0x10] sm:$0x3f]
  %v1935 = vld [vmem:[#allocation3 + $0x18] sm:$0xff]
  %v1936 = vld [vmem:[#allocation3 + $0x20] sm:$0xff]
  %v1937 = vld [vmem:[#allocation3 + $0x28] sm:$0x3f]
  %1944 = vrot.lane.b32.xlu0 %v1932, 124
  %v1945 = vpop.permute.xlu0 %1944
  %1946 = vrot.lane.b32.xlu0 %v1933, 124
  %v1947 = vpop.permute.xlu0 %1946
  %1948 = vrot.lane.b32.xlu0 %v1934, 124
  %v1949 = vpop.permute.xlu0 %1948
  %1950 = vrot.lane.b32.xlu0 %v1935, 124
  %v1951 = vpop.permute.xlu0 %1950
  %1952 = vrot.lane.b32.xlu0 %v1936, 124
  %v1953 = vpop.permute.xlu0 %1952
  %1954 = vrot.lane.b32.xlu0 %v1937, 124
  %v1955 = vpop.permute.xlu0 %1954
  %1962 = vst.msk [vmem:[#allocation5] sm:$0xff] %vm932, %v1945
  %1963 = vst.msk [vmem:[#allocation5 + $0x8] sm:$0xff] %vm932, %v1947
  %1964 = vst.msk [vmem:[#allocation5 + $0x10] sm:$0x3f] %vm935, %v1949
  %1965 = vst.msk [vmem:[#allocation5 + $0x18] sm:$0xff] %vm932, %v1951
  %1966 = vst.msk [vmem:[#allocation5 + $0x20] sm:$0xff] %vm932, %v1953
  %1967 = vst.msk [vmem:[#allocation5 + $0x28] sm:$0x3f] %vm935, %v1955
  %v1968 = vld [vmem:[#allocation4] sm:$0xff]
  %v1969 = vld [vmem:[#allocation4 + $0x8] sm:$0xff]
  %v1970 = vld [vmem:[#allocation4 + $0x18] sm:$0xff]
  %v1971 = vld [vmem:[#allocation4 + $0x20] sm:$0xff]
  %v1972 = vstv %s832
  %v1973 = vmul.f32 %v1972, %v1968
  %v1974 = vmul.f32 %v1972, %v1969
  %v1975 = vmul.f32 %v1972, %v1970
  %v1976 = vmul.f32 %v1972, %v1971
  %v1977 = vld [vmem:[#allocation5] sm:$0xff]
  %v1978 = vld [vmem:[#allocation5 + $0x8] sm:$0xff]
  %v1979 = vld [vmem:[#allocation5 + $0x18] sm:$0xff]
  %v1980 = vld [vmem:[#allocation5 + $0x20] sm:$0xff]
  %v1981 = vstv %s881
  %v1982 = vmul.f32 %v1981, %v1977
  %v1983 = vmul.f32 %v1981, %v1978
  %v1984 = vmul.f32 %v1981, %v1979
  %v1985 = vmul.f32 %v1981, %v1980
  %v1986 = vadd.f32 %v1973, %v1982
  %v1987 = vadd.f32 %v1974, %v1983
  %v1988 = vadd.f32 %v1975, %v1984
  %v1989 = vadd.f32 %v1976, %v1985
  %v1990 = vadd.f32 %v1814, %v1986
  %v1991 = vadd.f32 %v1815, %v1987
  %v1992 = vadd.f32 %v1816, %v1988
  %v1993 = vadd.f32 %v1817, %v1989
  %v1994 = vld [vmem:[#allocation4 + $0x1] sm:$0xff]
  %v1995 = vld [vmem:[#allocation4 + $0x9] sm:$0xff]
  %v1996 = vld [vmem:[#allocation4 + $0x19] sm:$0xff]
  %v1997 = vld [vmem:[#allocation4 + $0x21] sm:$0xff]
  %v1998 = vstv %s839
  %v1999 = vmul.f32 %v1998, %v1994
  %v2000 = vmul.f32 %v1998, %v1995
  %v2001 = vmul.f32 %v1998, %v1996
  %v2002 = vmul.f32 %v1998, %v1997
  %v2003 = vld [vmem:[#allocation5 + $0x1] sm:$0xff]
  %v2004 = vld [vmem:[#allocation5 + $0x9] sm:$0xff]
  %v2005 = vld [vmem:[#allocation5 + $0x19] sm:$0xff]
  %v2006 = vld [vmem:[#allocation5 + $0x21] sm:$0xff]
  %v2007 = vstv %s888
  %v2008 = vmul.f32 %v2007, %v2003
  %v2009 = vmul.f32 %v2007, %v2004
  %v2010 = vmul.f32 %v2007, %v2005
  %v2011 = vmul.f32 %v2007, %v2006
  %v2012 = vadd.f32 %v1999, %v2008
  %v2013 = vadd.f32 %v2000, %v2009
  %v2014 = vadd.f32 %v2001, %v2010
  %v2015 = vadd.f32 %v2002, %v2011
  %v2016 = vadd.f32 %v1840, %v2012
  %v2017 = vadd.f32 %v1841, %v2013
  %v2018 = vadd.f32 %v1842, %v2014
  %v2019 = vadd.f32 %v1843, %v2015
  %v2020 = vld [vmem:[#allocation4 + $0x2] sm:$0xff]
  %v2021 = vld [vmem:[#allocation4 + $0xa] sm:$0xff]
  %v2022 = vld [vmem:[#allocation4 + $0x1a] sm:$0xff]
  %v2023 = vld [vmem:[#allocation4 + $0x22] sm:$0xff]
  %v2024 = vstv %s846
  %v2025 = vmul.f32 %v2024, %v2020
  %v2026 = vmul.f32 %v2024, %v2021
  %v2027 = vmul.f32 %v2024, %v2022
  %v2028 = vmul.f32 %v2024, %v2023
  %v2029 = vld [vmem:[#allocation5 + $0x2] sm:$0xff]
  %v2030 = vld [vmem:[#allocation5 + $0xa] sm:$0xff]
  %v2031 = vld [vmem:[#allocation5 + $0x1a] sm:$0xff]
  %v2032 = vld [vmem:[#allocation5 + $0x22] sm:$0xff]
  %v2033 = vstv %s895
  %v2034 = vmul.f32 %v2033, %v2029
  %v2035 = vmul.f32 %v2033, %v2030
  %v2036 = vmul.f32 %v2033, %v2031
  %v2037 = vmul.f32 %v2033, %v2032
  %v2038 = vadd.f32 %v2025, %v2034
  %v2039 = vadd.f32 %v2026, %v2035
  %v2040 = vadd.f32 %v2027, %v2036
  %v2041 = vadd.f32 %v2028, %v2037
  %v2042 = vadd.f32 %v1866, %v2038
  %v2043 = vadd.f32 %v1867, %v2039
  %v2044 = vadd.f32 %v1868, %v2040
  %v2045 = vadd.f32 %v1869, %v2041
  %v2046 = vld [vmem:[#allocation4 + $0x3] sm:$0xff]
  %v2047 = vld [vmem:[#allocation4 + $0xb] sm:$0xff]
  %v2048 = vld [vmem:[#allocation4 + $0x1b] sm:$0xff]
  %v2049 = vld [vmem:[#allocation4 + $0x23] sm:$0xff]
  %v2050 = vstv %s853
  %v2051 = vmul.f32 %v2050, %v2046
  %v2052 = vmul.f32 %v2050, %v2047
  %v2053 = vmul.f32 %v2050, %v2048
  %v2054 = vmul.f32 %v2050, %v2049
  %v2055 = vld [vmem:[#allocation5 + $0x3] sm:$0xff]
  %v2056 = vld [vmem:[#allocation5 + $0xb] sm:$0xff]
  %v2057 = vld [vmem:[#allocation5 + $0x1b] sm:$0xff]
  %v2058 = vld [vmem:[#allocation5 + $0x23] sm:$0xff]
  %v2059 = vstv %s902
  %v2060 = vmul.f32 %v2059, %v2055
  %v2061 = vmul.f32 %v2059, %v2056
  %v2062 = vmul.f32 %v2059, %v2057
  %v2063 = vmul.f32 %v2059, %v2058
  %v2064 = vadd.f32 %v2051, %v2060
  %v2065 = vadd.f32 %v2052, %v2061
  %v2066 = vadd.f32 %v2053, %v2062
  %v2067 = vadd.f32 %v2054, %v2063
  %v2068 = vadd.f32 %v1892, %v2064
  %v2069 = vadd.f32 %v1893, %v2065
  %v2070 = vadd.f32 %v1894, %v2066
  %v2071 = vadd.f32 %v1895, %v2067
  %v2072 = vld [vmem:[#allocation4 + $0x4] sm:$0xff]
  %v2073 = vld [vmem:[#allocation4 + $0xc] sm:$0xff]
  %v2074 = vld [vmem:[#allocation4 + $0x1c] sm:$0xff]
  %v2075 = vld [vmem:[#allocation4 + $0x24] sm:$0xff]
  %v2076 = vstv %s860
  %v2077 = vmul.f32 %v2076, %v2072
  %v2078 = vmul.f32 %v2076, %v2073
  %v2079 = vmul.f32 %v2076, %v2074
  %v2080 = vmul.f32 %v2076, %v2075
  %v2081 = vld [vmem:[#allocation5 + $0x4] sm:$0xff]
  %v2082 = vld [vmem:[#allocation5 + $0xc] sm:$0xff]
  %v2083 = vld [vmem:[#allocation5 + $0x1c] sm:$0xff]
  %v2084 = vld [vmem:[#allocation5 + $0x24] sm:$0xff]
  %v2085 = vstv %s909
  %v2086 = vmul.f32 %v2085, %v2081
  %v2087 = vmul.f32 %v2085, %v2082
  %v2088 = vmul.f32 %v2085, %v2083
  %v2089 = vmul.f32 %v2085, %v2084
  %v2090 = vadd.f32 %v2077, %v2086
  %v2091 = vadd.f32 %v2078, %v2087
  %v2092 = vadd.f32 %v2079, %v2088
  %v2093 = vadd.f32 %v2080, %v2089
  %v2094 = vadd.f32 %v1990, %v2090
  %v2095 = vadd.f32 %v1991, %v2091
  %v2096 = vadd.f32 %v1992, %v2092
  %v2097 = vadd.f32 %v1993, %v2093
  %v2098 = vld [vmem:[#allocation4 + $0x5] sm:$0xff]
  %v2099 = vld [vmem:[#allocation4 + $0xd] sm:$0xff]
  %v2100 = vld [vmem:[#allocation4 + $0x1d] sm:$0xff]
  %v2101 = vld [vmem:[#allocation4 + $0x25] sm:$0xff]
  %v2102 = vstv %s867
  %v2103 = vmul.f32 %v2102, %v2098
  %v2104 = vmul.f32 %v2102, %v2099
  %v2105 = vmul.f32 %v2102, %v2100
  %v2106 = vmul.f32 %v2102, %v2101
  %v2107 = vld [vmem:[#allocation5 + $0x5] sm:$0xff]
  %v2108 = vld [vmem:[#allocation5 + $0xd] sm:$0xff]
  %v2109 = vld [vmem:[#allocation5 + $0x1d] sm:$0xff]
  %v2110 = vld [vmem:[#allocation5 + $0x25] sm:$0xff]
  %v2111 = vstv %s916
  %v2112 = vmul.f32 %v2111, %v2107
  %v2113 = vmul.f32 %v2111, %v2108
  %v2114 = vmul.f32 %v2111, %v2109
  %v2115 = vmul.f32 %v2111, %v2110
  %v2116 = vadd.f32 %v2103, %v2112
  %v2117 = vadd.f32 %v2104, %v2113
  %v2118 = vadd.f32 %v2105, %v2114
  %v2119 = vadd.f32 %v2106, %v2115
  %v2120 = vadd.f32 %v2016, %v2116
  %v2121 = vadd.f32 %v2017, %v2117
  %v2122 = vadd.f32 %v2018, %v2118
  %v2123 = vadd.f32 %v2019, %v2119
  %v2124 = vld [vmem:[#allocation4 + $0x6] sm:$0xff]
  %v2125 = vld [vmem:[#allocation4 + $0xe] sm:$0xff]
  %v2126 = vld [vmem:[#allocation4 + $0x1e] sm:$0xff]
  %v2127 = vld [vmem:[#allocation4 + $0x26] sm:$0xff]
  %v2128 = vstv %s874
  %v2129 = vmul.f32 %v2128, %v2124
  %v2130 = vmul.f32 %v2128, %v2125
  %v2131 = vmul.f32 %v2128, %v2126
  %v2132 = vmul.f32 %v2128, %v2127
  %v2133 = vld [vmem:[#allocation5 + $0x6] sm:$0xff]
  %v2134 = vld [vmem:[#allocation5 + $0xe] sm:$0xff]
  %v2135 = vld [vmem:[#allocation5 + $0x1e] sm:$0xff]
  %v2136 = vld [vmem:[#allocation5 + $0x26] sm:$0xff]
  %v2137 = vstv %s923
  %v2138 = vmul.f32 %v2137, %v2133
  %v2139 = vmul.f32 %v2137, %v2134
  %v2140 = vmul.f32 %v2137, %v2135
  %v2141 = vmul.f32 %v2137, %v2136
  %v2142 = vadd.f32 %v2129, %v2138
  %v2143 = vadd.f32 %v2130, %v2139
  %v2144 = vadd.f32 %v2131, %v2140
  %v2145 = vadd.f32 %v2132, %v2141
  %v2146 = vadd.f32 %v2042, %v2142
  %v2147 = vadd.f32 %v2043, %v2143
  %v2148 = vadd.f32 %v2044, %v2144
  %v2149 = vadd.f32 %v2045, %v2145
  %v2150 = vld [vmem:[#allocation2] sm:$0xff]
  %v2151 = vld [vmem:[#allocation2 + $0x8] sm:$0xff]
  %v2152 = vld [vmem:[#allocation2 + $0x10] sm:$0x3f]
  %v2153 = vld [vmem:[#allocation2 + $0x18] sm:$0xff]
  %v2154 = vld [vmem:[#allocation2 + $0x20] sm:$0xff]
  %v2155 = vld [vmem:[#allocation2 + $0x28] sm:$0x3f]
  %2162 = vrot.lane.b32.xlu0 %v2150, 123
  %v2163 = vpop.permute.xlu0 %2162
  %2164 = vrot.lane.b32.xlu0 %v2151, 123
  %v2165 = vpop.permute.xlu0 %2164
  %2166 = vrot.lane.b32.xlu0 %v2152, 123
  %v2167 = vpop.permute.xlu0 %2166
  %2168 = vrot.lane.b32.xlu0 %v2153, 123
  %v2169 = vpop.permute.xlu0 %2168
  %2170 = vrot.lane.b32.xlu0 %v2154, 123
  %v2171 = vpop.permute.xlu0 %2170
  %2172 = vrot.lane.b32.xlu0 %v2155, 123
  %v2173 = vpop.permute.xlu0 %2172
  %2180 = vst.msk [vmem:[#allocation4] sm:$0xff] %vm932, %v2163
  %2181 = vst.msk [vmem:[#allocation4 + $0x8] sm:$0xff] %vm932, %v2165
  %2182 = vst.msk [vmem:[#allocation4 + $0x10] sm:$0x3f] %vm935, %v2167
  %2183 = vst.msk [vmem:[#allocation4 + $0x18] sm:$0xff] %vm932, %v2169
  %2184 = vst.msk [vmem:[#allocation4 + $0x20] sm:$0xff] %vm932, %v2171
  %2185 = vst.msk [vmem:[#allocation4 + $0x28] sm:$0x3f] %vm935, %v2173
  %v2186 = vld [vmem:[#allocation3] sm:$0xff]
  %v2187 = vld [vmem:[#allocation3 + $0x8] sm:$0xff]
  %v2188 = vld [vmem:[#allocation3 + $0x10] sm:$0x3f]
  %v2189 = vld [vmem:[#allocation3 + $0x18] sm:$0xff]
  %v2190 = vld [vmem:[#allocation3 + $0x20] sm:$0xff]
  %v2191 = vld [vmem:[#allocation3 + $0x28] sm:$0x3f]
  %2198 = vrot.lane.b32.xlu0 %v2186, 123
  %v2199 = vpop.permute.xlu0 %2198
  %2200 = vrot.lane.b32.xlu0 %v2187, 123
  %v2201 = vpop.permute.xlu0 %2200
  %2202 = vrot.lane.b32.xlu0 %v2188, 123
  %v2203 = vpop.permute.xlu0 %2202
  %2204 = vrot.lane.b32.xlu0 %v2189, 123
  %v2205 = vpop.permute.xlu0 %2204
  %2206 = vrot.lane.b32.xlu0 %v2190, 123
  %v2207 = vpop.permute.xlu0 %2206
  %2208 = vrot.lane.b32.xlu0 %v2191, 123
  %v2209 = vpop.permute.xlu0 %2208
  %2216 = vst.msk [vmem:[#allocation5] sm:$0xff] %vm932, %v2199
  %2217 = vst.msk [vmem:[#allocation5 + $0x8] sm:$0xff] %vm932, %v2201
  %2218 = vst.msk [vmem:[#allocation5 + $0x10] sm:$0x3f] %vm935, %v2203
  %2219 = vst.msk [vmem:[#allocation5 + $0x18] sm:$0xff] %vm932, %v2205
  %2220 = vst.msk [vmem:[#allocation5 + $0x20] sm:$0xff] %vm932, %v2207
  %2221 = vst.msk [vmem:[#allocation5 + $0x28] sm:$0x3f] %vm935, %v2209
  %v2222 = vld [vmem:[#allocation4] sm:$0xff]
  %v2223 = vld [vmem:[#allocation4 + $0x8] sm:$0xff]
  %v2224 = vld [vmem:[#allocation4 + $0x18] sm:$0xff]
  %v2225 = vld [vmem:[#allocation4 + $0x20] sm:$0xff]
  %v2226 = vstv %s833
  %v2227 = vmul.f32 %v2226, %v2222
  %v2228 = vmul.f32 %v2226, %v2223
  %v2229 = vmul.f32 %v2226, %v2224
  %v2230 = vmul.f32 %v2226, %v2225
  %v2231 = vld [vmem:[#allocation5] sm:$0xff]
  %v2232 = vld [vmem:[#allocation5 + $0x8] sm:$0xff]
  %v2233 = vld [vmem:[#allocation5 + $0x18] sm:$0xff]
  %v2234 = vld [vmem:[#allocation5 + $0x20] sm:$0xff]
  %v2235 = vstv %s882
  %v2236 = vmul.f32 %v2235, %v2231
  %v2237 = vmul.f32 %v2235, %v2232
  %v2238 = vmul.f32 %v2235, %v2233
  %v2239 = vmul.f32 %v2235, %v2234
  %v2240 = vadd.f32 %v2227, %v2236
  %v2241 = vadd.f32 %v2228, %v2237
  %v2242 = vadd.f32 %v2229, %v2238
  %v2243 = vadd.f32 %v2230, %v2239
  %v2244 = vadd.f32 %v2068, %v2240
  %v2245 = vadd.f32 %v2069, %v2241
  %v2246 = vadd.f32 %v2070, %v2242
  %v2247 = vadd.f32 %v2071, %v2243
  %v2248 = vld [vmem:[#allocation4 + $0x1] sm:$0xff]
  %v2249 = vld [vmem:[#allocation4 + $0x9] sm:$0xff]
  %v2250 = vld [vmem:[#allocation4 + $0x19] sm:$0xff]
  %v2251 = vld [vmem:[#allocation4 + $0x21] sm:$0xff]
  %v2252 = vstv %s840
  %v2253 = vmul.f32 %v2252, %v2248
  %v2254 = vmul.f32 %v2252, %v2249
  %v2255 = vmul.f32 %v2252, %v2250
  %v2256 = vmul.f32 %v2252, %v2251
  %v2257 = vld [vmem:[#allocation5 + $0x1] sm:$0xff]
  %v2258 = vld [vmem:[#allocation5 + $0x9] sm:$0xff]
  %v2259 = vld [vmem:[#allocation5 + $0x19] sm:$0xff]
  %v2260 = vld [vmem:[#allocation5 + $0x21] sm:$0xff]
  %v2261 = vstv %s889
  %v2262 = vmul.f32 %v2261, %v2257
  %v2263 = vmul.f32 %v2261, %v2258
  %v2264 = vmul.f32 %v2261, %v2259
  %v2265 = vmul.f32 %v2261, %v2260
  %v2266 = vadd.f32 %v2253, %v2262
  %v2267 = vadd.f32 %v2254, %v2263
  %v2268 = vadd.f32 %v2255, %v2264
  %v2269 = vadd.f32 %v2256, %v2265
  %v2270 = vadd.f32 %v2094, %v2266
  %v2271 = vadd.f32 %v2095, %v2267
  %v2272 = vadd.f32 %v2096, %v2268
  %v2273 = vadd.f32 %v2097, %v2269
  %v2274 = vld [vmem:[#allocation4 + $0x2] sm:$0xff]
  %v2275 = vld [vmem:[#allocation4 + $0xa] sm:$0xff]
  %v2276 = vld [vmem:[#allocation4 + $0x1a] sm:$0xff]
  %v2277 = vld [vmem:[#allocation4 + $0x22] sm:$0xff]
  %v2278 = vstv %s847
  %v2279 = vmul.f32 %v2278, %v2274
  %v2280 = vmul.f32 %v2278, %v2275
  %v2281 = vmul.f32 %v2278, %v2276
  %v2282 = vmul.f32 %v2278, %v2277
  %v2283 = vld [vmem:[#allocation5 + $0x2] sm:$0xff]
  %v2284 = vld [vmem:[#allocation5 + $0xa] sm:$0xff]
  %v2285 = vld [vmem:[#allocation5 + $0x1a] sm:$0xff]
  %v2286 = vld [vmem:[#allocation5 + $0x22] sm:$0xff]
  %v2287 = vstv %s896
  %v2288 = vmul.f32 %v2287, %v2283
  %v2289 = vmul.f32 %v2287, %v2284
  %v2290 = vmul.f32 %v2287, %v2285
  %v2291 = vmul.f32 %v2287, %v2286
  %v2292 = vadd.f32 %v2279, %v2288
  %v2293 = vadd.f32 %v2280, %v2289
  %v2294 = vadd.f32 %v2281, %v2290
  %v2295 = vadd.f32 %v2282, %v2291
  %v2296 = vadd.f32 %v2120, %v2292
  %v2297 = vadd.f32 %v2121, %v2293
  %v2298 = vadd.f32 %v2122, %v2294
  %v2299 = vadd.f32 %v2123, %v2295
  %v2300 = vld [vmem:[#allocation4 + $0x3] sm:$0xff]
  %v2301 = vld [vmem:[#allocation4 + $0xb] sm:$0xff]
  %v2302 = vld [vmem:[#allocation4 + $0x1b] sm:$0xff]
  %v2303 = vld [vmem:[#allocation4 + $0x23] sm:$0xff]
  %v2304 = vstv %s854
  %v2305 = vmul.f32 %v2304, %v2300
  %v2306 = vmul.f32 %v2304, %v2301
  %v2307 = vmul.f32 %v2304, %v2302
  %v2308 = vmul.f32 %v2304, %v2303
  %v2309 = vld [vmem:[#allocation5 + $0x3] sm:$0xff]
  %v2310 = vld [vmem:[#allocation5 + $0xb] sm:$0xff]
  %v2311 = vld [vmem:[#allocation5 + $0x1b] sm:$0xff]
  %v2312 = vld [vmem:[#allocation5 + $0x23] sm:$0xff]
  %v2313 = vstv %s903
  %v2314 = vmul.f32 %v2313, %v2309
  %v2315 = vmul.f32 %v2313, %v2310
  %v2316 = vmul.f32 %v2313, %v2311
  %v2317 = vmul.f32 %v2313, %v2312
  %v2318 = vadd.f32 %v2305, %v2314
  %v2319 = vadd.f32 %v2306, %v2315
  %v2320 = vadd.f32 %v2307, %v2316
  %v2321 = vadd.f32 %v2308, %v2317
  %v2322 = vadd.f32 %v2146, %v2318
  %v2323 = vadd.f32 %v2147, %v2319
  %v2324 = vadd.f32 %v2148, %v2320
  %v2325 = vadd.f32 %v2149, %v2321
  %v2326 = vld [vmem:[#allocation4 + $0x4] sm:$0xff]
  %v2327 = vld [vmem:[#allocation4 + $0xc] sm:$0xff]
  %v2328 = vld [vmem:[#allocation4 + $0x1c] sm:$0xff]
  %v2329 = vld [vmem:[#allocation4 + $0x24] sm:$0xff]
  %v2330 = vstv %s861
  %v2331 = vmul.f32 %v2330, %v2326
  %v2332 = vmul.f32 %v2330, %v2327
  %v2333 = vmul.f32 %v2330, %v2328
  %v2334 = vmul.f32 %v2330, %v2329
  %v2335 = vld [vmem:[#allocation5 + $0x4] sm:$0xff]
  %v2336 = vld [vmem:[#allocation5 + $0xc] sm:$0xff]
  %v2337 = vld [vmem:[#allocation5 + $0x1c] sm:$0xff]
  %v2338 = vld [vmem:[#allocation5 + $0x24] sm:$0xff]
  %v2339 = vstv %s910
  %v2340 = vmul.f32 %v2339, %v2335
  %v2341 = vmul.f32 %v2339, %v2336
  %v2342 = vmul.f32 %v2339, %v2337
  %v2343 = vmul.f32 %v2339, %v2338
  %v2344 = vadd.f32 %v2331, %v2340
  %v2345 = vadd.f32 %v2332, %v2341
  %v2346 = vadd.f32 %v2333, %v2342
  %v2347 = vadd.f32 %v2334, %v2343
  %v2348 = vadd.f32 %v2244, %v2344
  %v2349 = vadd.f32 %v2245, %v2345
  %v2350 = vadd.f32 %v2246, %v2346
  %v2351 = vadd.f32 %v2247, %v2347
  %v2352 = vld [vmem:[#allocation4 + $0x5] sm:$0xff]
  %v2353 = vld [vmem:[#allocation4 + $0xd] sm:$0xff]
  %v2354 = vld [vmem:[#allocation4 + $0x1d] sm:$0xff]
  %v2355 = vld [vmem:[#allocation4 + $0x25] sm:$0xff]
  %v2356 = vstv %s868
  %v2357 = vmul.f32 %v2356, %v2352
  %v2358 = vmul.f32 %v2356, %v2353
  %v2359 = vmul.f32 %v2356, %v2354
  %v2360 = vmul.f32 %v2356, %v2355
  %v2361 = vld [vmem:[#allocation5 + $0x5] sm:$0xff]
  %v2362 = vld [vmem:[#allocation5 + $0xd] sm:$0xff]
  %v2363 = vld [vmem:[#allocation5 + $0x1d] sm:$0xff]
  %v2364 = vld [vmem:[#allocation5 + $0x25] sm:$0xff]
  %v2365 = vstv %s917
  %v2366 = vmul.f32 %v2365, %v2361
  %v2367 = vmul.f32 %v2365, %v2362
  %v2368 = vmul.f32 %v2365, %v2363
  %v2369 = vmul.f32 %v2365, %v2364
  %v2370 = vadd.f32 %v2357, %v2366
  %v2371 = vadd.f32 %v2358, %v2367
  %v2372 = vadd.f32 %v2359, %v2368
  %v2373 = vadd.f32 %v2360, %v2369
  %v2374 = vadd.f32 %v2270, %v2370
  %v2375 = vadd.f32 %v2271, %v2371
  %v2376 = vadd.f32 %v2272, %v2372
  %v2377 = vadd.f32 %v2273, %v2373
  %v2378 = vld [vmem:[#allocation4 + $0x6] sm:$0xff]
  %v2379 = vld [vmem:[#allocation4 + $0xe] sm:$0xff]
  %v2380 = vld [vmem:[#allocation4 + $0x1e] sm:$0xff]
  %v2381 = vld [vmem:[#allocation4 + $0x26] sm:$0xff]
  %v2382 = vstv %s875
  %v2383 = vmul.f32 %v2382, %v2378
  %v2384 = vmul.f32 %v2382, %v2379
  %v2385 = vmul.f32 %v2382, %v2380
  %v2386 = vmul.f32 %v2382, %v2381
  %v2387 = vld [vmem:[#allocation5 + $0x6] sm:$0xff]
  %v2388 = vld [vmem:[#allocation5 + $0xe] sm:$0xff]
  %v2389 = vld [vmem:[#allocation5 + $0x1e] sm:$0xff]
  %v2390 = vld [vmem:[#allocation5 + $0x26] sm:$0xff]
  %v2391 = vstv %s924
  %v2392 = vmul.f32 %v2391, %v2387
  %v2393 = vmul.f32 %v2391, %v2388
  %v2394 = vmul.f32 %v2391, %v2389
  %v2395 = vmul.f32 %v2391, %v2390
  %v2396 = vadd.f32 %v2383, %v2392
  %v2397 = vadd.f32 %v2384, %v2393
  %v2398 = vadd.f32 %v2385, %v2394
  %v2399 = vadd.f32 %v2386, %v2395
  %v2400 = vadd.f32 %v2296, %v2396
  %v2401 = vadd.f32 %v2297, %v2397
  %v2402 = vadd.f32 %v2298, %v2398
  %v2403 = vadd.f32 %v2299, %v2399
  %v2404 = vld [vmem:[#allocation2] sm:$0xff]
  %v2405 = vld [vmem:[#allocation2 + $0x8] sm:$0xff]
  %v2406 = vld [vmem:[#allocation2 + $0x10] sm:$0x3f]
  %v2407 = vld [vmem:[#allocation2 + $0x18] sm:$0xff]
  %v2408 = vld [vmem:[#allocation2 + $0x20] sm:$0xff]
  %v2409 = vld [vmem:[#allocation2 + $0x28] sm:$0x3f]
  %2416 = vrot.lane.b32.xlu0 %v2404, 122
  %v2417 = vpop.permute.xlu0 %2416
  %2418 = vrot.lane.b32.xlu0 %v2405, 122
  %v2419 = vpop.permute.xlu0 %2418
  %2420 = vrot.lane.b32.xlu0 %v2406, 122
  %v2421 = vpop.permute.xlu0 %2420
  %2422 = vrot.lane.b32.xlu0 %v2407, 122
  %v2423 = vpop.permute.xlu0 %2422
  %2424 = vrot.lane.b32.xlu0 %v2408, 122
  %v2425 = vpop.permute.xlu0 %2424
  %2426 = vrot.lane.b32.xlu0 %v2409, 122
  %v2427 = vpop.permute.xlu0 %2426
  %2434 = vst.msk [vmem:[#allocation4] sm:$0xff] %vm932, %v2417
  %2435 = vst.msk [vmem:[#allocation4 + $0x8] sm:$0xff] %vm932, %v2419
  %2436 = vst.msk [vmem:[#allocation4 + $0x10] sm:$0x3f] %vm935, %v2421
  %2437 = vst.msk [vmem:[#allocation4 + $0x18] sm:$0xff] %vm932, %v2423
  %2438 = vst.msk [vmem:[#allocation4 + $0x20] sm:$0xff] %vm932, %v2425
  %2439 = vst.msk [vmem:[#allocation4 + $0x28] sm:$0x3f] %vm935, %v2427
  %v2440 = vld [vmem:[#allocation3] sm:$0xff]
  %v2441 = vld [vmem:[#allocation3 + $0x8] sm:$0xff]
  %v2442 = vld [vmem:[#allocation3 + $0x10] sm:$0x3f]
  %v2443 = vld [vmem:[#allocation3 + $0x18] sm:$0xff]
  %v2444 = vld [vmem:[#allocation3 + $0x20] sm:$0xff]
  %v2445 = vld [vmem:[#allocation3 + $0x28] sm:$0x3f]
  %2452 = vrot.lane.b32.xlu0 %v2440, 122
  %v2453 = vpop.permute.xlu0 %2452
  %2454 = vrot.lane.b32.xlu0 %v2441, 122
  %v2455 = vpop.permute.xlu0 %2454
  %2456 = vrot.lane.b32.xlu0 %v2442, 122
  %v2457 = vpop.permute.xlu0 %2456
  %2458 = vrot.lane.b32.xlu0 %v2443, 122
  %v2459 = vpop.permute.xlu0 %2458
  %2460 = vrot.lane.b32.xlu0 %v2444, 122
  %v2461 = vpop.permute.xlu0 %2460
  %2462 = vrot.lane.b32.xlu0 %v2445, 122
  %v2463 = vpop.permute.xlu0 %2462
  %2470 = vst.msk [vmem:[#allocation5] sm:$0xff] %vm932, %v2453
  %2471 = vst.msk [vmem:[#allocation5 + $0x8] sm:$0xff] %vm932, %v2455
  %2472 = vst.msk [vmem:[#allocation5 + $0x10] sm:$0x3f] %vm935, %v2457
  %2473 = vst.msk [vmem:[#allocation5 + $0x18] sm:$0xff] %vm932, %v2459
  %2474 = vst.msk [vmem:[#allocation5 + $0x20] sm:$0xff] %vm932, %v2461
  %2475 = vst.msk [vmem:[#allocation5 + $0x28] sm:$0x3f] %vm935, %v2463
  %v2476 = vld [vmem:[#allocation4] sm:$0xff]
  %v2477 = vld [vmem:[#allocation4 + $0x8] sm:$0xff]
  %v2478 = vld [vmem:[#allocation4 + $0x18] sm:$0xff]
  %v2479 = vld [vmem:[#allocation4 + $0x20] sm:$0xff]
  %v2480 = vstv %s834
  %v2481 = vmul.f32 %v2480, %v2476
  %v2482 = vmul.f32 %v2480, %v2477
  %v2483 = vmul.f32 %v2480, %v2478
  %v2484 = vmul.f32 %v2480, %v2479
  %v2485 = vld [vmem:[#allocation5] sm:$0xff]
  %v2486 = vld [vmem:[#allocation5 + $0x8] sm:$0xff]
  %v2487 = vld [vmem:[#allocation5 + $0x18] sm:$0xff]
  %v2488 = vld [vmem:[#allocation5 + $0x20] sm:$0xff]
  %v2489 = vstv %s883
  %v2490 = vmul.f32 %v2489, %v2485
  %v2491 = vmul.f32 %v2489, %v2486
  %v2492 = vmul.f32 %v2489, %v2487
  %v2493 = vmul.f32 %v2489, %v2488
  %v2494 = vadd.f32 %v2481, %v2490
  %v2495 = vadd.f32 %v2482, %v2491
  %v2496 = vadd.f32 %v2483, %v2492
  %v2497 = vadd.f32 %v2484, %v2493
  %v2498 = vadd.f32 %v2322, %v2494
  %v2499 = vadd.f32 %v2323, %v2495
  %v2500 = vadd.f32 %v2324, %v2496
  %v2501 = vadd.f32 %v2325, %v2497
  %v2502 = vld [vmem:[#allocation4 + $0x1] sm:$0xff]
  %v2503 = vld [vmem:[#allocation4 + $0x9] sm:$0xff]
  %v2504 = vld [vmem:[#allocation4 + $0x19] sm:$0xff]
  %v2505 = vld [vmem:[#allocation4 + $0x21] sm:$0xff]
  %v2506 = vstv %s841
  %v2507 = vmul.f32 %v2506, %v2502
  %v2508 = vmul.f32 %v2506, %v2503
  %v2509 = vmul.f32 %v2506, %v2504
  %v2510 = vmul.f32 %v2506, %v2505
  %v2511 = vld [vmem:[#allocation5 + $0x1] sm:$0xff]
  %v2512 = vld [vmem:[#allocation5 + $0x9] sm:$0xff]
  %v2513 = vld [vmem:[#allocation5 + $0x19] sm:$0xff]
  %v2514 = vld [vmem:[#allocation5 + $0x21] sm:$0xff]
  %v2515 = vstv %s890
  %v2516 = vmul.f32 %v2515, %v2511
  %v2517 = vmul.f32 %v2515, %v2512
  %v2518 = vmul.f32 %v2515, %v2513
  %v2519 = vmul.f32 %v2515, %v2514
  %v2520 = vadd.f32 %v2507, %v2516
  %v2521 = vadd.f32 %v2508, %v2517
  %v2522 = vadd.f32 %v2509, %v2518
  %v2523 = vadd.f32 %v2510, %v2519
  %v2524 = vadd.f32 %v2348, %v2520
  %v2525 = vadd.f32 %v2349, %v2521
  %v2526 = vadd.f32 %v2350, %v2522
  %v2527 = vadd.f32 %v2351, %v2523
  %v2528 = vld [vmem:[#allocation4 + $0x2] sm:$0xff]
  %v2529 = vld [vmem:[#allocation4 + $0xa] sm:$0xff]
  %v2530 = vld [vmem:[#allocation4 + $0x1a] sm:$0xff]
  %v2531 = vld [vmem:[#allocation4 + $0x22] sm:$0xff]
  %v2532 = vstv %s848
  %v2533 = vmul.f32 %v2532, %v2528
  %v2534 = vmul.f32 %v2532, %v2529
  %v2535 = vmul.f32 %v2532, %v2530
  %v2536 = vmul.f32 %v2532, %v2531
  %v2537 = vld [vmem:[#allocation5 + $0x2] sm:$0xff]
  %v2538 = vld [vmem:[#allocation5 + $0xa] sm:$0xff]
  %v2539 = vld [vmem:[#allocation5 + $0x1a] sm:$0xff]
  %v2540 = vld [vmem:[#allocation5 + $0x22] sm:$0xff]
  %v2541 = vstv %s897
  %v2542 = vmul.f32 %v2541, %v2537
  %v2543 = vmul.f32 %v2541, %v2538
  %v2544 = vmul.f32 %v2541, %v2539
  %v2545 = vmul.f32 %v2541, %v2540
  %v2546 = vadd.f32 %v2533, %v2542
  %v2547 = vadd.f32 %v2534, %v2543
  %v2548 = vadd.f32 %v2535, %v2544
  %v2549 = vadd.f32 %v2536, %v2545
  %v2550 = vadd.f32 %v2374, %v2546
  %v2551 = vadd.f32 %v2375, %v2547
  %v2552 = vadd.f32 %v2376, %v2548
  %v2553 = vadd.f32 %v2377, %v2549
  %v2554 = vld [vmem:[#allocation4 + $0x3] sm:$0xff]
  %v2555 = vld [vmem:[#allocation4 + $0xb] sm:$0xff]
  %v2556 = vld [vmem:[#allocation4 + $0x1b] sm:$0xff]
  %v2557 = vld [vmem:[#allocation4 + $0x23] sm:$0xff]
  %v2558 = vstv %s855
  %v2559 = vmul.f32 %v2558, %v2554
  %v2560 = vmul.f32 %v2558, %v2555
  %v2561 = vmul.f32 %v2558, %v2556
  %v2562 = vmul.f32 %v2558, %v2557
  %v2563 = vld [vmem:[#allocation5 + $0x3] sm:$0xff]
  %v2564 = vld [vmem:[#allocation5 + $0xb] sm:$0xff]
  %v2565 = vld [vmem:[#allocation5 + $0x1b] sm:$0xff]
  %v2566 = vld [vmem:[#allocation5 + $0x23] sm:$0xff]
  %v2567 = vstv %s904
  %v2568 = vmul.f32 %v2567, %v2563
  %v2569 = vmul.f32 %v2567, %v2564
  %v2570 = vmul.f32 %v2567, %v2565
  %v2571 = vmul.f32 %v2567, %v2566
  %v2572 = vadd.f32 %v2559, %v2568
  %v2573 = vadd.f32 %v2560, %v2569
  %v2574 = vadd.f32 %v2561, %v2570
  %v2575 = vadd.f32 %v2562, %v2571
  %v2576 = vadd.f32 %v2400, %v2572
  %v2577 = vadd.f32 %v2401, %v2573
  %v2578 = vadd.f32 %v2402, %v2574
  %v2579 = vadd.f32 %v2403, %v2575
  %v2580 = vld [vmem:[#allocation4 + $0x4] sm:$0xff]
  %v2581 = vld [vmem:[#allocation4 + $0xc] sm:$0xff]
  %v2582 = vld [vmem:[#allocation4 + $0x1c] sm:$0xff]
  %v2583 = vld [vmem:[#allocation4 + $0x24] sm:$0xff]
  %v2584 = vstv %s862
  %v2585 = vmul.f32 %v2584, %v2580
  %v2586 = vmul.f32 %v2584, %v2581
  %v2587 = vmul.f32 %v2584, %v2582
  %v2588 = vmul.f32 %v2584, %v2583
  %v2589 = vld [vmem:[#allocation5 + $0x4] sm:$0xff]
  %v2590 = vld [vmem:[#allocation5 + $0xc] sm:$0xff]
  %v2591 = vld [vmem:[#allocation5 + $0x1c] sm:$0xff]
  %v2592 = vld [vmem:[#allocation5 + $0x24] sm:$0xff]
  %v2593 = vstv %s911
  %v2594 = vmul.f32 %v2593, %v2589
  %v2595 = vmul.f32 %v2593, %v2590
  %v2596 = vmul.f32 %v2593, %v2591
  %v2597 = vmul.f32 %v2593, %v2592
  %v2598 = vadd.f32 %v2585, %v2594
  %v2599 = vadd.f32 %v2586, %v2595
  %v2600 = vadd.f32 %v2587, %v2596
  %v2601 = vadd.f32 %v2588, %v2597
  %v2602 = vadd.f32 %v2498, %v2598
  %v2603 = vadd.f32 %v2499, %v2599
  %v2604 = vadd.f32 %v2500, %v2600
  %v2605 = vadd.f32 %v2501, %v2601
  %v2606 = vld [vmem:[#allocation4 + $0x5] sm:$0xff]
  %v2607 = vld [vmem:[#allocation4 + $0xd] sm:$0xff]
  %v2608 = vld [vmem:[#allocation4 + $0x1d] sm:$0xff]
  %v2609 = vld [vmem:[#allocation4 + $0x25] sm:$0xff]
  %v2610 = vstv %s869
  %v2611 = vmul.f32 %v2610, %v2606
  %v2612 = vmul.f32 %v2610, %v2607
  %v2613 = vmul.f32 %v2610, %v2608
  %v2614 = vmul.f32 %v2610, %v2609
  %v2615 = vld [vmem:[#allocation5 + $0x5] sm:$0xff]
  %v2616 = vld [vmem:[#allocation5 + $0xd] sm:$0xff]
  %v2617 = vld [vmem:[#allocation5 + $0x1d] sm:$0xff]
  %v2618 = vld [vmem:[#allocation5 + $0x25] sm:$0xff]
  %v2619 = vstv %s918
  %v2620 = vmul.f32 %v2619, %v2615
  %v2621 = vmul.f32 %v2619, %v2616
  %v2622 = vmul.f32 %v2619, %v2617
  %v2623 = vmul.f32 %v2619, %v2618
  %v2624 = vadd.f32 %v2611, %v2620
  %v2625 = vadd.f32 %v2612, %v2621
  %v2626 = vadd.f32 %v2613, %v2622
  %v2627 = vadd.f32 %v2614, %v2623
  %v2628 = vadd.f32 %v2524, %v2624
  %v2629 = vadd.f32 %v2525, %v2625
  %v2630 = vadd.f32 %v2526, %v2626
  %v2631 = vadd.f32 %v2527, %v2627
  %v2632 = vld [vmem:[#allocation4 + $0x6] sm:$0xff]
  %v2633 = vld [vmem:[#allocation4 + $0xe] sm:$0xff]
  %v2634 = vld [vmem:[#allocation4 + $0x1e] sm:$0xff]
  %v2635 = vld [vmem:[#allocation4 + $0x26] sm:$0xff]
  %v2636 = vstv %s876
  %v2637 = vmul.f32 %v2636, %v2632
  %v2638 = vmul.f32 %v2636, %v2633
  %v2639 = vmul.f32 %v2636, %v2634
  %v2640 = vmul.f32 %v2636, %v2635
  %v2641 = vld [vmem:[#allocation5 + $0x6] sm:$0xff]
  %v2642 = vld [vmem:[#allocation5 + $0xe] sm:$0xff]
  %v2643 = vld [vmem:[#allocation5 + $0x1e] sm:$0xff]
  %v2644 = vld [vmem:[#allocation5 + $0x26] sm:$0xff]
  %v2645 = vstv %s925
  %v2646 = vmul.f32 %v2645, %v2641
  %v2647 = vmul.f32 %v2645, %v2642
  %v2648 = vmul.f32 %v2645, %v2643
  %v2649 = vmul.f32 %v2645, %v2644
  %v2650 = vadd.f32 %v2637, %v2646
  %v2651 = vadd.f32 %v2638, %v2647
  %v2652 = vadd.f32 %v2639, %v2648
  %v2653 = vadd.f32 %v2640, %v2649
  %v2654 = vadd.f32 %v2550, %v2650
  %v2655 = vadd.f32 %v2551, %v2651
  %v2656 = vadd.f32 %v2552, %v2652
  %v2657 = vadd.f32 %v2553, %v2653
  %v2658 = vadd.f32 %v2654, %v2628
  %v2659 = vadd.f32 %v2655, %v2629
  %v2660 = vadd.f32 %v2656, %v2630
  %v2661 = vadd.f32 %v2657, %v2631
  %v2662 = vadd.f32 %v2602, %v2576
  %v2663 = vadd.f32 %v2603, %v2577
  %v2664 = vadd.f32 %v2604, %v2578
  %v2665 = vadd.f32 %v2605, %v2579
  %v2666 = vadd.f32 %v2658, %v2662
  %v2667 = vadd.f32 %v2659, %v2663
  %v2668 = vadd.f32 %v2660, %v2664
  %v2669 = vadd.f32 %v2661, %v2665
  %v2670 = vxor.u32 %v2666, 2147483648
  %v2671 = vxor.u32 %v2667, 2147483648
  %v2672 = vxor.u32 %v2668, 2147483648
  %v2673 = vxor.u32 %v2669, 2147483648
  %v2674 = vmul.f32 %v2670, 1.442695
  %v2675 = vpow.pop %v2674
  %v2676 = vmul.f32 %v2671, 1.442695
  %v2677 = vpow.pop %v2676
  %v2678 = vmul.f32 %v2672, 1.442695
  %v2679 = vpow.pop %v2678
  %v2680 = vmul.f32 %v2673, 1.442695
  %v2681 = vpow.pop %v2680
  %v2682 = vadd.f32 %v2675, 1.0
  %v2683 = vadd.f32 %v2677, 1.0
  %v2684 = vadd.f32 %v2679, 1.0
  %v2685 = vadd.f32 %v2681, 1.0
  %v2686 = vrcp.pop %v2682
  %v2687 = vmul.f32 1.0, %v2686
  %v2688 = vrcp.pop %v2683
  %v2689 = vmul.f32 1.0, %v2688
  %v2690 = vrcp.pop %v2684
  %v2691 = vmul.f32 1.0, %v2690
  %v2692 = vrcp.pop %v2685
  %v2693 = vmul.f32 1.0, %v2692
  %2694 = vst.msk [vmem:[#allocation8] sm:$0xff] %vm932, %v2687
  %2695 = vst.msk [vmem:[#allocation8 + $0x8] sm:$0xff] %vm932, %v2689
  %2696 = vst.msk [vmem:[#allocation8 + $0x10] sm:$0xff] %vm932, %v2691
  %2697 = vst.msk [vmem:[#allocation8 + $0x18] sm:$0xff] %vm932, %v2693
  %v2698 = vld [vmem:[#allocation8] sm:$0x1]
  %v2699 = vld [vmem:[#allocation8 + $0x10] sm:$0x1]
  %vm2700 = vcmp.lt.s32.totalorder %v116, 16
  %vm2701 = vmand %vm117, %vm2700
  %2702 = vst.msk [vmem:[#allocation9] sm:$0x1] %vm2701, %v2698
  %2703 = vst.msk [vmem:[#allocation9 + $0x2] sm:$0x1] %vm2701, %v2699
  %v2704 = vld [vmem:[#allocation8 + $0x1] sm:$0x1]
  %v2705 = vld [vmem:[#allocation8 + $0x11] sm:$0x1]
  %v2709 = vunpack.c.l.s4 1966171168
  %v2710 = vunpack.c.0.s8 %v2709
  %v2711 = vlaneseq
  %v2712 = vshrl.u32 %v2711, 7
  %v2713 = vsub.s32 %v2710, %v2712
  %v2714 = vrot.slane %v2704, %v2713
  %v2716 = vunpack.c.l.s4 1966171168
  %v2717 = vunpack.c.0.s8 %v2716
  %v2718 = vlaneseq
  %v2719 = vshrl.u32 %v2718, 7
  %v2720 = vsub.s32 %v2717, %v2719
  %v2721 = vrot.slane %v2714, %v2720
  %v2723 = vunpack.c.l.s4 1966171168
  %v2724 = vunpack.c.0.s8 %v2723
  %v2725 = vlaneseq
  %v2726 = vshrl.u32 %v2725, 7
  %v2727 = vsub.s32 %v2724, %v2726
  %v2728 = vrot.slane %v2705, %v2727
  %v2730 = vunpack.c.l.s4 1966171168
  %v2731 = vunpack.c.0.s8 %v2730
  %v2732 = vlaneseq
  %v2733 = vshrl.u32 %v2732, 7
  %v2734 = vsub.s32 %v2731, %v2733
  %v2735 = vrot.slane %v2728, %v2734
  %2736 = vrot.lane.b32.xlu0 %v2721, 16
  %v2737 = vpop.permute.xlu0 %2736
  %2738 = vrot.lane.b32.xlu0 %v2735, 16
  %v2739 = vpop.permute.xlu0 %2738
  %vm2742 = vcmp.ge.s32.totalorder %v116, 16
  %vm2743 = vcmp.lt.s32.totalorder %v116, 32
  %vm2744 = vmand %vm2742, %vm2743
  %2745 = vst.msk [vmem:[#allocation9] sm:$0x1] %vm2744, %v2737
  %2746 = vst.msk [vmem:[#allocation9 + $0x2] sm:$0x1] %vm2744, %v2739
  %v2747 = vld [vmem:[#allocation8 + $0x2] sm:$0x1]
  %v2748 = vld [vmem:[#allocation8 + $0x12] sm:$0x1]
  %v2752 = vunpack.c.l.s4 1966171168
  %v2753 = vunpack.c.0.s8 %v2752
  %v2754 = vlaneseq
  %v2755 = vshrl.u32 %v2754, 7
  %v2756 = vsub.s32 %v2753, %v2755
  %v2757 = vrot.slane %v2747, %v2756
  %v2759 = vunpack.c.l.s4 1966171168
  %v2760 = vunpack.c.0.s8 %v2759
  %v2761 = vlaneseq
  %v2762 = vshrl.u32 %v2761, 7
  %v2763 = vsub.s32 %v2760, %v2762
  %v2764 = vrot.slane %v2757, %v2763
  %v2766 = vunpack.c.l.s4 1966171168
  %v2767 = vunpack.c.0.s8 %v2766
  %v2768 = vlaneseq
  %v2769 = vshrl.u32 %v2768, 7
  %v2770 = vsub.s32 %v2767, %v2769
  %v2771 = vrot.slane %v2748, %v2770
  %v2773 = vunpack.c.l.s4 1966171168
  %v2774 = vunpack.c.0.s8 %v2773
  %v2775 = vlaneseq
  %v2776 = vshrl.u32 %v2775, 7
  %v2777 = vsub.s32 %v2774, %v2776
  %v2778 = vrot.slane %v2771, %v2777
  %2779 = vrot.lane.b32.xlu0 %v2764, 32
  %v2780 = vpop.permute.xlu0 %2779
  %2781 = vrot.lane.b32.xlu0 %v2778, 32
  %v2782 = vpop.permute.xlu0 %2781
  %vm2785 = vcmp.ge.s32.totalorder %v116, 32
  %vm2786 = vcmp.lt.s32.totalorder %v116, 48
  %vm2787 = vmand %vm2785, %vm2786
  %2788 = vst.msk [vmem:[#allocation9] sm:$0x1] %vm2787, %v2780
  %2789 = vst.msk [vmem:[#allocation9 + $0x2] sm:$0x1] %vm2787, %v2782
  %v2790 = vld [vmem:[#allocation8 + $0x3] sm:$0x1]
  %v2791 = vld [vmem:[#allocation8 + $0x13] sm:$0x1]
  %v2795 = vunpack.c.l.s4 1966171168
  %v2796 = vunpack.c.0.s8 %v2795
  %v2797 = vlaneseq
  %v2798 = vshrl.u32 %v2797, 7
  %v2799 = vsub.s32 %v2796, %v2798
  %v2800 = vrot.slane %v2790, %v2799
  %v2802 = vunpack.c.l.s4 1966171168
  %v2803 = vunpack.c.0.s8 %v2802
  %v2804 = vlaneseq
  %v2805 = vshrl.u32 %v2804, 7
  %v2806 = vsub.s32 %v2803, %v2805
  %v2807 = vrot.slane %v2800, %v2806
  %v2809 = vunpack.c.l.s4 1966171168
  %v2810 = vunpack.c.0.s8 %v2809
  %v2811 = vlaneseq
  %v2812 = vshrl.u32 %v2811, 7
  %v2813 = vsub.s32 %v2810, %v2812
  %v2814 = vrot.slane %v2791, %v2813
  %v2816 = vunpack.c.l.s4 1966171168
  %v2817 = vunpack.c.0.s8 %v2816
  %v2818 = vlaneseq
  %v2819 = vshrl.u32 %v2818, 7
  %v2820 = vsub.s32 %v2817, %v2819
  %v2821 = vrot.slane %v2814, %v2820
  %2822 = vrot.lane.b32.xlu0 %v2807, 48
  %v2823 = vpop.permute.xlu0 %2822
  %2824 = vrot.lane.b32.xlu0 %v2821, 48
  %v2825 = vpop.permute.xlu0 %2824
  %vm2828 = vcmp.ge.s32.totalorder %v116, 48
  %vm2829 = vcmp.lt.s32.totalorder %v116, 64
  %vm2830 = vmand %vm2828, %vm2829
  %2831 = vst.msk [vmem:[#allocation9] sm:$0x1] %vm2830, %v2823
  %2832 = vst.msk [vmem:[#allocation9 + $0x2] sm:$0x1] %vm2830, %v2825
  %v2833 = vld [vmem:[#allocation8 + $0x4] sm:$0x1]
  %v2834 = vld [vmem:[#allocation8 + $0x14] sm:$0x1]
  %v2838 = vunpack.c.l.s4 1966171168
  %v2839 = vunpack.c.0.s8 %v2838
  %v2840 = vlaneseq
  %v2841 = vshrl.u32 %v2840, 7
  %v2842 = vsub.s32 %v2839, %v2841
  %v2843 = vrot.slane %v2833, %v2842
  %v2845 = vunpack.c.l.s4 1966171168
  %v2846 = vunpack.c.0.s8 %v2845
  %v2847 = vlaneseq
  %v2848 = vshrl.u32 %v2847, 7
  %v2849 = vsub.s32 %v2846, %v2848
  %v2850 = vrot.slane %v2843, %v2849
  %v2852 = vunpack.c.l.s4 1966171168
  %v2853 = vunpack.c.0.s8 %v2852
  %v2854 = vlaneseq
  %v2855 = vshrl.u32 %v2854, 7
  %v2856 = vsub.s32 %v2853, %v2855
  %v2857 = vrot.slane %v2834, %v2856
  %v2859 = vunpack.c.l.s4 1966171168
  %v2860 = vunpack.c.0.s8 %v2859
  %v2861 = vlaneseq
  %v2862 = vshrl.u32 %v2861, 7
  %v2863 = vsub.s32 %v2860, %v2862
  %v2864 = vrot.slane %v2857, %v2863
  %2865 = vrot.lane.b32.xlu0 %v2850, 64
  %v2866 = vpop.permute.xlu0 %2865
  %2867 = vrot.lane.b32.xlu0 %v2864, 64
  %v2868 = vpop.permute.xlu0 %2867
  %vm2871 = vcmp.ge.s32.totalorder %v116, 64
  %vm2872 = vcmp.lt.s32.totalorder %v116, 80
  %vm2873 = vmand %vm2871, %vm2872
  %2874 = vst.msk [vmem:[#allocation9] sm:$0x1] %vm2873, %v2866
  %2875 = vst.msk [vmem:[#allocation9 + $0x2] sm:$0x1] %vm2873, %v2868
  %v2876 = vld [vmem:[#allocation8 + $0x5] sm:$0x1]
  %v2877 = vld [vmem:[#allocation8 + $0x15] sm:$0x1]
  %v2881 = vunpack.c.l.s4 1966171168
  %v2882 = vunpack.c.0.s8 %v2881
  %v2883 = vlaneseq
  %v2884 = vshrl.u32 %v2883, 7
  %v2885 = vsub.s32 %v2882, %v2884
  %v2886 = vrot.slane %v2876, %v2885
  %v2888 = vunpack.c.l.s4 1966171168
  %v2889 = vunpack.c.0.s8 %v2888
  %v2890 = vlaneseq
  %v2891 = vshrl.u32 %v2890, 7
  %v2892 = vsub.s32 %v2889, %v2891
  %v2893 = vrot.slane %v2886, %v2892
  %v2895 = vunpack.c.l.s4 1966171168
  %v2896 = vunpack.c.0.s8 %v2895
  %v2897 = vlaneseq
  %v2898 = vshrl.u32 %v2897, 7
  %v2899 = vsub.s32 %v2896, %v2898
  %v2900 = vrot.slane %v2877, %v2899
  %v2902 = vunpack.c.l.s4 1966171168
  %v2903 = vunpack.c.0.s8 %v2902
  %v2904 = vlaneseq
  %v2905 = vshrl.u32 %v2904, 7
  %v2906 = vsub.s32 %v2903, %v2905
  %v2907 = vrot.slane %v2900, %v2906
  %2908 = vrot.lane.b32.xlu0 %v2893, 80
  %v2909 = vpop.permute.xlu0 %2908
  %2910 = vrot.lane.b32.xlu0 %v2907, 80
  %v2911 = vpop.permute.xlu0 %2910
  %vm2914 = vcmp.ge.s32.totalorder %v116, 80
  %vm2915 = vcmp.lt.s32.totalorder %v116, 96
  %vm2916 = vmand %vm2914, %vm2915
  %2917 = vst.msk [vmem:[#allocation9] sm:$0x1] %vm2916, %v2909
  %2918 = vst.msk [vmem:[#allocation9 + $0x2] sm:$0x1] %vm2916, %v2911
  %v2919 = vld [vmem:[#allocation8 + $0x6] sm:$0x1]
  %v2920 = vld [vmem:[#allocation8 + $0x16] sm:$0x1]
  %v2924 = vunpack.c.l.s4 1966171168
  %v2925 = vunpack.c.0.s8 %v2924
  %v2926 = vlaneseq
  %v2927 = vshrl.u32 %v2926, 7
  %v2928 = vsub.s32 %v2925, %v2927
  %v2929 = vrot.slane %v2919, %v2928
  %v2931 = vunpack.c.l.s4 1966171168
  %v2932 = vunpack.c.0.s8 %v2931
  %v2933 = vlaneseq
  %v2934 = vshrl.u32 %v2933, 7
  %v2935 = vsub.s32 %v2932, %v2934
  %v2936 = vrot.slane %v2929, %v2935
  %v2938 = vunpack.c.l.s4 1966171168
  %v2939 = vunpack.c.0.s8 %v2938
  %v2940 = vlaneseq
  %v2941 = vshrl.u32 %v2940, 7
  %v2942 = vsub.s32 %v2939, %v2941
  %v2943 = vrot.slane %v2920, %v2942
  %v2945 = vunpack.c.l.s4 1966171168
  %v2946 = vunpack.c.0.s8 %v2945
  %v2947 = vlaneseq
  %v2948 = vshrl.u32 %v2947, 7
  %v2949 = vsub.s32 %v2946, %v2948
  %v2950 = vrot.slane %v2943, %v2949
  %2951 = vrot.lane.b32.xlu0 %v2936, 96
  %v2952 = vpop.permute.xlu0 %2951
  %2953 = vrot.lane.b32.xlu0 %v2950, 96
  %v2954 = vpop.permute.xlu0 %2953
  %vm2957 = vcmp.ge.s32.totalorder %v116, 96
  %vm2958 = vcmp.lt.s32.totalorder %v116, 112
  %vm2959 = vmand %vm2957, %vm2958
  %2960 = vst.msk [vmem:[#allocation9] sm:$0x1] %vm2959, %v2952
  %2961 = vst.msk [vmem:[#allocation9 + $0x2] sm:$0x1] %vm2959, %v2954
  %v2962 = vld [vmem:[#allocation8 + $0x7] sm:$0x1]
  %v2963 = vld [vmem:[#allocation8 + $0x17] sm:$0x1]
  %v2967 = vunpack.c.l.s4 1966171168
  %v2968 = vunpack.c.0.s8 %v2967
  %v2969 = vlaneseq
  %v2970 = vshrl.u32 %v2969, 7
  %v2971 = vsub.s32 %v2968, %v2970
  %v2972 = vrot.slane %v2962, %v2971
  %v2974 = vunpack.c.l.s4 1966171168
  %v2975 = vunpack.c.0.s8 %v2974
  %v2976 = vlaneseq
  %v2977 = vshrl.u32 %v2976, 7
  %v2978 = vsub.s32 %v2975, %v2977
  %v2979 = vrot.slane %v2972, %v2978
  %v2981 = vunpack.c.l.s4 1966171168
  %v2982 = vunpack.c.0.s8 %v2981
  %v2983 = vlaneseq
  %v2984 = vshrl.u32 %v2983, 7
  %v2985 = vsub.s32 %v2982, %v2984
  %v2986 = vrot.slane %v2963, %v2985
  %v2988 = vunpack.c.l.s4 1966171168
  %v2989 = vunpack.c.0.s8 %v2988
  %v2990 = vlaneseq
  %v2991 = vshrl.u32 %v2990, 7
  %v2992 = vsub.s32 %v2989, %v2991
  %v2993 = vrot.slane %v2986, %v2992
  %2994 = vrot.lane.b32.xlu0 %v2979, 112
  %v2995 = vpop.permute.xlu0 %2994
  %2996 = vrot.lane.b32.xlu0 %v2993, 112
  %v2997 = vpop.permute.xlu0 %2996
  %vm3000 = vcmp.ge.s32.totalorder %v116, 112
  %vm3001 = vcmp.lt.s32.totalorder %v116, 128
  %vm3002 = vmand %vm3000, %vm3001
  %3003 = vst.msk [vmem:[#allocation9] sm:$0x1] %vm3002, %v2995
  %3004 = vst.msk [vmem:[#allocation9 + $0x2] sm:$0x1] %vm3002, %v2997
  %v3005 = vld [vmem:[#allocation8 + $0x8] sm:$0x1]
  %v3006 = vld [vmem:[#allocation8 + $0x18] sm:$0x1]
  %3007 = vst.msk [vmem:[#allocation9 + $0x1] sm:$0x1] %vm2701, %v3005
  %3008 = vst.msk [vmem:[#allocation9 + $0x3] sm:$0x1] %vm2701, %v3006
  %v3009 = vld [vmem:[#allocation8 + $0x9] sm:$0x1]
  %v3010 = vld [vmem:[#allocation8 + $0x19] sm:$0x1]
  %v3014 = vunpack.c.l.s4 1966171168
  %v3015 = vunpack.c.0.s8 %v3014
  %v3016 = vlaneseq
  %v3017 = vshrl.u32 %v3016, 7
  %v3018 = vsub.s32 %v3015, %v3017
  %v3019 = vrot.slane %v3009, %v3018
  %v3021 = vunpack.c.l.s4 1966171168
  %v3022 = vunpack.c.0.s8 %v3021
  %v3023 = vlaneseq
  %v3024 = vshrl.u32 %v3023, 7
  %v3025 = vsub.s32 %v3022, %v3024
  %v3026 = vrot.slane %v3019, %v3025
  %v3028 = vunpack.c.l.s4 1966171168
  %v3029 = vunpack.c.0.s8 %v3028
  %v3030 = vlaneseq
  %v3031 = vshrl.u32 %v3030, 7
  %v3032 = vsub.s32 %v3029, %v3031
  %v3033 = vrot.slane %v3010, %v3032
  %v3035 = vunpack.c.l.s4 1966171168
  %v3036 = vunpack.c.0.s8 %v3035
  %v3037 = vlaneseq
  %v3038 = vshrl.u32 %v3037, 7
  %v3039 = vsub.s32 %v3036, %v3038
  %v3040 = vrot.slane %v3033, %v3039
  %3041 = vrot.lane.b32.xlu0 %v3026, 16
  %v3042 = vpop.permute.xlu0 %3041
  %3043 = vrot.lane.b32.xlu0 %v3040, 16
  %v3044 = vpop.permute.xlu0 %3043
  %3047 = vst.msk [vmem:[#allocation9 + $0x1] sm:$0x1] %vm2744, %v3042
  %3048 = vst.msk [vmem:[#allocation9 + $0x3] sm:$0x1] %vm2744, %v3044
  %v3049 = vld [vmem:[#allocation8 + $0xa] sm:$0x1]
  %v3050 = vld [vmem:[#allocation8 + $0x1a] sm:$0x1]
  %v3054 = vunpack.c.l.s4 1966171168
  %v3055 = vunpack.c.0.s8 %v3054
  %v3056 = vlaneseq
  %v3057 = vshrl.u32 %v3056, 7
  %v3058 = vsub.s32 %v3055, %v3057
  %v3059 = vrot.slane %v3049, %v3058
  %v3061 = vunpack.c.l.s4 1966171168
  %v3062 = vunpack.c.0.s8 %v3061
  %v3063 = vlaneseq
  %v3064 = vshrl.u32 %v3063, 7
  %v3065 = vsub.s32 %v3062, %v3064
  %v3066 = vrot.slane %v3059, %v3065
  %v3068 = vunpack.c.l.s4 1966171168
  %v3069 = vunpack.c.0.s8 %v3068
  %v3070 = vlaneseq
  %v3071 = vshrl.u32 %v3070, 7
  %v3072 = vsub.s32 %v3069, %v3071
  %v3073 = vrot.slane %v3050, %v3072
  %v3075 = vunpack.c.l.s4 1966171168
  %v3076 = vunpack.c.0.s8 %v3075
  %v3077 = vlaneseq
  %v3078 = vshrl.u32 %v3077, 7
  %v3079 = vsub.s32 %v3076, %v3078
  %v3080 = vrot.slane %v3073, %v3079
  %3081 = vrot.lane.b32.xlu0 %v3066, 32
  %v3082 = vpop.permute.xlu0 %3081
  %3083 = vrot.lane.b32.xlu0 %v3080, 32
  %v3084 = vpop.permute.xlu0 %3083
  %3087 = vst.msk [vmem:[#allocation9 + $0x1] sm:$0x1] %vm2787, %v3082
  %3088 = vst.msk [vmem:[#allocation9 + $0x3] sm:$0x1] %vm2787, %v3084
  %v3089 = vld [vmem:[#allocation8 + $0xb] sm:$0x1]
  %v3090 = vld [vmem:[#allocation8 + $0x1b] sm:$0x1]
  %v3094 = vunpack.c.l.s4 1966171168
  %v3095 = vunpack.c.0.s8 %v3094
  %v3096 = vlaneseq
  %v3097 = vshrl.u32 %v3096, 7
  %v3098 = vsub.s32 %v3095, %v3097
  %v3099 = vrot.slane %v3089, %v3098
  %v3101 = vunpack.c.l.s4 1966171168
  %v3102 = vunpack.c.0.s8 %v3101
  %v3103 = vlaneseq
  %v3104 = vshrl.u32 %v3103, 7
  %v3105 = vsub.s32 %v3102, %v3104
  %v3106 = vrot.slane %v3099, %v3105
  %v3108 = vunpack.c.l.s4 1966171168
  %v3109 = vunpack.c.0.s8 %v3108
  %v3110 = vlaneseq
  %v3111 = vshrl.u32 %v3110, 7
  %v3112 = vsub.s32 %v3109, %v3111
  %v3113 = vrot.slane %v3090, %v3112
  %v3115 = vunpack.c.l.s4 1966171168
  %v3116 = vunpack.c.0.s8 %v3115
  %v3117 = vlaneseq
  %v3118 = vshrl.u32 %v3117, 7
  %v3119 = vsub.s32 %v3116, %v3118
  %v3120 = vrot.slane %v3113, %v3119
  %3121 = vrot.lane.b32.xlu0 %v3106, 48
  %v3122 = vpop.permute.xlu0 %3121
  %3123 = vrot.lane.b32.xlu0 %v3120, 48
  %v3124 = vpop.permute.xlu0 %3123
  %3127 = vst.msk [vmem:[#allocation9 + $0x1] sm:$0x1] %vm2830, %v3122
  %3128 = vst.msk [vmem:[#allocation9 + $0x3] sm:$0x1] %vm2830, %v3124
  %v3129 = vld [vmem:[#allocation8 + $0xc] sm:$0x1]
  %v3130 = vld [vmem:[#allocation8 + $0x1c] sm:$0x1]
  %v3134 = vunpack.c.l.s4 1966171168
  %v3135 = vunpack.c.0.s8 %v3134
  %v3136 = vlaneseq
  %v3137 = vshrl.u32 %v3136, 7
  %v3138 = vsub.s32 %v3135, %v3137
  %v3139 = vrot.slane %v3129, %v3138
  %v3141 = vunpack.c.l.s4 1966171168
  %v3142 = vunpack.c.0.s8 %v3141
  %v3143 = vlaneseq
  %v3144 = vshrl.u32 %v3143, 7
  %v3145 = vsub.s32 %v3142, %v3144
  %v3146 = vrot.slane %v3139, %v3145
  %v3148 = vunpack.c.l.s4 1966171168
  %v3149 = vunpack.c.0.s8 %v3148
  %v3150 = vlaneseq
  %v3151 = vshrl.u32 %v3150, 7
  %v3152 = vsub.s32 %v3149, %v3151
  %v3153 = vrot.slane %v3130, %v3152
  %v3155 = vunpack.c.l.s4 1966171168
  %v3156 = vunpack.c.0.s8 %v3155
  %v3157 = vlaneseq
  %v3158 = vshrl.u32 %v3157, 7
  %v3159 = vsub.s32 %v3156, %v3158
  %v3160 = vrot.slane %v3153, %v3159
  %3161 = vrot.lane.b32.xlu0 %v3146, 64
  %v3162 = vpop.permute.xlu0 %3161
  %3163 = vrot.lane.b32.xlu0 %v3160, 64
  %v3164 = vpop.permute.xlu0 %3163
  %3167 = vst.msk [vmem:[#allocation9 + $0x1] sm:$0x1] %vm2873, %v3162
  %3168 = vst.msk [vmem:[#allocation9 + $0x3] sm:$0x1] %vm2873, %v3164
  %v3169 = vld [vmem:[#allocation8 + $0xd] sm:$0x1]
  %v3170 = vld [vmem:[#allocation8 + $0x1d] sm:$0x1]
  %v3174 = vunpack.c.l.s4 1966171168
  %v3175 = vunpack.c.0.s8 %v3174
  %v3176 = vlaneseq
  %v3177 = vshrl.u32 %v3176, 7
  %v3178 = vsub.s32 %v3175, %v3177
  %v3179 = vrot.slane %v3169, %v3178
  %v3181 = vunpack.c.l.s4 1966171168
  %v3182 = vunpack.c.0.s8 %v3181
  %v3183 = vlaneseq
  %v3184 = vshrl.u32 %v3183, 7
  %v3185 = vsub.s32 %v3182, %v3184
  %v3186 = vrot.slane %v3179, %v3185
  %v3188 = vunpack.c.l.s4 1966171168
  %v3189 = vunpack.c.0.s8 %v3188
  %v3190 = vlaneseq
  %v3191 = vshrl.u32 %v3190, 7
  %v3192 = vsub.s32 %v3189, %v3191
  %v3193 = vrot.slane %v3170, %v3192
  %v3195 = vunpack.c.l.s4 1966171168
  %v3196 = vunpack.c.0.s8 %v3195
  %v3197 = vlaneseq
  %v3198 = vshrl.u32 %v3197, 7
  %v3199 = vsub.s32 %v3196, %v3198
  %v3200 = vrot.slane %v3193, %v3199
  %3201 = vrot.lane.b32.xlu0 %v3186, 80
  %v3202 = vpop.permute.xlu0 %3201
  %3203 = vrot.lane.b32.xlu0 %v3200, 80
  %v3204 = vpop.permute.xlu0 %3203
  %3207 = vst.msk [vmem:[#allocation9 + $0x1] sm:$0x1] %vm2916, %v3202
  %3208 = vst.msk [vmem:[#allocation9 + $0x3] sm:$0x1] %vm2916, %v3204
  %v3209 = vld [vmem:[#allocation8 + $0xe] sm:$0x1]
  %v3210 = vld [vmem:[#allocation8 + $0x1e] sm:$0x1]
  %v3214 = vunpack.c.l.s4 1966171168
  %v3215 = vunpack.c.0.s8 %v3214
  %v3216 = vlaneseq
  %v3217 = vshrl.u32 %v3216, 7
  %v3218 = vsub.s32 %v3215, %v3217
  %v3219 = vrot.slane %v3209, %v3218
  %v3221 = vunpack.c.l.s4 1966171168
  %v3222 = vunpack.c.0.s8 %v3221
  %v3223 = vlaneseq
  %v3224 = vshrl.u32 %v3223, 7
  %v3225 = vsub.s32 %v3222, %v3224
  %v3226 = vrot.slane %v3219, %v3225
  %v3228 = vunpack.c.l.s4 1966171168
  %v3229 = vunpack.c.0.s8 %v3228
  %v3230 = vlaneseq
  %v3231 = vshrl.u32 %v3230, 7
  %v3232 = vsub.s32 %v3229, %v3231
  %v3233 = vrot.slane %v3210, %v3232
  %v3235 = vunpack.c.l.s4 1966171168
  %v3236 = vunpack.c.0.s8 %v3235
  %v3237 = vlaneseq
  %v3238 = vshrl.u32 %v3237, 7
  %v3239 = vsub.s32 %v3236, %v3238
  %v3240 = vrot.slane %v3233, %v3239
  %3241 = vrot.lane.b32.xlu0 %v3226, 96
  %v3242 = vpop.permute.xlu0 %3241
  %3243 = vrot.lane.b32.xlu0 %v3240, 96
  %v3244 = vpop.permute.xlu0 %3243
  %3247 = vst.msk [vmem:[#allocation9 + $0x1] sm:$0x1] %vm2959, %v3242
  %3248 = vst.msk [vmem:[#allocation9 + $0x3] sm:$0x1] %vm2959, %v3244
  %v3249 = vld [vmem:[#allocation8 + $0xf] sm:$0x1]
  %v3250 = vld [vmem:[#allocation8 + $0x1f] sm:$0x1]
  %v3254 = vunpack.c.l.s4 1966171168
  %v3255 = vunpack.c.0.s8 %v3254
  %v3256 = vlaneseq
  %v3257 = vshrl.u32 %v3256, 7
  %v3258 = vsub.s32 %v3255, %v3257
  %v3259 = vrot.slane %v3249, %v3258
  %v3261 = vunpack.c.l.s4 1966171168
  %v3262 = vunpack.c.0.s8 %v3261
  %v3263 = vlaneseq
  %v3264 = vshrl.u32 %v3263, 7
  %v3265 = vsub.s32 %v3262, %v3264
  %v3266 = vrot.slane %v3259, %v3265
  %v3268 = vunpack.c.l.s4 1966171168
  %v3269 = vunpack.c.0.s8 %v3268
  %v3270 = vlaneseq
  %v3271 = vshrl.u32 %v3270, 7
  %v3272 = vsub.s32 %v3269, %v3271
  %v3273 = vrot.slane %v3250, %v3272
  %v3275 = vunpack.c.l.s4 1966171168
  %v3276 = vunpack.c.0.s8 %v3275
  %v3277 = vlaneseq
  %v3278 = vshrl.u32 %v3277, 7
  %v3279 = vsub.s32 %v3276, %v3278
  %v3280 = vrot.slane %v3273, %v3279
  %3281 = vrot.lane.b32.xlu0 %v3266, 112
  %v3282 = vpop.permute.xlu0 %3281
  %3283 = vrot.lane.b32.xlu0 %v3280, 112
  %v3284 = vpop.permute.xlu0 %3283
  %3287 = vst.msk [vmem:[#allocation9 + $0x1] sm:$0x1] %vm3002, %v3282
  %3288 = vst.msk [vmem:[#allocation9 + $0x3] sm:$0x1] %vm3002, %v3284
  %v3289 = vld [vmem:[#allocation9] sm:$0x3]
  %v3290 = vld [vmem:[#allocation9 + $0x2] sm:$0x3]
  %v3291 = vld [vmem:[%s1] sm:$0xff]
  %v3292 = vld [vmem:[%s1 + $0x8] sm:$0xff]
  %v3295 = vlaneseq
  %v3296 = vshrl.u32 %v3295, 7
  %v3297 = vsub.s32 0, %v3296
  %v3298 = vrot.slane %v3289, %v3297
  %v3299 = vlaneseq
  %v3300 = vshrl.u32 %v3299, 7
  %v3301 = vsub.s32 1, %v3300
  %v3302 = vrot.slane %v3289, %v3301
  %v3303 = vlaneseq
  %v3304 = vshrl.u32 %v3303, 7
  %v3305 = vsub.s32 0, %v3304
  %v3306 = vrot.slane %v3290, %v3305
  %v3307 = vlaneseq
  %v3308 = vshrl.u32 %v3307, 7
  %v3309 = vsub.s32 1, %v3308
  %v3310 = vrot.slane %v3290, %v3309
  %v3311 = vcombine.low %v3298, %v3302
  %v3312 = vcombine.low %v3306, %v3310
  %v3315 = vmul.f32 %v3291, %v3311
  %v3316 = vmul.f32 %v3292, %v3312
  %3317 = vst [vmem:[%s2] sm:$0xff] %v3315
  %3318 = vst [vmem:[%s2 + $0x8] sm:$0xff] %v3316
  // Predicated region
  $region6: #{sam_forward.1} parent=0 // pred_check
    _
  $region7: #{sam_forward.1} parent=0 // pred_check_branch
    %3320 = sbr.rel (0) target = $region9
  $region8: #{sam_forward.1} parent=0 // pred_region
    _
  $region9: #{sam_forward.1} parent=0 // pred_fallthru
    _
  // Predicated region
  $region10: #{sam_forward.1} parent=0 // pred_check
    _
  $region11: #{sam_forward.1} parent=0 // pred_check_branch
    %3322 = sbr.rel (0) target = $region13
  $region12: #{sam_forward.1} parent=0 // pred_region
    _
  $region13: #{sam_forward.1} parent=0 // pred_fallthru
    _

</llo_original>
